<compile_context>
chip_gen: v7x
topology: tpu7x:2x2x1
jax: 0.10.0
libtpu: 0.0.40
codegen_flags: <defaults>
</compile_context>

<pallas_src>
import jax
import jax.numpy as jnp
from jax.experimental import pallas as pl
from jax.experimental.pallas import tpu as pltpu

IN_DIM = 45 * 45          # 2025
IN_PAD = 2048             # zero-padded K for clean (8,128) tiling
H1, H2, H3 = 1024, 512, 256
OUT = 17
OUT_PAD = 128             # lane-dense output tile, sliced back to 17 after the call

SMALL_BATCH_MAX = 128     # <= this -> single-tile manual-DMA path


def _round_up(n, m):
    return ((n + m - 1) // m) * m


def _cdiv(a, b):
    return -(-a // b)


# ----------------------------------------------------------------------------
# Large-batch kernel: auto-pipelined batch tiles, VMEM-resident weights.
# ----------------------------------------------------------------------------
def mlp_kernel(x_ref,
               w1_ref, b1_ref,
               w2_ref, b2_ref,
               w3_ref, b3_ref,
               w4_ref, b4_ref,
               o_ref):
    x = x_ref[...]                                                     # (TB, IN_PAD) bf16
    h = jnp.dot(x, w1_ref[...], preferred_element_type=jnp.float32) + b1_ref[...]
    h = jnp.maximum(h, 0.0)                                            # (TB, 1024) f32
    h = jnp.dot(h.astype(jnp.bfloat16), w2_ref[...],
                preferred_element_type=jnp.float32) + b2_ref[...]
    h = jnp.maximum(h, 0.0)                                            # (TB, 512)
    h = jnp.dot(h.astype(jnp.bfloat16), w3_ref[...],
                preferred_element_type=jnp.float32) + b3_ref[...]
    h = jnp.maximum(h, 0.0)                                            # (TB, 256)
    out = jnp.dot(h.astype(jnp.bfloat16), w4_ref[...],
                  preferred_element_type=jnp.float32) + b4_ref[...]
    o_ref[...] = out.astype(o_ref.dtype)                               # (TB, OUT_PAD)


# ----------------------------------------------------------------------------
# Small-batch kernel: weights stay in HBM, per-layer manual DMA overlap.
# ----------------------------------------------------------------------------
def mlp_small_kernel(x_ref,
                     w1_hbm, b1_ref,
                     w2_hbm, b2_ref,
                     w3_hbm, b3_ref,
                     w4_hbm, b4_ref,
                     o_ref,
                     w1_v, w2_v, w3_v, w4_v, sem):
    # Issue all weight DMAs up front; each layer waits only for its own weights.
    cp1 = pltpu.make_async_copy(w1_hbm, w1_v, sem.at[0]); cp1.start()
    cp2 = pltpu.make_async_copy(w2_hbm, w2_v, sem.at[1]); cp2.start()
    cp3 = pltpu.make_async_copy(w3_hbm, w3_v, sem.at[2]); cp3.start()
    cp4 = pltpu.make_async_copy(w4_hbm, w4_v, sem.at[3]); cp4.start()

    x = x_ref[...]                                                     # (TB, IN_PAD) bf16

    cp1.wait()
    h = jnp.dot(x, w1_v[...], preferred_element_type=jnp.float32) + b1_ref[...]
    h = jnp.maximum(h, 0.0)

    cp2.wait()
    h = jnp.dot(h.astype(jnp.bfloat16), w2_v[...],
                preferred_element_type=jnp.float32) + b2_ref[...]
    h = jnp.maximum(h, 0.0)

    cp3.wait()
    h = jnp.dot(h.astype(jnp.bfloat16), w3_v[...],
                preferred_element_type=jnp.float32) + b3_ref[...]
    h = jnp.maximum(h, 0.0)

    cp4.wait()
    out = jnp.dot(h.astype(jnp.bfloat16), w4_v[...],
                  preferred_element_type=jnp.float32) + b4_ref[...]
    o_ref[...] = out.astype(o_ref.dtype)


# ----------------------------------------------------------------------------
# Wrapper
# ----------------------------------------------------------------------------
@jax.jit
def neural_network_forward(x, prepared):
    """x: (B, 45, 45) / (B, 1, 45, 45) / (B, 2025) -> (B, 17) float32."""
    b = x.shape[0]
    x2d = x.reshape(b, IN_DIM).astype(jnp.bfloat16)
    (w1, b1), (w2, b2), (w3, b3), (w4, b4) = prepared

    if b <= SMALL_BATCH_MAX:
        n_tiles = 1
        tb = _round_up(b, 8)
    else:
        # >= 2 tiles so the parallel batch axis feeds both v7x TensorCores; grow
        # to 512-row tiles for large B (amortizes grid-step overhead on v5e/v6e).
        n_tiles = max(2, _cdiv(b, 512))
        tb = min(512, _round_up(_cdiv(b, n_tiles), 8))
    b_pad = n_tiles * tb

    # Single bf16 pad inside the jit: rows to b_pad, lanes to IN_PAD. Zero pad ->
    # matches the zero rows of w1, so the math is unchanged.
    xp = jnp.pad(x2d, ((0, b_pad - b), (0, IN_PAD - IN_DIM)))

    compiler_params = pltpu.CompilerParams(
        dimension_semantics=("parallel",) if n_tiles > 1 else ("arbitrary",),
        vmem_limit_bytes=48 << 20,
    )

    if b <= SMALL_BATCH_MAX:
        out = pl.pallas_call(
            mlp_small_kernel,
            out_shape=jax.ShapeDtypeStruct((b_pad, OUT_PAD), jnp.float32),
            grid=(1,),
            in_specs=[
                pl.BlockSpec((tb, IN_PAD), lambda i: (0, 0)),       # x (bf16)
                pl.BlockSpec(memory_space=pl.ANY),                  # w1 in HBM
                pl.BlockSpec((1, H1), lambda i: (0, 0)),            # b1
                pl.BlockSpec(memory_space=pl.ANY),                  # w2 in HBM
                pl.BlockSpec((1, H2), lambda i: (0, 0)),            # b2
                pl.BlockSpec(memory_space=pl.ANY),                  # w3 in HBM
                pl.BlockSpec((1, H3), lambda i: (0, 0)),            # b3
                pl.BlockSpec(memory_space=pl.ANY),                  # w4 in HBM
                pl.BlockSpec((1, OUT_PAD), lambda i: (0, 0)),       # b4
            ],
            out_specs=pl.BlockSpec((tb, OUT_PAD), lambda i: (0, 0)),
            scratch_shapes=[
                pltpu.VMEM((IN_PAD, H1), jnp.bfloat16),             # single-buffered
                pltpu.VMEM((H1, H2), jnp.bfloat16),
                pltpu.VMEM((H2, H3), jnp.bfloat16),
                pltpu.VMEM((H3, OUT_PAD), jnp.bfloat16),
                pltpu.SemaphoreType.DMA((4,)),
            ],
            compiler_params=compiler_params,
        )(xp, w1, b1, w2, b2, w3, b3, w4, b4)
    else:
        def resident(shape):
            # Constant block index -> stays in VMEM, DMA'd once for the whole grid.
            return pl.BlockSpec(shape, lambda i: (0, 0))

        out = pl.pallas_call(
            mlp_kernel,
            out_shape=jax.ShapeDtypeStruct((b_pad, OUT_PAD), jnp.float32),
            grid=(n_tiles,),
            in_specs=[
                pl.BlockSpec((tb, IN_PAD), lambda i: (i, 0)),       # x: tiled, bf16
                resident((IN_PAD, H1)), resident((1, H1)),
                resident((H1, H2)),     resident((1, H2)),
                resident((H2, H3)),     resident((1, H3)),
                resident((H3, OUT_PAD)), resident((1, OUT_PAD)),
            ],
            out_specs=pl.BlockSpec((tb, OUT_PAD), lambda i: (i, 0)),
            compiler_params=compiler_params,
        )(xp, w1, b1, w2, b2, w3, b3, w4, b4)

    return out[:b, :OUT]


# ----------------------------------------------------------------------------
# Params (synthetic, deterministic) and pure-JAX reference
# ----------------------------------------------------------------------------
def init_params(key):
    """Synthetic f32 params. Weights stored as (in, out) = PyTorch W.T; biases (1, out)."""
    dims = [(IN_DIM, H1), (H1, H2), (H2, H3), (H3, OUT)]
    params = []
    for i, (din, dout) in enumerate(dims):
        kw, kb = jax.random.split(jax.random.fold_in(key, i))
        scale = 1.0 / jnp.sqrt(jnp.float32(din))
        w = jax.random.uniform(kw, (din, dout), jnp.float32, -scale, scale)
        bias = jax.random.uniform(kb, (1, dout), jnp.float32, -scale, scale)
        params.append((w, bias))
    return params


def prepare_params(params):
    """Pad to MXU-friendly shapes; cast weights to bf16 (biases stay f32)."""
    (w1, b1), (w2, b2), (w3, b3), (w4, b4) = params
    w1p = jnp.zeros((IN_PAD, H1), jnp.float32).at[:IN_DIM, :].set(w1)
    w4p = jnp.zeros((H3, OUT_PAD), jnp.float32).at[:, :OUT].set(w4)
    b4p = jnp.zeros((1, OUT_PAD), jnp.float32).at[:, :OUT].set(b4)
    return (
        (w1p.astype(jnp.bfloat16), b1),
        (w2.astype(jnp.bfloat16), b2),
        (w3.astype(jnp.bfloat16), b3),
        (w4p.astype(jnp.bfloat16), b4p),
    )


def reference_forward(x, prepared):
    """Pure-JAX reference using the same prepared (bf16, padded) params."""
    b = x.shape[0]
    h = x.reshape(b, IN_DIM).astype(jnp.bfloat16)
    h = jnp.pad(h, ((0, 0), (0, IN_PAD - IN_DIM)))
    (w1, b1), (w2, b2), (w3, b3), (w4, b4) = prepared

    def lin(a, w, bias):
        return jnp.dot(a.astype(jnp.bfloat16), w,
                       preferred_element_type=jnp.float32) + bias

    h = jnp.maximum(lin(h, w1, b1), 0.0)
    h = jnp.maximum(lin(h, w2, b2), 0.0)
    h = jnp.maximum(lin(h, w3, b3), 0.0)
    out = lin(h, w4, b4)
    return out[:, :OUT]


if __name__ == "__main__":
    key = jax.random.PRNGKey(0)
    kx, kp = jax.random.split(key)

    params = init_params(kp)
    prepared = prepare_params(params)

    # Small batch -> single-tile manual-DMA path.
    x_small = jax.random.normal(kx, (8, 45, 45), jnp.float32)
    out_small = jax.block_until_ready(neural_network_forward(x_small, prepared))
    ref_small = reference_forward(x_small, prepared)
    assert out_small.shape == (8, OUT), out_small.shape
    assert jnp.allclose(out_small, ref_small, atol=2e-2, rtol=2e-2), "small-batch mismatch"

    # Larger batch -> tiled, auto-pipelined path (>= 2 grid steps).
    x_big = jax.random.normal(jax.random.fold_in(kx, 1), (192, 45, 45), jnp.float32)
    out_big = jax.block_until_ready(neural_network_forward(x_big, prepared))
    ref_big = reference_forward(x_big, prepared)
    assert out_big.shape == (192, OUT), out_big.shape
    assert jnp.allclose(out_big, ref_big, atol=2e-2, rtol=2e-2), "large-batch mismatch"

    print("KERNEL_OK")
</pallas_src>

<mosaic_0001>
module attributes {stable_mosaic.version = 11 : i64} {
  func.func @mlp_small_kernel(%arg0: i32, %arg1: memref<8x2048xbf16, #tpu.memory_space<vmem>>, %arg2: memref<2048x1024xbf16, #tpu.memory_space<any>>, %arg3: memref<1x1024xf32, #tpu.memory_space<vmem>>, %arg4: memref<1024x512xbf16, #tpu.memory_space<any>>, %arg5: memref<1x512xf32, #tpu.memory_space<vmem>>, %arg6: memref<512x256xbf16, #tpu.memory_space<any>>, %arg7: memref<1x256xf32, #tpu.memory_space<vmem>>, %arg8: memref<256x128xbf16, #tpu.memory_space<any>>, %arg9: memref<1x128xf32, #tpu.memory_space<vmem>>, %arg10: memref<8x128xf32, #tpu.memory_space<vmem>>, %arg11: memref<2048x1024xbf16, #tpu.memory_space<vmem>>, %arg12: memref<1024x512xbf16, #tpu.memory_space<vmem>>, %arg13: memref<512x256xbf16, #tpu.memory_space<vmem>>, %arg14: memref<256x128xbf16, #tpu.memory_space<vmem>>, %arg15: memref<4x!tpu.dma_semaphore, #tpu.memory_space<semaphore_mem>>) attributes {dimension_semantics = [#tpu.dimension_semantics<arbitrary>], iteration_bounds = array<i64: 1>, scalar_prefetch = 0 : i64, scratch_operands = 5 : i64, tpu.core_type = #tpu.core_type<tc>, window_params = [{pipeline_mode = #tpu.pipeline_mode<synchronous>, transform_indices = @transform_0, window_bounds = array<i64: 8, 2048>}, {}, {pipeline_mode = #tpu.pipeline_mode<synchronous>, transform_indices = @transform_2, window_bounds = array<i64: 1, 1024>}, {}, {pipeline_mode = #tpu.pipeline_mode<synchronous>, transform_indices = @transform_4, window_bounds = array<i64: 1, 512>}, {}, {pipeline_mode = #tpu.pipeline_mode<synchronous>, transform_indices = @transform_6, window_bounds = array<i64: 1, 256>}, {}, {pipeline_mode = #tpu.pipeline_mode<synchronous>, transform_indices = @transform_8, window_bounds = array<i64: 1, 128>}, {pipeline_mode = #tpu.pipeline_mode<synchronous>, transform_indices = @transform_9, window_bounds = array<i64: 8, 128>}]} {
    %c0_i32 = arith.constant 0 : i32
    %0 = tpu.memref_slice %arg15[%c0_i32] : memref<4x!tpu.dma_semaphore, #tpu.memory_space<semaphore_mem>> -> memref<1x!tpu.dma_semaphore, #tpu.memory_space<semaphore_mem>>
    %1 = tpu.memref_squeeze %0 : memref<1x!tpu.dma_semaphore, #tpu.memory_space<semaphore_mem>> -> memref<!tpu.dma_semaphore, #tpu.memory_space<semaphore_mem>>
    tpu.enqueue_dma source(%arg2 : memref<2048x1024xbf16, #tpu.memory_space<any>>) target(%arg11 : memref<2048x1024xbf16, #tpu.memory_space<vmem>>) target_semaphore(%1 : memref<!tpu.dma_semaphore, #tpu.memory_space<semaphore_mem>>)
    %c1_i32 = arith.constant 1 : i32
    %2 = tpu.memref_slice %arg15[%c1_i32] : memref<4x!tpu.dma_semaphore, #tpu.memory_space<semaphore_mem>> -> memref<1x!tpu.dma_semaphore, #tpu.memory_space<semaphore_mem>>
    %3 = tpu.memref_squeeze %2 : memref<1x!tpu.dma_semaphore, #tpu.memory_space<semaphore_mem>> -> memref<!tpu.dma_semaphore, #tpu.memory_space<semaphore_mem>>
    tpu.enqueue_dma source(%arg4 : memref<1024x512xbf16, #tpu.memory_space<any>>) target(%arg12 : memref<1024x512xbf16, #tpu.memory_space<vmem>>) target_semaphore(%3 : memref<!tpu.dma_semaphore, #tpu.memory_space<semaphore_mem>>)
    %c2_i32 = arith.constant 2 : i32
    %4 = tpu.memref_slice %arg15[%c2_i32] : memref<4x!tpu.dma_semaphore, #tpu.memory_space<semaphore_mem>> -> memref<1x!tpu.dma_semaphore, #tpu.memory_space<semaphore_mem>>
    %5 = tpu.memref_squeeze %4 : memref<1x!tpu.dma_semaphore, #tpu.memory_space<semaphore_mem>> -> memref<!tpu.dma_semaphore, #tpu.memory_space<semaphore_mem>>
    tpu.enqueue_dma source(%arg6 : memref<512x256xbf16, #tpu.memory_space<any>>) target(%arg13 : memref<512x256xbf16, #tpu.memory_space<vmem>>) target_semaphore(%5 : memref<!tpu.dma_semaphore, #tpu.memory_space<semaphore_mem>>)
    %c3_i32 = arith.constant 3 : i32
    %6 = tpu.memref_slice %arg15[%c3_i32] : memref<4x!tpu.dma_semaphore, #tpu.memory_space<semaphore_mem>> -> memref<1x!tpu.dma_semaphore, #tpu.memory_space<semaphore_mem>>
    %7 = tpu.memref_squeeze %6 : memref<1x!tpu.dma_semaphore, #tpu.memory_space<semaphore_mem>> -> memref<!tpu.dma_semaphore, #tpu.memory_space<semaphore_mem>>
    tpu.enqueue_dma source(%arg8 : memref<256x128xbf16, #tpu.memory_space<any>>) target(%arg14 : memref<256x128xbf16, #tpu.memory_space<vmem>>) target_semaphore(%7 : memref<!tpu.dma_semaphore, #tpu.memory_space<semaphore_mem>>)
    %c0 = arith.constant 0 : index
    %c0_0 = arith.constant 0 : index
    %8 = vector.load %arg1[%c0, %c0_0] : memref<8x2048xbf16, #tpu.memory_space<vmem>>, vector<8x2048xbf16>
    %c0_i32_1 = arith.constant 0 : i32
    %9 = tpu.memref_slice %arg15[%c0_i32_1] : memref<4x!tpu.dma_semaphore, #tpu.memory_space<semaphore_mem>> -> memref<1x!tpu.dma_semaphore, #tpu.memory_space<semaphore_mem>>
    %10 = tpu.memref_squeeze %9 : memref<1x!tpu.dma_semaphore, #tpu.memory_space<semaphore_mem>> -> memref<!tpu.dma_semaphore, #tpu.memory_space<semaphore_mem>>
    tpu.wait_dma2 semaphore(%10 : memref<!tpu.dma_semaphore, #tpu.memory_space<semaphore_mem>>) src(%arg2 : memref<2048x1024xbf16, #tpu.memory_space<any>>) dst(%arg11 : memref<2048x1024xbf16, #tpu.memory_space<vmem>>)
    %c0_2 = arith.constant 0 : index
    %c0_3 = arith.constant 0 : index
    %11 = vector.load %arg11[%c0_2, %c0_3] : memref<2048x1024xbf16, #tpu.memory_space<vmem>>, vector<2048x1024xbf16>
    %cst = arith.constant dense<0.000000e+00> : vector<8x1024xf32>
    %12 = tpu.matmul %8, %11, %cst {dimension_numbers = #tpu.dot_dimension_numbers<[1], [0], [0], [1], [0, 0, 1, 1], [], []>} : vector<8x2048xbf16>, vector<2048x1024xbf16>, vector<8x1024xf32> -> vector<8x1024xf32>
    %c0_4 = arith.constant 0 : index
    %c0_5 = arith.constant 0 : index
    %13 = vector.load %arg3[%c0_4, %c0_5] : memref<1x1024xf32, #tpu.memory_space<vmem>>, vector<1x1024xf32>
    %14 = vector.broadcast %13 : vector<1x1024xf32> to vector<8x1024xf32>
    %15 = arith.addf %12, %14 : vector<8x1024xf32>
    %cst_6 = arith.constant 0.000000e+00 : f32
    %16 = vector.broadcast %cst_6 : f32 to vector<8x1024xf32>
    %17 = arith.maximumf %15, %16 : vector<8x1024xf32>
    %c1_i32_7 = arith.constant 1 : i32
    %18 = tpu.memref_slice %arg15[%c1_i32_7] : memref<4x!tpu.dma_semaphore, #tpu.memory_space<semaphore_mem>> -> memref<1x!tpu.dma_semaphore, #tpu.memory_space<semaphore_mem>>
    %19 = tpu.memref_squeeze %18 : memref<1x!tpu.dma_semaphore, #tpu.memory_space<semaphore_mem>> -> memref<!tpu.dma_semaphore, #tpu.memory_space<semaphore_mem>>
    tpu.wait_dma2 semaphore(%19 : memref<!tpu.dma_semaphore, #tpu.memory_space<semaphore_mem>>) src(%arg4 : memref<1024x512xbf16, #tpu.memory_space<any>>) dst(%arg12 : memref<1024x512xbf16, #tpu.memory_space<vmem>>)
    %20 = arith.truncf %17 : vector<8x1024xf32> to vector<8x1024xbf16>
    %c0_8 = arith.constant 0 : index
    %c0_9 = arith.constant 0 : index
    %21 = vector.load %arg12[%c0_8, %c0_9] : memref<1024x512xbf16, #tpu.memory_space<vmem>>, vector<1024x512xbf16>
    %cst_10 = arith.constant dense<0.000000e+00> : vector<8x512xf32>
    %22 = tpu.matmul %20, %21, %cst_10 {dimension_numbers = #tpu.dot_dimension_numbers<[1], [0], [0], [1], [0, 0, 1, 1], [], []>} : vector<8x1024xbf16>, vector<1024x512xbf16>, vector<8x512xf32> -> vector<8x512xf32>
    %c0_11 = arith.constant 0 : index
    %c0_12 = arith.constant 0 : index
    %23 = vector.load %arg5[%c0_11, %c0_12] : memref<1x512xf32, #tpu.memory_space<vmem>>, vector<1x512xf32>
    %24 = vector.broadcast %23 : vector<1x512xf32> to vector<8x512xf32>
    %25 = arith.addf %22, %24 : vector<8x512xf32>
    %cst_13 = arith.constant 0.000000e+00 : f32
    %26 = vector.broadcast %cst_13 : f32 to vector<8x512xf32>
    %27 = arith.maximumf %25, %26 : vector<8x512xf32>
    %c2_i32_14 = arith.constant 2 : i32
    %28 = tpu.memref_slice %arg15[%c2_i32_14] : memref<4x!tpu.dma_semaphore, #tpu.memory_space<semaphore_mem>> -> memref<1x!tpu.dma_semaphore, #tpu.memory_space<semaphore_mem>>
    %29 = tpu.memref_squeeze %28 : memref<1x!tpu.dma_semaphore, #tpu.memory_space<semaphore_mem>> -> memref<!tpu.dma_semaphore, #tpu.memory_space<semaphore_mem>>
    tpu.wait_dma2 semaphore(%29 : memref<!tpu.dma_semaphore, #tpu.memory_space<semaphore_mem>>) src(%arg6 : memref<512x256xbf16, #tpu.memory_space<any>>) dst(%arg13 : memref<512x256xbf16, #tpu.memory_space<vmem>>)
    %30 = arith.truncf %27 : vector<8x512xf32> to vector<8x512xbf16>
    %c0_15 = arith.constant 0 : index
    %c0_16 = arith.constant 0 : index
    %31 = vector.load %arg13[%c0_15, %c0_16] : memref<512x256xbf16, #tpu.memory_space<vmem>>, vector<512x256xbf16>
    %cst_17 = arith.constant dense<0.000000e+00> : vector<8x256xf32>
    %32 = tpu.matmul %30, %31, %cst_17 {dimension_numbers = #tpu.dot_dimension_numbers<[1], [0], [0], [1], [0, 0, 1, 1], [], []>} : vector<8x512xbf16>, vector<512x256xbf16>, vector<8x256xf32> -> vector<8x256xf32>
    %c0_18 = arith.constant 0 : index
    %c0_19 = arith.constant 0 : index
    %33 = vector.load %arg7[%c0_18, %c0_19] : memref<1x256xf32, #tpu.memory_space<vmem>>, vector<1x256xf32>
    %34 = vector.broadcast %33 : vector<1x256xf32> to vector<8x256xf32>
    %35 = arith.addf %32, %34 : vector<8x256xf32>
    %cst_20 = arith.constant 0.000000e+00 : f32
    %36 = vector.broadcast %cst_20 : f32 to vector<8x256xf32>
    %37 = arith.maximumf %35, %36 : vector<8x256xf32>
    %c3_i32_21 = arith.constant 3 : i32
    %38 = tpu.memref_slice %arg15[%c3_i32_21] : memref<4x!tpu.dma_semaphore, #tpu.memory_space<semaphore_mem>> -> memref<1x!tpu.dma_semaphore, #tpu.memory_space<semaphore_mem>>
    %39 = tpu.memref_squeeze %38 : memref<1x!tpu.dma_semaphore, #tpu.memory_space<semaphore_mem>> -> memref<!tpu.dma_semaphore, #tpu.memory_space<semaphore_mem>>
    tpu.wait_dma2 semaphore(%39 : memref<!tpu.dma_semaphore, #tpu.memory_space<semaphore_mem>>) src(%arg8 : memref<256x128xbf16, #tpu.memory_space<any>>) dst(%arg14 : memref<256x128xbf16, #tpu.memory_space<vmem>>)
    %40 = arith.truncf %37 : vector<8x256xf32> to vector<8x256xbf16>
    %c0_22 = arith.constant 0 : index
    %c0_23 = arith.constant 0 : index
    %41 = vector.load %arg14[%c0_22, %c0_23] : memref<256x128xbf16, #tpu.memory_space<vmem>>, vector<256x128xbf16>
    %cst_24 = arith.constant dense<0.000000e+00> : vector<8x128xf32>
    %42 = tpu.matmul %40, %41, %cst_24 {dimension_numbers = #tpu.dot_dimension_numbers<[1], [0], [0], [1], [0, 0, 1, 1], [], []>} : vector<8x256xbf16>, vector<256x128xbf16>, vector<8x128xf32> -> vector<8x128xf32>
    %c0_25 = arith.constant 0 : index
    %c0_26 = arith.constant 0 : index
    %43 = vector.load %arg9[%c0_25, %c0_26] : memref<1x128xf32, #tpu.memory_space<vmem>>, vector<1x128xf32>
    %44 = vector.broadcast %43 : vector<1x128xf32> to vector<8x128xf32>
    %45 = arith.addf %42, %44 : vector<8x128xf32>
    %c0_27 = arith.constant 0 : index
    %c0_28 = arith.constant 0 : index
    %46 = vector.load %arg10[%c0_27, %c0_28] : memref<8x128xf32, #tpu.memory_space<vmem>>, vector<8x128xf32>
    tpu.vector_store %arg10[%c0_27, %c0_28], %45 {strides = array<i32>} : memref<8x128xf32, #tpu.memory_space<vmem>>, vector<8x128xf32>,
    return
  }
  func.func @transform_0(%arg0: i32) -> (i32, i32) {
    %c0_i32 = arith.constant 0 : i32
    %c0_i32_0 = arith.constant 0 : i32
    %c0_i32_1 = arith.constant 0 : i32
    return %c0_i32, %c0_i32_0 : i32, i32
  }
  func.func @transform_2(%arg0: i32) -> (i32, i32) {
    %c0_i32 = arith.constant 0 : i32
    %c0_i32_0 = arith.constant 0 : i32
    %c0_i32_1 = arith.constant 0 : i32
    return %c0_i32, %c0_i32_0 : i32, i32
  }
  func.func @transform_4(%arg0: i32) -> (i32, i32) {
    %c0_i32 = arith.constant 0 : i32
    %c0_i32_0 = arith.constant 0 : i32
    %c0_i32_1 = arith.constant 0 : i32
    return %c0_i32, %c0_i32_0 : i32, i32
  }
  func.func @transform_6(%arg0: i32) -> (i32, i32) {
    %c0_i32 = arith.constant 0 : i32
    %c0_i32_0 = arith.constant 0 : i32
    %c0_i32_1 = arith.constant 0 : i32
    return %c0_i32, %c0_i32_0 : i32, i32
  }
  func.func @transform_8(%arg0: i32) -> (i32, i32) {
    %c0_i32 = arith.constant 0 : i32
    %c0_i32_0 = arith.constant 0 : i32
    %c0_i32_1 = arith.constant 0 : i32
    return %c0_i32, %c0_i32_0 : i32, i32
  }
  func.func @transform_9(%arg0: i32) -> (i32, i32) {
    %c0_i32 = arith.constant 0 : i32
    %c0_i32_0 = arith.constant 0 : i32
    %c0_i32_1 = arith.constant 0 : i32
    return %c0_i32, %c0_i32_0 : i32, i32
  }
}

</mosaic_0001>

<llo_original>
// kernel: neural_network_forward.1
$region0: #{neural_network_forward.1}
  #allocation0 [shape = 'u32[]', space=smem, size = 0x4, offset = 0x4, fixed_abs, tag = 'smem constant byte address 0x4 - core index']
  #allocation1 [shape = 'u32[144,128]{1,0:T(1,128)}', space=vmem, size = 0x12000, scoped, tag = 'internal scratch']
  #allocation2 [shape = 'bf16[2048,1024]{1,0:T(16,128)(2,1)}', space=vmem, size = 0x400000, scoped, tag = 'scratch operand']
  #allocation3 [shape = 'bf16[1024,512]{1,0:T(16,128)(2,1)}', space=vmem, size = 0x100000, scoped, tag = 'scratch operand']
  #allocation4 [shape = 'bf16[512,256]{1,0:T(16,128)(2,1)}', space=vmem, size = 0x40000, scoped, tag = 'scratch operand']
  #allocation5 [shape = 'bf16[256,128]{1,0:T(16,128)(2,1)}', space=vmem, size = 0x10000, scoped, tag = 'scratch operand']
  #allocation6 [shape = 's32[4]{0}', space=sflag, size = 0x10, scoped, tag = 'scratch operand']
  #allocation16 [shape = 's32[]', space=sflag, size = 0x4, offset = 0, fixed_abs, tag = 'sflag constant byte address 0x0 - dummy sync flag']
  #allocation18 [shape = 's32[]', space=sflag, size = 0x4, offset = 0, fixed_abs, tag = 'sflag constant byte address 0x0 - dummy sync flag']
  #allocation20 [shape = 's32[]', space=sflag, size = 0x4, offset = 0, fixed_abs, tag = 'sflag constant byte address 0x0 - dummy sync flag']
  #allocation22 [shape = 's32[]', space=sflag, size = 0x4, offset = 0, fixed_abs, tag = 'sflag constant byte address 0x0 - dummy sync flag']
  #allocation23 [shape = 's32[]', space=sflag, size = 0x4, offset = 0, fixed_abs, tag = 'sflag constant byte address 0x0 - dummy sync flag']
  #allocation24 [shape = 'u32[]', space=smem, size = 0x4, offset = 0x44, fixed_abs, tag = 'smem constant byte address 0x44 - assertion arg 0']
  #allocation25 [shape = 'u32[]', space=smem, size = 0x4, offset = 0x48, fixed_abs, tag = 'smem constant byte address 0x48 - assertion arg 1']
  %s0 = inlined_call_operand.vmem [shape: bf16[8,2048], index: 0, kind: input, shape index: {}]
  %s1 = inlined_call_operand.hbm [shape: bf16[2048,1024], index: 1, kind: input, shape index: {}]
  %s2 = inlined_call_operand.hbm [shape: f32[1,1024], index: 2, kind: input, shape index: {}]
  %s3 = inlined_call_operand.hbm [shape: bf16[1024,512], index: 3, kind: input, shape index: {}]
  %s4 = inlined_call_operand.hbm [shape: f32[1,512], index: 4, kind: input, shape index: {}]
  %s5 = inlined_call_operand.hbm [shape: bf16[512,256], index: 5, kind: input, shape index: {}]
  %s6 = inlined_call_operand.hbm [shape: f32[1,256], index: 6, kind: input, shape index: {}]
  %s7 = inlined_call_operand.hbm [shape: bf16[256,128], index: 7, kind: input, shape index: {}]
  %s8 = inlined_call_operand.hbm [shape: f32[1,128], index: 8, kind: input, shape index: {}]
  %s9 = inlined_call_operand.hbm [shape: f32[8,128], index: 9, kind: output, shape index: {}]
  %s10 = sld [smem:[#allocation0]]
  $region50: #{neural_network_forward.1} parent=0
    _
  %s12 = ssub.s32 1, %s10
  %s13 = scalar_select 0, %s12, %s10
  $region1: #{neural_network_forward.1} parent=0
    #allocation7 [shape = 'u8[4096]{0}', space=vmem, size = 0x1000, scoped, tag = 'input window, operand 2, single buffered']
    #allocation8 [shape = 's32[1]{0}', space=sflag, size = 0x4, scoped, tag = 'scoped memory for neural_network_forward.1']
    #allocation9 [shape = 's32[1]{0}', space=sflag, size = 0x4, scoped, tag = 'scoped memory for neural_network_forward.1']
    #allocation10 [shape = 'u8[2048]{0}', space=vmem, size = 0x800, scoped, tag = 'input window, operand 4, single buffered']
    #allocation11 [shape = 's32[1]{0}', space=sflag, size = 0x4, scoped, tag = 'scoped memory for neural_network_forward.1']
    #allocation12 [shape = 'u8[1024]{0}', space=vmem, size = 0x400, scoped, tag = 'input window, operand 6, single buffered']
    #allocation13 [shape = 'u8[512]{0}', space=vmem, size = 0x400, scoped, tag = 'input window, operand 8, single buffered']
    #allocation14 [shape = 's32[1]{0}', space=sflag, size = 0x4, scoped, tag = 'scoped memory for neural_network_forward.1']
    #allocation15 [shape = 'u8[4096]{0}', space=vmem, size = 0x1000, scoped, tag = 'output window, operand 0, single buffered']
    #allocation17 [shape = 'u32[9]{0}', space=smem, size = 0x24, scoped, tag = 'DMA stride descriptor']
    #allocation19 [shape = 'u32[9]{0}', space=smem, size = 0x24, scoped, tag = 'DMA stride descriptor']
    #allocation21 [shape = 'u32[9]{0}', space=smem, size = 0x24, scoped, tag = 'DMA stride descriptor']
    %14 = vsyncpa [#allocation8], 0
    %15 = vsyncpa [#allocation11], 0
    %16 = vsyncpa [#allocation14], 0
    %17 = vsyncpa [#allocation9], 0
    // Predicated region
    $region2: #{neural_network_forward.1} parent=1 // pred_check
      _
    $region3: #{neural_network_forward.1} parent=1 // pred_check_branch
      %19 = sbr.rel (0) target = $region5
    $region4: #{neural_network_forward.1} parent=1 // pred_region
      _
    $region5: #{neural_network_forward.1} parent=1 // pred_fallthru
      _
    // Predicated region
    $region6: #{neural_network_forward.1} parent=1 // pred_check
      _
    $region7: #{neural_network_forward.1} parent=1 // pred_check_branch
      %21 = sbr.rel (0) target = $region9
    $region8: #{neural_network_forward.1} parent=1 // pred_region
      %s23 = ssub.s32 128, 128
      %24 = vsyncadd [#allocation8], %s23
      %s26 = sshll.u32 [#allocation7], 4
      %s27 = int_to_ptr.vmem [resolvable:$true] %s26
      %29 = dma.hbm_to_vmem [thread:$0]  %s2, 128, %s27, [#allocation8]
    $region9: #{neural_network_forward.1} parent=1 // pred_fallthru
      _
    // Predicated region
    $region10: #{neural_network_forward.1} parent=1 // pred_check
      _
    $region11: #{neural_network_forward.1} parent=1 // pred_check_branch
      %31 = sbr.rel (0) target = $region13
    $region12: #{neural_network_forward.1} parent=1 // pred_region
      %s33 = ssub.s32 64, 64
      %34 = vsyncadd [#allocation11], %s33
      %s36 = sshll.u32 [#allocation10], 4
      %s37 = int_to_ptr.vmem [resolvable:$true] %s36
      %39 = dma.hbm_to_vmem [thread:$0]  %s4, 64, %s37, [#allocation11]
    $region13: #{neural_network_forward.1} parent=1 // pred_fallthru
      _
    // Predicated region
    $region14: #{neural_network_forward.1} parent=1 // pred_check
      _
    $region15: #{neural_network_forward.1} parent=1 // pred_check_branch
      %41 = sbr.rel (0) target = $region17
    $region16: #{neural_network_forward.1} parent=1 // pred_region
      %s43 = ssub.s32 32, 32
      %44 = vsyncadd [#allocation11], %s43
      %s46 = sshll.u32 [#allocation12], 4
      %s47 = int_to_ptr.vmem [resolvable:$true] %s46
      %49 = dma.hbm_to_vmem [thread:$0]  %s6, 32, %s47, [#allocation11]
    $region17: #{neural_network_forward.1} parent=1 // pred_fallthru
      _
    // Predicated region
    $region18: #{neural_network_forward.1} parent=1 // pred_check
      _
    $region19: #{neural_network_forward.1} parent=1 // pred_check_branch
      %51 = sbr.rel (0) target = $region21
    $region20: #{neural_network_forward.1} parent=1 // pred_region
      %s53 = ssub.s32 16, 16
      %54 = vsyncadd [#allocation14], %s53
      %s56 = sshll.u32 [#allocation13], 4
      %s57 = int_to_ptr.vmem [resolvable:$true] %s56
      %59 = dma.hbm_to_vmem [thread:$0]  %s8, 16, %s57, [#allocation14]
    $region21: #{neural_network_forward.1} parent=1 // pred_fallthru
      _
    // Predicated region
    $region22: #{neural_network_forward.1} parent=1 // pred_check
      _
    $region23: #{neural_network_forward.1} parent=1 // pred_check_branch
      %61 = sbr.rel (0) target = $region25
    $region24: #{neural_network_forward.1} parent=1 // pred_region
      %62 = dma.done [#allocation8], 128
    $region25: #{neural_network_forward.1} parent=1 // pred_fallthru
      _
    // Predicated region
    $region26: #{neural_network_forward.1} parent=1 // pred_check
      _
    $region27: #{neural_network_forward.1} parent=1 // pred_check_branch
      %64 = sbr.rel (0) target = $region29
    $region28: #{neural_network_forward.1} parent=1 // pred_region
      %65 = dma.done [#allocation11], 64
    $region29: #{neural_network_forward.1} parent=1 // pred_fallthru
      _
    // Predicated region
    $region30: #{neural_network_forward.1} parent=1 // pred_check
      _
    $region31: #{neural_network_forward.1} parent=1 // pred_check_branch
      %67 = sbr.rel (0) target = $region33
    $region32: #{neural_network_forward.1} parent=1 // pred_region
      %68 = dma.done [#allocation11], 32
    $region33: #{neural_network_forward.1} parent=1 // pred_fallthru
      _
    // Predicated region
    $region34: #{neural_network_forward.1} parent=1 // pred_check
      _
    $region35: #{neural_network_forward.1} parent=1 // pred_check_branch
      %70 = sbr.rel (0) target = $region37
    $region36: #{neural_network_forward.1} parent=1 // pred_region
      %71 = dma.done [#allocation14], 16
    $region37: #{neural_network_forward.1} parent=1 // pred_fallthru
      _
    %s74 = sshll.u32 1, 14
    %s75 = sxor.u32 4294967295, %s74
    %s77 = sld [smem:[#allocation0]]
    %s78 = sadd.s32 2, %s77
    %s80 = sshll.u32 7, 26
    %s81 = sxor.u32 4294967295, %s80
    %s82 = sand.u32 0, %s81
    %s83 = sshll.u32 %s78, 26
    %s84 = sor.u32 %s82, %s83
    %s85 = sshll.u32 [#allocation2], 4
    %s86 = int_to_ptr.vmem [resolvable:$true] %s85
    %89 = sst [smem:[#allocation17]] 1024
    %s90 = scalar_lea.smem [#allocation17], 1
    %91 = sst [smem:[%s90]] 1024
    %s92 = scalar_lea.smem [#allocation17], 2
    %93 = sst [smem:[%s92]] 8
    %s94 = scalar_lea.smem [#allocation17], 3
    %95 = sst [smem:[%s94]] 64
    %s96 = scalar_lea.smem [#allocation17], 4
    %97 = sst [smem:[%s96]] 128
    %s98 = scalar_lea.smem [#allocation17], 5
    %99 = sst [smem:[%s98]] 2
    %s100 = scalar_lea.smem [#allocation17], 6
    %101 = sst [smem:[%s100]] 512
    %s102 = scalar_lea.smem [#allocation17], 7
    %103 = sst [smem:[%s102]] 64
    %s104 = scalar_lea.smem [#allocation17], 8
    %105 = sst [smem:[%s104]] 4
    %107 = dma.general %s1, 131072, %s86, [#allocation6], [#allocation16], [#allocation17], %s84, 0
    %s108 = scalar_lea.sflag [#allocation6], 1
    %s110 = sshll.u32 1, 14
    %s111 = sxor.u32 4294967295, %s110
    %s113 = sadd.s32 2, %s77
    %s115 = sshll.u32 7, 26
    %s116 = sxor.u32 4294967295, %s115
    %s117 = sand.u32 0, %s116
    %s118 = sshll.u32 %s113, 26
    %s119 = sor.u32 %s117, %s118
    %s120 = sshll.u32 [#allocation3], 4
    %s121 = int_to_ptr.vmem [resolvable:$true] %s120
    %124 = sst [smem:[#allocation19]] 512
    %s125 = scalar_lea.smem [#allocation19], 1
    %126 = sst [smem:[%s125]] 512
    %s127 = scalar_lea.smem [#allocation19], 2
    %128 = sst [smem:[%s127]] 4
    %s129 = scalar_lea.smem [#allocation19], 3
    %130 = sst [smem:[%s129]] 64
    %s131 = scalar_lea.smem [#allocation19], 4
    %132 = sst [smem:[%s131]] 128
    %s133 = scalar_lea.smem [#allocation19], 5
    %134 = sst [smem:[%s133]] 2
    %s135 = scalar_lea.smem [#allocation19], 6
    %136 = sst [smem:[%s135]] 256
    %s137 = scalar_lea.smem [#allocation19], 7
    %138 = sst [smem:[%s137]] 64
    %s139 = scalar_lea.smem [#allocation19], 8
    %140 = sst [smem:[%s139]] 4
    %142 = dma.general %s3, 32768, %s121, %s108, [#allocation18], [#allocation19], %s119, 0
    %s143 = scalar_lea.sflag [#allocation6], 2
    %s145 = sshll.u32 1, 14
    %s146 = sxor.u32 4294967295, %s145
    %s148 = sadd.s32 2, %s77
    %s150 = sshll.u32 7, 26
    %s151 = sxor.u32 4294967295, %s150
    %s152 = sand.u32 0, %s151
    %s153 = sshll.u32 %s148, 26
    %s154 = sor.u32 %s152, %s153
    %s155 = sshll.u32 [#allocation4], 4
    %s156 = int_to_ptr.vmem [resolvable:$true] %s155
    %159 = sst [smem:[#allocation21]] 256
    %s160 = scalar_lea.smem [#allocation21], 1
    %161 = sst [smem:[%s160]] 256
    %s162 = scalar_lea.smem [#allocation21], 2
    %163 = sst [smem:[%s162]] 2
    %s164 = scalar_lea.smem [#allocation21], 3
    %165 = sst [smem:[%s164]] 64
    %s166 = scalar_lea.smem [#allocation21], 4
    %167 = sst [smem:[%s166]] 128
    %s168 = scalar_lea.smem [#allocation21], 5
    %169 = sst [smem:[%s168]] 2
    %s170 = scalar_lea.smem [#allocation21], 6
    %171 = sst [smem:[%s170]] 128
    %s172 = scalar_lea.smem [#allocation21], 7
    %173 = sst [smem:[%s172]] 64
    %s174 = scalar_lea.smem [#allocation21], 8
    %175 = sst [smem:[%s174]] 4
    %177 = dma.general %s5, 8192, %s156, %s143, [#allocation20], [#allocation21], %s154, 0
    %s178 = scalar_lea.sflag [#allocation6], 3
    // Predicated region
    $region38: #{neural_network_forward.1} parent=1 // pred_check
      _
    $region39: #{neural_network_forward.1} parent=1 // pred_check_branch
      %180 = sbr.rel target = $region41
    $region40: #{neural_network_forward.1} parent=1 // pred_region
      %181 = sst [smem:[#allocation24]] [#allocation23]
      %182 = sst [smem:[#allocation25]] [#allocation22]
    $region41: #{neural_network_forward.1} parent=1 // pred_fallthru
      _
    %184 = shalt.err (0)
    %s186 = sshll.u32 [#allocation5], 4
    %s187 = int_to_ptr.vmem [resolvable:$true] %s186
    %189 = dma.hbm_to_vmem [thread:$0]  %s7, 2048, %s187, %s178
    %v190 = vld [vmem:[%s0] sm:$0xff]
    %v191 = vld [vmem:[%s0 + $0x8] sm:$0xff]
    %v192 = vld [vmem:[%s0 + $0x10] sm:$0xff]
    %v193 = vld [vmem:[%s0 + $0x18] sm:$0xff]
    %v194 = vld [vmem:[%s0 + $0x20] sm:$0xff]
    %v195 = vld [vmem:[%s0 + $0x28] sm:$0xff]
    %v196 = vld [vmem:[%s0 + $0x30] sm:$0xff]
    %v197 = vld [vmem:[%s0 + $0x38] sm:$0xff]
    %s198 = smul.u32 4, 256
    %s199 = smul.u32 %s198, 8
    %s200 = sshll.u32 %s199, 4
    %201 = dma.done [#allocation6], %s200
    %v202 = vld [vmem:[#allocation2] sm:$0xff]
    %v203 = vld [vmem:[#allocation2 + $0x8] sm:$0xff]
    %v204 = vld [vmem:[#allocation2 + $0x10] sm:$0xff]
    %v205 = vld [vmem:[#allocation2 + $0x18] sm:$0xff]
    %v206 = vld [vmem:[#allocation2 + $0x20] sm:$0xff]
    %v207 = vld [vmem:[#allocation2 + $0x28] sm:$0xff]
    %v208 = vld [vmem:[#allocation2 + $0x30] sm:$0xff]
    %v209 = vld [vmem:[#allocation2 + $0x38] sm:$0xff]
    %v210 = vld [vmem:[#allocation2 + $0x40] sm:$0xff]
    %v211 = vld [vmem:[#allocation2 + $0x48] sm:$0xff]
    %v212 = vld [vmem:[#allocation2 + $0x50] sm:$0xff]
    %v213 = vld [vmem:[#allocation2 + $0x58] sm:$0xff]
    %v214 = vld [vmem:[#allocation2 + $0x60] sm:$0xff]
    %v215 = vld [vmem:[#allocation2 + $0x68] sm:$0xff]
    %v216 = vld [vmem:[#allocation2 + $0x70] sm:$0xff]
    %v217 = vld [vmem:[#allocation2 + $0x78] sm:$0xff]
    %v218 = vld [vmem:[#allocation2 + $0x80] sm:$0xff]
    %v219 = vld [vmem:[#allocation2 + $0x88] sm:$0xff]
    %v220 = vld [vmem:[#allocation2 + $0x90] sm:$0xff]
    %v221 = vld [vmem:[#allocation2 + $0x98] sm:$0xff]
    %v222 = vld [vmem:[#allocation2 + $0xa0] sm:$0xff]
    %v223 = vld [vmem:[#allocation2 + $0xa8] sm:$0xff]
    %v224 = vld [vmem:[#allocation2 + $0xb0] sm:$0xff]
    %v225 = vld [vmem:[#allocation2 + $0xb8] sm:$0xff]
    %v226 = vld [vmem:[#allocation2 + $0xc0] sm:$0xff]
    %v227 = vld [vmem:[#allocation2 + $0xc8] sm:$0xff]
    %v228 = vld [vmem:[#allocation2 + $0xd0] sm:$0xff]
    %v229 = vld [vmem:[#allocation2 + $0xd8] sm:$0xff]
    %v230 = vld [vmem:[#allocation2 + $0xe0] sm:$0xff]
    %v231 = vld [vmem:[#allocation2 + $0xe8] sm:$0xff]
    %v232 = vld [vmem:[#allocation2 + $0xf0] sm:$0xff]
    %v233 = vld [vmem:[#allocation2 + $0xf8] sm:$0xff]
    %v234 = vld [vmem:[#allocation2 + $0x100] sm:$0xff]
    %v235 = vld [vmem:[#allocation2 + $0x108] sm:$0xff]
    %v236 = vld [vmem:[#allocation2 + $0x110] sm:$0xff]
    %v237 = vld [vmem:[#allocation2 + $0x118] sm:$0xff]
    %v238 = vld [vmem:[#allocation2 + $0x120] sm:$0xff]
    %v239 = vld [vmem:[#allocation2 + $0x128] sm:$0xff]
    %v240 = vld [vmem:[#allocation2 + $0x130] sm:$0xff]
    %v241 = vld [vmem:[#allocation2 + $0x138] sm:$0xff]
    %v242 = vld [vmem:[#allocation2 + $0x140] sm:$0xff]
    %v243 = vld [vmem:[#allocation2 + $0x148] sm:$0xff]
    %v244 = vld [vmem:[#allocation2 + $0x150] sm:$0xff]
    %v245 = vld [vmem:[#allocation2 + $0x158] sm:$0xff]
    %v246 = vld [vmem:[#allocation2 + $0x160] sm:$0xff]
    %v247 = vld [vmem:[#allocation2 + $0x168] sm:$0xff]
    %v248 = vld [vmem:[#allocation2 + $0x170] sm:$0xff]
    %v249 = vld [vmem:[#allocation2 + $0x178] sm:$0xff]
    %v250 = vld [vmem:[#allocation2 + $0x180] sm:$0xff]
    %v251 = vld [vmem:[#allocation2 + $0x188] sm:$0xff]
    %v252 = vld [vmem:[#allocation2 + $0x190] sm:$0xff]
    %v253 = vld [vmem:[#allocation2 + $0x198] sm:$0xff]
    %v254 = vld [vmem:[#allocation2 + $0x1a0] sm:$0xff]
    %v255 = vld [vmem:[#allocation2 + $0x1a8] sm:$0xff]
    %v256 = vld [vmem:[#allocation2 + $0x1b0] sm:$0xff]
    %v257 = vld [vmem:[#allocation2 + $0x1b8] sm:$0xff]
    %v258 = vld [vmem:[#allocation2 + $0x1c0] sm:$0xff]
    %v259 = vld [vmem:[#allocation2 + $0x1c8] sm:$0xff]
    %v260 = vld [vmem:[#allocation2 + $0x1d0] sm:$0xff]
    %v261 = vld [vmem:[#allocation2 + $0x1d8] sm:$0xff]
    %v262 = vld [vmem:[#allocation2 + $0x1e0] sm:$0xff]
    %v263 = vld [vmem:[#allocation2 + $0x1e8] sm:$0xff]
    %v264 = vld [vmem:[#allocation2 + $0x1f0] sm:$0xff]
    %v265 = vld [vmem:[#allocation2 + $0x1f8] sm:$0xff]
    %v266 = vld [vmem:[#allocation2 + $0x200] sm:$0xff]
    %v267 = vld [vmem:[#allocation2 + $0x208] sm:$0xff]
    %v268 = vld [vmem:[#allocation2 + $0x210] sm:$0xff]
    %v269 = vld [vmem:[#allocation2 + $0x218] sm:$0xff]
    %v270 = vld [vmem:[#allocation2 + $0x220] sm:$0xff]
    %v271 = vld [vmem:[#allocation2 + $0x228] sm:$0xff]
    %v272 = vld [vmem:[#allocation2 + $0x230] sm:$0xff]
    %v273 = vld [vmem:[#allocation2 + $0x238] sm:$0xff]
    %v274 = vld [vmem:[#allocation2 + $0x240] sm:$0xff]
    %v275 = vld [vmem:[#allocation2 + $0x248] sm:$0xff]
    %v276 = vld [vmem:[#allocation2 + $0x250] sm:$0xff]
    %v277 = vld [vmem:[#allocation2 + $0x258] sm:$0xff]
    %v278 = vld [vmem:[#allocation2 + $0x260] sm:$0xff]
    %v279 = vld [vmem:[#allocation2 + $0x268] sm:$0xff]
    %v280 = vld [vmem:[#allocation2 + $0x270] sm:$0xff]
    %v281 = vld [vmem:[#allocation2 + $0x278] sm:$0xff]
    %v282 = vld [vmem:[#allocation2 + $0x280] sm:$0xff]
    %v283 = vld [vmem:[#allocation2 + $0x288] sm:$0xff]
    %v284 = vld [vmem:[#allocation2 + $0x290] sm:$0xff]
    %v285 = vld [vmem:[#allocation2 + $0x298] sm:$0xff]
    %v286 = vld [vmem:[#allocation2 + $0x2a0] sm:$0xff]
    %v287 = vld [vmem:[#allocation2 + $0x2a8] sm:$0xff]
    %v288 = vld [vmem:[#allocation2 + $0x2b0] sm:$0xff]
    %v289 = vld [vmem:[#allocation2 + $0x2b8] sm:$0xff]
    %v290 = vld [vmem:[#allocation2 + $0x2c0] sm:$0xff]
    %v291 = vld [vmem:[#allocation2 + $0x2c8] sm:$0xff]
    %v292 = vld [vmem:[#allocation2 + $0x2d0] sm:$0xff]
    %v293 = vld [vmem:[#allocation2 + $0x2d8] sm:$0xff]
    %v294 = vld [vmem:[#allocation2 + $0x2e0] sm:$0xff]
    %v295 = vld [vmem:[#allocation2 + $0x2e8] sm:$0xff]
    %v296 = vld [vmem:[#allocation2 + $0x2f0] sm:$0xff]
    %v297 = vld [vmem:[#allocation2 + $0x2f8] sm:$0xff]
    %v298 = vld [vmem:[#allocation2 + $0x300] sm:$0xff]
    %v299 = vld [vmem:[#allocation2 + $0x308] sm:$0xff]
    %v300 = vld [vmem:[#allocation2 + $0x310] sm:$0xff]
    %v301 = vld [vmem:[#allocation2 + $0x318] sm:$0xff]
    %v302 = vld [vmem:[#allocation2 + $0x320] sm:$0xff]
    %v303 = vld [vmem:[#allocation2 + $0x328] sm:$0xff]
    %v304 = vld [vmem:[#allocation2 + $0x330] sm:$0xff]
    %v305 = vld [vmem:[#allocation2 + $0x338] sm:$0xff]
    %v306 = vld [vmem:[#allocation2 + $0x340] sm:$0xff]
    %v307 = vld [vmem:[#allocation2 + $0x348] sm:$0xff]
    %v308 = vld [vmem:[#allocation2 + $0x350] sm:$0xff]
    %v309 = vld [vmem:[#allocation2 + $0x358] sm:$0xff]
    %v310 = vld [vmem:[#allocation2 + $0x360] sm:$0xff]
    %v311 = vld [vmem:[#allocation2 + $0x368] sm:$0xff]
    %v312 = vld [vmem:[#allocation2 + $0x370] sm:$0xff]
    %v313 = vld [vmem:[#allocation2 + $0x378] sm:$0xff]
    %v314 = vld [vmem:[#allocation2 + $0x380] sm:$0xff]
    %v315 = vld [vmem:[#allocation2 + $0x388] sm:$0xff]
    %v316 = vld [vmem:[#allocation2 + $0x390] sm:$0xff]
    %v317 = vld [vmem:[#allocation2 + $0x398] sm:$0xff]
    %v318 = vld [vmem:[#allocation2 + $0x3a0] sm:$0xff]
    %v319 = vld [vmem:[#allocation2 + $0x3a8] sm:$0xff]
    %v320 = vld [vmem:[#allocation2 + $0x3b0] sm:$0xff]
    %v321 = vld [vmem:[#allocation2 + $0x3b8] sm:$0xff]
    %v322 = vld [vmem:[#allocation2 + $0x3c0] sm:$0xff]
    %v323 = vld [vmem:[#allocation2 + $0x3c8] sm:$0xff]
    %v324 = vld [vmem:[#allocation2 + $0x3d0] sm:$0xff]
    %v325 = vld [vmem:[#allocation2 + $0x3d8] sm:$0xff]
    %v326 = vld [vmem:[#allocation2 + $0x3e0] sm:$0xff]
    %v327 = vld [vmem:[#allocation2 + $0x3e8] sm:$0xff]
    %v328 = vld [vmem:[#allocation2 + $0x3f0] sm:$0xff]
    %v329 = vld [vmem:[#allocation2 + $0x3f8] sm:$0xff]
    %v330 = vld [vmem:[#allocation2 + $0x400] sm:$0xff]
    %v331 = vld [vmem:[#allocation2 + $0x408] sm:$0xff]
    %v332 = vld [vmem:[#allocation2 + $0x410] sm:$0xff]
    %v333 = vld [vmem:[#allocation2 + $0x418] sm:$0xff]
    %v334 = vld [vmem:[#allocation2 + $0x420] sm:$0xff]
    %v335 = vld [vmem:[#allocation2 + $0x428] sm:$0xff]
    %v336 = vld [vmem:[#allocation2 + $0x430] sm:$0xff]
    %v337 = vld [vmem:[#allocation2 + $0x438] sm:$0xff]
    %v338 = vld [vmem:[#allocation2 + $0x440] sm:$0xff]
    %v339 = vld [vmem:[#allocation2 + $0x448] sm:$0xff]
    %v340 = vld [vmem:[#allocation2 + $0x450] sm:$0xff]
    %v341 = vld [vmem:[#allocation2 + $0x458] sm:$0xff]
    %v342 = vld [vmem:[#allocation2 + $0x460] sm:$0xff]
    %v343 = vld [vmem:[#allocation2 + $0x468] sm:$0xff]
    %v344 = vld [vmem:[#allocation2 + $0x470] sm:$0xff]
    %v345 = vld [vmem:[#allocation2 + $0x478] sm:$0xff]
    %v346 = vld [vmem:[#allocation2 + $0x480] sm:$0xff]
    %v347 = vld [vmem:[#allocation2 + $0x488] sm:$0xff]
    %v348 = vld [vmem:[#allocation2 + $0x490] sm:$0xff]
    %v349 = vld [vmem:[#allocation2 + $0x498] sm:$0xff]
    %v350 = vld [vmem:[#allocation2 + $0x4a0] sm:$0xff]
    %v351 = vld [vmem:[#allocation2 + $0x4a8] sm:$0xff]
    %v352 = vld [vmem:[#allocation2 + $0x4b0] sm:$0xff]
    %v353 = vld [vmem:[#allocation2 + $0x4b8] sm:$0xff]
    %v354 = vld [vmem:[#allocation2 + $0x4c0] sm:$0xff]
    %v355 = vld [vmem:[#allocation2 + $0x4c8] sm:$0xff]
    %v356 = vld [vmem:[#allocation2 + $0x4d0] sm:$0xff]
    %v357 = vld [vmem:[#allocation2 + $0x4d8] sm:$0xff]
    %v358 = vld [vmem:[#allocation2 + $0x4e0] sm:$0xff]
    %v359 = vld [vmem:[#allocation2 + $0x4e8] sm:$0xff]
    %v360 = vld [vmem:[#allocation2 + $0x4f0] sm:$0xff]
    %v361 = vld [vmem:[#allocation2 + $0x4f8] sm:$0xff]
    %v362 = vld [vmem:[#allocation2 + $0x500] sm:$0xff]
    %v363 = vld [vmem:[#allocation2 + $0x508] sm:$0xff]
    %v364 = vld [vmem:[#allocation2 + $0x510] sm:$0xff]
    %v365 = vld [vmem:[#allocation2 + $0x518] sm:$0xff]
    %v366 = vld [vmem:[#allocation2 + $0x520] sm:$0xff]
    %v367 = vld [vmem:[#allocation2 + $0x528] sm:$0xff]
    %v368 = vld [vmem:[#allocation2 + $0x530] sm:$0xff]
    %v369 = vld [vmem:[#allocation2 + $0x538] sm:$0xff]
    %v370 = vld [vmem:[#allocation2 + $0x540] sm:$0xff]
    %v371 = vld [vmem:[#allocation2 + $0x548] sm:$0xff]
    %v372 = vld [vmem:[#allocation2 + $0x550] sm:$0xff]
    %v373 = vld [vmem:[#allocation2 + $0x558] sm:$0xff]
    %v374 = vld [vmem:[#allocation2 + $0x560] sm:$0xff]
    %v375 = vld [vmem:[#allocation2 + $0x568] sm:$0xff]
    %v376 = vld [vmem:[#allocation2 + $0x570] sm:$0xff]
    %v377 = vld [vmem:[#allocation2 + $0x578] sm:$0xff]
    %v378 = vld [vmem:[#allocation2 + $0x580] sm:$0xff]
    %v379 = vld [vmem:[#allocation2 + $0x588] sm:$0xff]
    %v380 = vld [vmem:[#allocation2 + $0x590] sm:$0xff]
    %v381 = vld [vmem:[#allocation2 + $0x598] sm:$0xff]
    %v382 = vld [vmem:[#allocation2 + $0x5a0] sm:$0xff]
    %v383 = vld [vmem:[#allocation2 + $0x5a8] sm:$0xff]
    %v384 = vld [vmem:[#allocation2 + $0x5b0] sm:$0xff]
    %v385 = vld [vmem:[#allocation2 + $0x5b8] sm:$0xff]
    %v386 = vld [vmem:[#allocation2 + $0x5c0] sm:$0xff]
    %v387 = vld [vmem:[#allocation2 + $0x5c8] sm:$0xff]
    %v388 = vld [vmem:[#allocation2 + $0x5d0] sm:$0xff]
    %v389 = vld [vmem:[#allocation2 + $0x5d8] sm:$0xff]
    %v390 = vld [vmem:[#allocation2 + $0x5e0] sm:$0xff]
    %v391 = vld [vmem:[#allocation2 + $0x5e8] sm:$0xff]
    %v392 = vld [vmem:[#allocation2 + $0x5f0] sm:$0xff]
    %v393 = vld [vmem:[#allocation2 + $0x5f8] sm:$0xff]
    %v394 = vld [vmem:[#allocation2 + $0x600] sm:$0xff]
    %v395 = vld [vmem:[#allocation2 + $0x608] sm:$0xff]
    %v396 = vld [vmem:[#allocation2 + $0x610] sm:$0xff]
    %v397 = vld [vmem:[#allocation2 + $0x618] sm:$0xff]
    %v398 = vld [vmem:[#allocation2 + $0x620] sm:$0xff]
    %v399 = vld [vmem:[#allocation2 + $0x628] sm:$0xff]
    %v400 = vld [vmem:[#allocation2 + $0x630] sm:$0xff]
    %v401 = vld [vmem:[#allocation2 + $0x638] sm:$0xff]
    %v402 = vld [vmem:[#allocation2 + $0x640] sm:$0xff]
    %v403 = vld [vmem:[#allocation2 + $0x648] sm:$0xff]
    %v404 = vld [vmem:[#allocation2 + $0x650] sm:$0xff]
    %v405 = vld [vmem:[#allocation2 + $0x658] sm:$0xff]
    %v406 = vld [vmem:[#allocation2 + $0x660] sm:$0xff]
    %v407 = vld [vmem:[#allocation2 + $0x668] sm:$0xff]
    %v408 = vld [vmem:[#allocation2 + $0x670] sm:$0xff]
    %v409 = vld [vmem:[#allocation2 + $0x678] sm:$0xff]
    %v410 = vld [vmem:[#allocation2 + $0x680] sm:$0xff]
    %v411 = vld [vmem:[#allocation2 + $0x688] sm:$0xff]
    %v412 = vld [vmem:[#allocation2 + $0x690] sm:$0xff]
    %v413 = vld [vmem:[#allocation2 + $0x698] sm:$0xff]
    %v414 = vld [vmem:[#allocation2 + $0x6a0] sm:$0xff]
    %v415 = vld [vmem:[#allocation2 + $0x6a8] sm:$0xff]
    %v416 = vld [vmem:[#allocation2 + $0x6b0] sm:$0xff]
    %v417 = vld [vmem:[#allocation2 + $0x6b8] sm:$0xff]
    %v418 = vld [vmem:[#allocation2 + $0x6c0] sm:$0xff]
    %v419 = vld [vmem:[#allocation2 + $0x6c8] sm:$0xff]
    %v420 = vld [vmem:[#allocation2 + $0x6d0] sm:$0xff]
    %v421 = vld [vmem:[#allocation2 + $0x6d8] sm:$0xff]
    %v422 = vld [vmem:[#allocation2 + $0x6e0] sm:$0xff]
    %v423 = vld [vmem:[#allocation2 + $0x6e8] sm:$0xff]
    %v424 = vld [vmem:[#allocation2 + $0x6f0] sm:$0xff]
    %v425 = vld [vmem:[#allocation2 + $0x6f8] sm:$0xff]
    %v426 = vld [vmem:[#allocation2 + $0x700] sm:$0xff]
    %v427 = vld [vmem:[#allocation2 + $0x708] sm:$0xff]
    %v428 = vld [vmem:[#allocation2 + $0x710] sm:$0xff]
    %v429 = vld [vmem:[#allocation2 + $0x718] sm:$0xff]
    %v430 = vld [vmem:[#allocation2 + $0x720] sm:$0xff]
    %v431 = vld [vmem:[#allocation2 + $0x728] sm:$0xff]
    %v432 = vld [vmem:[#allocation2 + $0x730] sm:$0xff]
    %v433 = vld [vmem:[#allocation2 + $0x738] sm:$0xff]
    %v434 = vld [vmem:[#allocation2 + $0x740] sm:$0xff]
    %v435 = vld [vmem:[#allocation2 + $0x748] sm:$0xff]
    %v436 = vld [vmem:[#allocation2 + $0x750] sm:$0xff]
    %v437 = vld [vmem:[#allocation2 + $0x758] sm:$0xff]
    %v438 = vld [vmem:[#allocation2 + $0x760] sm:$0xff]
    %v439 = vld [vmem:[#allocation2 + $0x768] sm:$0xff]
    %v440 = vld [vmem:[#allocation2 + $0x770] sm:$0xff]
    %v441 = vld [vmem:[#allocation2 + $0x778] sm:$0xff]
    %v442 = vld [vmem:[#allocation2 + $0x780] sm:$0xff]
    %v443 = vld [vmem:[#allocation2 + $0x788] sm:$0xff]
    %v444 = vld [vmem:[#allocation2 + $0x790] sm:$0xff]
    %v445 = vld [vmem:[#allocation2 + $0x798] sm:$0xff]
    %v446 = vld [vmem:[#allocation2 + $0x7a0] sm:$0xff]
    %v447 = vld [vmem:[#allocation2 + $0x7a8] sm:$0xff]
    %v448 = vld [vmem:[#allocation2 + $0x7b0] sm:$0xff]
    %v449 = vld [vmem:[#allocation2 + $0x7b8] sm:$0xff]
    %v450 = vld [vmem:[#allocation2 + $0x7c0] sm:$0xff]
    %v451 = vld [vmem:[#allocation2 + $0x7c8] sm:$0xff]
    %v452 = vld [vmem:[#allocation2 + $0x7d0] sm:$0xff]
    %v453 = vld [vmem:[#allocation2 + $0x7d8] sm:$0xff]
    %v454 = vld [vmem:[#allocation2 + $0x7e0] sm:$0xff]
    %v455 = vld [vmem:[#allocation2 + $0x7e8] sm:$0xff]
    %v456 = vld [vmem:[#allocation2 + $0x7f0] sm:$0xff]
    %v457 = vld [vmem:[#allocation2 + $0x7f8] sm:$0xff]
    %v458 = vld [vmem:[#allocation2 + $0x800] sm:$0xff]
    %v459 = vld [vmem:[#allocation2 + $0x808] sm:$0xff]
    %v460 = vld [vmem:[#allocation2 + $0x810] sm:$0xff]
    %v461 = vld [vmem:[#allocation2 + $0x818] sm:$0xff]
    %v462 = vld [vmem:[#allocation2 + $0x820] sm:$0xff]
    %v463 = vld [vmem:[#allocation2 + $0x828] sm:$0xff]
    %v464 = vld [vmem:[#allocation2 + $0x830] sm:$0xff]
    %v465 = vld [vmem:[#allocation2 + $0x838] sm:$0xff]
    %v466 = vld [vmem:[#allocation2 + $0x840] sm:$0xff]
    %v467 = vld [vmem:[#allocation2 + $0x848] sm:$0xff]
    %v468 = vld [vmem:[#allocation2 + $0x850] sm:$0xff]
    %v469 = vld [vmem:[#allocation2 + $0x858] sm:$0xff]
    %v470 = vld [vmem:[#allocation2 + $0x860] sm:$0xff]
    %v471 = vld [vmem:[#allocation2 + $0x868] sm:$0xff]
    %v472 = vld [vmem:[#allocation2 + $0x870] sm:$0xff]
    %v473 = vld [vmem:[#allocation2 + $0x878] sm:$0xff]
    %v474 = vld [vmem:[#allocation2 + $0x880] sm:$0xff]
    %v475 = vld [vmem:[#allocation2 + $0x888] sm:$0xff]
    %v476 = vld [vmem:[#allocation2 + $0x890] sm:$0xff]
    %v477 = vld [vmem:[#allocation2 + $0x898] sm:$0xff]
    %v478 = vld [vmem:[#allocation2 + $0x8a0] sm:$0xff]
    %v479 = vld [vmem:[#allocation2 + $0x8a8] sm:$0xff]
    %v480 = vld [vmem:[#allocation2 + $0x8b0] sm:$0xff]
    %v481 = vld [vmem:[#allocation2 + $0x8b8] sm:$0xff]
    %v482 = vld [vmem:[#allocation2 + $0x8c0] sm:$0xff]
    %v483 = vld [vmem:[#allocation2 + $0x8c8] sm:$0xff]
    %v484 = vld [vmem:[#allocation2 + $0x8d0] sm:$0xff]
    %v485 = vld [vmem:[#allocation2 + $0x8d8] sm:$0xff]
    %v486 = vld [vmem:[#allocation2 + $0x8e0] sm:$0xff]
    %v487 = vld [vmem:[#allocation2 + $0x8e8] sm:$0xff]
    %v488 = vld [vmem:[#allocation2 + $0x8f0] sm:$0xff]
    %v489 = vld [vmem:[#allocation2 + $0x8f8] sm:$0xff]
    %v490 = vld [vmem:[#allocation2 + $0x900] sm:$0xff]
    %v491 = vld [vmem:[#allocation2 + $0x908] sm:$0xff]
    %v492 = vld [vmem:[#allocation2 + $0x910] sm:$0xff]
    %v493 = vld [vmem:[#allocation2 + $0x918] sm:$0xff]
    %v494 = vld [vmem:[#allocation2 + $0x920] sm:$0xff]
    %v495 = vld [vmem:[#allocation2 + $0x928] sm:$0xff]
    %v496 = vld [vmem:[#allocation2 + $0x930] sm:$0xff]
    %v497 = vld [vmem:[#allocation2 + $0x938] sm:$0xff]
    %v498 = vld [vmem:[#allocation2 + $0x940] sm:$0xff]
    %v499 = vld [vmem:[#allocation2 + $0x948] sm:$0xff]
    %v500 = vld [vmem:[#allocation2 + $0x950] sm:$0xff]
    %v501 = vld [vmem:[#allocation2 + $0x958] sm:$0xff]
    %v502 = vld [vmem:[#allocation2 + $0x960] sm:$0xff]
    %v503 = vld [vmem:[#allocation2 + $0x968] sm:$0xff]
    %v504 = vld [vmem:[#allocation2 + $0x970] sm:$0xff]
    %v505 = vld [vmem:[#allocation2 + $0x978] sm:$0xff]
    %v506 = vld [vmem:[#allocation2 + $0x980] sm:$0xff]
    %v507 = vld [vmem:[#allocation2 + $0x988] sm:$0xff]
    %v508 = vld [vmem:[#allocation2 + $0x990] sm:$0xff]
    %v509 = vld [vmem:[#allocation2 + $0x998] sm:$0xff]
    %v510 = vld [vmem:[#allocation2 + $0x9a0] sm:$0xff]
    %v511 = vld [vmem:[#allocation2 + $0x9a8] sm:$0xff]
    %v512 = vld [vmem:[#allocation2 + $0x9b0] sm:$0xff]
    %v513 = vld [vmem:[#allocation2 + $0x9b8] sm:$0xff]
    %v514 = vld [vmem:[#allocation2 + $0x9c0] sm:$0xff]
    %v515 = vld [vmem:[#allocation2 + $0x9c8] sm:$0xff]
    %v516 = vld [vmem:[#allocation2 + $0x9d0] sm:$0xff]
    %v517 = vld [vmem:[#allocation2 + $0x9d8] sm:$0xff]
    %v518 = vld [vmem:[#allocation2 + $0x9e0] sm:$0xff]
    %v519 = vld [vmem:[#allocation2 + $0x9e8] sm:$0xff]
    %v520 = vld [vmem:[#allocation2 + $0x9f0] sm:$0xff]
    %v521 = vld [vmem:[#allocation2 + $0x9f8] sm:$0xff]
    %v522 = vld [vmem:[#allocation2 + $0xa00] sm:$0xff]
    %v523 = vld [vmem:[#allocation2 + $0xa08] sm:$0xff]
    %v524 = vld [vmem:[#allocation2 + $0xa10] sm:$0xff]
    %v525 = vld [vmem:[#allocation2 + $0xa18] sm:$0xff]
    %v526 = vld [vmem:[#allocation2 + $0xa20] sm:$0xff]
    %v527 = vld [vmem:[#allocation2 + $0xa28] sm:$0xff]
    %v528 = vld [vmem:[#allocation2 + $0xa30] sm:$0xff]
    %v529 = vld [vmem:[#allocation2 + $0xa38] sm:$0xff]
    %v530 = vld [vmem:[#allocation2 + $0xa40] sm:$0xff]
    %v531 = vld [vmem:[#allocation2 + $0xa48] sm:$0xff]
    %v532 = vld [vmem:[#allocation2 + $0xa50] sm:$0xff]
    %v533 = vld [vmem:[#allocation2 + $0xa58] sm:$0xff]
    %v534 = vld [vmem:[#allocation2 + $0xa60] sm:$0xff]
    %v535 = vld [vmem:[#allocation2 + $0xa68] sm:$0xff]
    %v536 = vld [vmem:[#allocation2 + $0xa70] sm:$0xff]
    %v537 = vld [vmem:[#allocation2 + $0xa78] sm:$0xff]
    %v538 = vld [vmem:[#allocation2 + $0xa80] sm:$0xff]
    %v539 = vld [vmem:[#allocation2 + $0xa88] sm:$0xff]
    %v540 = vld [vmem:[#allocation2 + $0xa90] sm:$0xff]
    %v541 = vld [vmem:[#allocation2 + $0xa98] sm:$0xff]
    %v542 = vld [vmem:[#allocation2 + $0xaa0] sm:$0xff]
    %v543 = vld [vmem:[#allocation2 + $0xaa8] sm:$0xff]
    %v544 = vld [vmem:[#allocation2 + $0xab0] sm:$0xff]
    %v545 = vld [vmem:[#allocation2 + $0xab8] sm:$0xff]
    %v546 = vld [vmem:[#allocation2 + $0xac0] sm:$0xff]
    %v547 = vld [vmem:[#allocation2 + $0xac8] sm:$0xff]
    %v548 = vld [vmem:[#allocation2 + $0xad0] sm:$0xff]
    %v549 = vld [vmem:[#allocation2 + $0xad8] sm:$0xff]
    %v550 = vld [vmem:[#allocation2 + $0xae0] sm:$0xff]
    %v551 = vld [vmem:[#allocation2 + $0xae8] sm:$0xff]
    %v552 = vld [vmem:[#allocation2 + $0xaf0] sm:$0xff]
    %v553 = vld [vmem:[#allocation2 + $0xaf8] sm:$0xff]
    %v554 = vld [vmem:[#allocation2 + $0xb00] sm:$0xff]
    %v555 = vld [vmem:[#allocation2 + $0xb08] sm:$0xff]
    %v556 = vld [vmem:[#allocation2 + $0xb10] sm:$0xff]
    %v557 = vld [vmem:[#allocation2 + $0xb18] sm:$0xff]
    %v558 = vld [vmem:[#allocation2 + $0xb20] sm:$0xff]
    %v559 = vld [vmem:[#allocation2 + $0xb28] sm:$0xff]
    %v560 = vld [vmem:[#allocation2 + $0xb30] sm:$0xff]
    %v561 = vld [vmem:[#allocation2 + $0xb38] sm:$0xff]
    %v562 = vld [vmem:[#allocation2 + $0xb40] sm:$0xff]
    %v563 = vld [vmem:[#allocation2 + $0xb48] sm:$0xff]
    %v564 = vld [vmem:[#allocation2 + $0xb50] sm:$0xff]
    %v565 = vld [vmem:[#allocation2 + $0xb58] sm:$0xff]
    %v566 = vld [vmem:[#allocation2 + $0xb60] sm:$0xff]
    %v567 = vld [vmem:[#allocation2 + $0xb68] sm:$0xff]
    %v568 = vld [vmem:[#allocation2 + $0xb70] sm:$0xff]
    %v569 = vld [vmem:[#allocation2 + $0xb78] sm:$0xff]
    %v570 = vld [vmem:[#allocation2 + $0xb80] sm:$0xff]
    %v571 = vld [vmem:[#allocation2 + $0xb88] sm:$0xff]
    %v572 = vld [vmem:[#allocation2 + $0xb90] sm:$0xff]
    %v573 = vld [vmem:[#allocation2 + $0xb98] sm:$0xff]
    %v574 = vld [vmem:[#allocation2 + $0xba0] sm:$0xff]
    %v575 = vld [vmem:[#allocation2 + $0xba8] sm:$0xff]
    %v576 = vld [vmem:[#allocation2 + $0xbb0] sm:$0xff]
    %v577 = vld [vmem:[#allocation2 + $0xbb8] sm:$0xff]
    %v578 = vld [vmem:[#allocation2 + $0xbc0] sm:$0xff]
    %v579 = vld [vmem:[#allocation2 + $0xbc8] sm:$0xff]
    %v580 = vld [vmem:[#allocation2 + $0xbd0] sm:$0xff]
    %v581 = vld [vmem:[#allocation2 + $0xbd8] sm:$0xff]
    %v582 = vld [vmem:[#allocation2 + $0xbe0] sm:$0xff]
    %v583 = vld [vmem:[#allocation2 + $0xbe8] sm:$0xff]
    %v584 = vld [vmem:[#allocation2 + $0xbf0] sm:$0xff]
    %v585 = vld [vmem:[#allocation2 + $0xbf8] sm:$0xff]
    %v586 = vld [vmem:[#allocation2 + $0xc00] sm:$0xff]
    %v587 = vld [vmem:[#allocation2 + $0xc08] sm:$0xff]
    %v588 = vld [vmem:[#allocation2 + $0xc10] sm:$0xff]
    %v589 = vld [vmem:[#allocation2 + $0xc18] sm:$0xff]
    %v590 = vld [vmem:[#allocation2 + $0xc20] sm:$0xff]
    %v591 = vld [vmem:[#allocation2 + $0xc28] sm:$0xff]
    %v592 = vld [vmem:[#allocation2 + $0xc30] sm:$0xff]
    %v593 = vld [vmem:[#allocation2 + $0xc38] sm:$0xff]
    %v594 = vld [vmem:[#allocation2 + $0xc40] sm:$0xff]
    %v595 = vld [vmem:[#allocation2 + $0xc48] sm:$0xff]
    %v596 = vld [vmem:[#allocation2 + $0xc50] sm:$0xff]
    %v597 = vld [vmem:[#allocation2 + $0xc58] sm:$0xff]
    %v598 = vld [vmem:[#allocation2 + $0xc60] sm:$0xff]
    %v599 = vld [vmem:[#allocation2 + $0xc68] sm:$0xff]
    %v600 = vld [vmem:[#allocation2 + $0xc70] sm:$0xff]
    %v601 = vld [vmem:[#allocation2 + $0xc78] sm:$0xff]
    %v602 = vld [vmem:[#allocation2 + $0xc80] sm:$0xff]
    %v603 = vld [vmem:[#allocation2 + $0xc88] sm:$0xff]
    %v604 = vld [vmem:[#allocation2 + $0xc90] sm:$0xff]
    %v605 = vld [vmem:[#allocation2 + $0xc98] sm:$0xff]
    %v606 = vld [vmem:[#allocation2 + $0xca0] sm:$0xff]
    %v607 = vld [vmem:[#allocation2 + $0xca8] sm:$0xff]
    %v608 = vld [vmem:[#allocation2 + $0xcb0] sm:$0xff]
    %v609 = vld [vmem:[#allocation2 + $0xcb8] sm:$0xff]
    %v610 = vld [vmem:[#allocation2 + $0xcc0] sm:$0xff]
    %v611 = vld [vmem:[#allocation2 + $0xcc8] sm:$0xff]
    %v612 = vld [vmem:[#allocation2 + $0xcd0] sm:$0xff]
    %v613 = vld [vmem:[#allocation2 + $0xcd8] sm:$0xff]
    %v614 = vld [vmem:[#allocation2 + $0xce0] sm:$0xff]
    %v615 = vld [vmem:[#allocation2 + $0xce8] sm:$0xff]
    %v616 = vld [vmem:[#allocation2 + $0xcf0] sm:$0xff]
    %v617 = vld [vmem:[#allocation2 + $0xcf8] sm:$0xff]
    %v618 = vld [vmem:[#allocation2 + $0xd00] sm:$0xff]
    %v619 = vld [vmem:[#allocation2 + $0xd08] sm:$0xff]
    %v620 = vld [vmem:[#allocation2 + $0xd10] sm:$0xff]
    %v621 = vld [vmem:[#allocation2 + $0xd18] sm:$0xff]
    %v622 = vld [vmem:[#allocation2 + $0xd20] sm:$0xff]
    %v623 = vld [vmem:[#allocation2 + $0xd28] sm:$0xff]
    %v624 = vld [vmem:[#allocation2 + $0xd30] sm:$0xff]
    %v625 = vld [vmem:[#allocation2 + $0xd38] sm:$0xff]
    %v626 = vld [vmem:[#allocation2 + $0xd40] sm:$0xff]
    %v627 = vld [vmem:[#allocation2 + $0xd48] sm:$0xff]
    %v628 = vld [vmem:[#allocation2 + $0xd50] sm:$0xff]
    %v629 = vld [vmem:[#allocation2 + $0xd58] sm:$0xff]
    %v630 = vld [vmem:[#allocation2 + $0xd60] sm:$0xff]
    %v631 = vld [vmem:[#allocation2 + $0xd68] sm:$0xff]
    %v632 = vld [vmem:[#allocation2 + $0xd70] sm:$0xff]
    %v633 = vld [vmem:[#allocation2 + $0xd78] sm:$0xff]
    %v634 = vld [vmem:[#allocation2 + $0xd80] sm:$0xff]
    %v635 = vld [vmem:[#allocation2 + $0xd88] sm:$0xff]
    %v636 = vld [vmem:[#allocation2 + $0xd90] sm:$0xff]
    %v637 = vld [vmem:[#allocation2 + $0xd98] sm:$0xff]
    %v638 = vld [vmem:[#allocation2 + $0xda0] sm:$0xff]
    %v639 = vld [vmem:[#allocation2 + $0xda8] sm:$0xff]
    %v640 = vld [vmem:[#allocation2 + $0xdb0] sm:$0xff]
    %v641 = vld [vmem:[#allocation2 + $0xdb8] sm:$0xff]
    %v642 = vld [vmem:[#allocation2 + $0xdc0] sm:$0xff]
    %v643 = vld [vmem:[#allocation2 + $0xdc8] sm:$0xff]
    %v644 = vld [vmem:[#allocation2 + $0xdd0] sm:$0xff]
    %v645 = vld [vmem:[#allocation2 + $0xdd8] sm:$0xff]
    %v646 = vld [vmem:[#allocation2 + $0xde0] sm:$0xff]
    %v647 = vld [vmem:[#allocation2 + $0xde8] sm:$0xff]
    %v648 = vld [vmem:[#allocation2 + $0xdf0] sm:$0xff]
    %v649 = vld [vmem:[#allocation2 + $0xdf8] sm:$0xff]
    %v650 = vld [vmem:[#allocation2 + $0xe00] sm:$0xff]
    %v651 = vld [vmem:[#allocation2 + $0xe08] sm:$0xff]
    %v652 = vld [vmem:[#allocation2 + $0xe10] sm:$0xff]
    %v653 = vld [vmem:[#allocation2 + $0xe18] sm:$0xff]
    %v654 = vld [vmem:[#allocation2 + $0xe20] sm:$0xff]
    %v655 = vld [vmem:[#allocation2 + $0xe28] sm:$0xff]
    %v656 = vld [vmem:[#allocation2 + $0xe30] sm:$0xff]
    %v657 = vld [vmem:[#allocation2 + $0xe38] sm:$0xff]
    %v658 = vld [vmem:[#allocation2 + $0xe40] sm:$0xff]
    %v659 = vld [vmem:[#allocation2 + $0xe48] sm:$0xff]
    %v660 = vld [vmem:[#allocation2 + $0xe50] sm:$0xff]
    %v661 = vld [vmem:[#allocation2 + $0xe58] sm:$0xff]
    %v662 = vld [vmem:[#allocation2 + $0xe60] sm:$0xff]
    %v663 = vld [vmem:[#allocation2 + $0xe68] sm:$0xff]
    %v664 = vld [vmem:[#allocation2 + $0xe70] sm:$0xff]
    %v665 = vld [vmem:[#allocation2 + $0xe78] sm:$0xff]
    %v666 = vld [vmem:[#allocation2 + $0xe80] sm:$0xff]
    %v667 = vld [vmem:[#allocation2 + $0xe88] sm:$0xff]
    %v668 = vld [vmem:[#allocation2 + $0xe90] sm:$0xff]
    %v669 = vld [vmem:[#allocation2 + $0xe98] sm:$0xff]
    %v670 = vld [vmem:[#allocation2 + $0xea0] sm:$0xff]
    %v671 = vld [vmem:[#allocation2 + $0xea8] sm:$0xff]
    %v672 = vld [vmem:[#allocation2 + $0xeb0] sm:$0xff]
    %v673 = vld [vmem:[#allocation2 + $0xeb8] sm:$0xff]
    %v674 = vld [vmem:[#allocation2 + $0xec0] sm:$0xff]
    %v675 = vld [vmem:[#allocation2 + $0xec8] sm:$0xff]
    %v676 = vld [vmem:[#allocation2 + $0xed0] sm:$0xff]
    %v677 = vld [vmem:[#allocation2 + $0xed8] sm:$0xff]
    %v678 = vld [vmem:[#allocation2 + $0xee0] sm:$0xff]
    %v679 = vld [vmem:[#allocation2 + $0xee8] sm:$0xff]
    %v680 = vld [vmem:[#allocation2 + $0xef0] sm:$0xff]
    %v681 = vld [vmem:[#allocation2 + $0xef8] sm:$0xff]
    %v682 = vld [vmem:[#allocation2 + $0xf00] sm:$0xff]
    %v683 = vld [vmem:[#allocation2 + $0xf08] sm:$0xff]
    %v684 = vld [vmem:[#allocation2 + $0xf10] sm:$0xff]
    %v685 = vld [vmem:[#allocation2 + $0xf18] sm:$0xff]
    %v686 = vld [vmem:[#allocation2 + $0xf20] sm:$0xff]
    %v687 = vld [vmem:[#allocation2 + $0xf28] sm:$0xff]
    %v688 = vld [vmem:[#allocation2 + $0xf30] sm:$0xff]
    %v689 = vld [vmem:[#allocation2 + $0xf38] sm:$0xff]
    %v690 = vld [vmem:[#allocation2 + $0xf40] sm:$0xff]
    %v691 = vld [vmem:[#allocation2 + $0xf48] sm:$0xff]
    %v692 = vld [vmem:[#allocation2 + $0xf50] sm:$0xff]
    %v693 = vld [vmem:[#allocation2 + $0xf58] sm:$0xff]
    %v694 = vld [vmem:[#allocation2 + $0xf60] sm:$0xff]
    %v695 = vld [vmem:[#allocation2 + $0xf68] sm:$0xff]
    %v696 = vld [vmem:[#allocation2 + $0xf70] sm:$0xff]
    %v697 = vld [vmem:[#allocation2 + $0xf78] sm:$0xff]
    %v698 = vld [vmem:[#allocation2 + $0xf80] sm:$0xff]
    %v699 = vld [vmem:[#allocation2 + $0xf88] sm:$0xff]
    %v700 = vld [vmem:[#allocation2 + $0xf90] sm:$0xff]
    %v701 = vld [vmem:[#allocation2 + $0xf98] sm:$0xff]
    %v702 = vld [vmem:[#allocation2 + $0xfa0] sm:$0xff]
    %v703 = vld [vmem:[#allocation2 + $0xfa8] sm:$0xff]
    %v704 = vld [vmem:[#allocation2 + $0xfb0] sm:$0xff]
    %v705 = vld [vmem:[#allocation2 + $0xfb8] sm:$0xff]
    %v706 = vld [vmem:[#allocation2 + $0xfc0] sm:$0xff]
    %v707 = vld [vmem:[#allocation2 + $0xfc8] sm:$0xff]
    %v708 = vld [vmem:[#allocation2 + $0xfd0] sm:$0xff]
    %v709 = vld [vmem:[#allocation2 + $0xfd8] sm:$0xff]
    %v710 = vld [vmem:[#allocation2 + $0xfe0] sm:$0xff]
    %v711 = vld [vmem:[#allocation2 + $0xfe8] sm:$0xff]
    %v712 = vld [vmem:[#allocation2 + $0xff0] sm:$0xff]
    %v713 = vld [vmem:[#allocation2 + $0xff8] sm:$0xff]
    %v714 = vld [vmem:[#allocation2 + $0x1000] sm:$0xff]
    %v715 = vld [vmem:[#allocation2 + $0x1008] sm:$0xff]
    %v716 = vld [vmem:[#allocation2 + $0x1010] sm:$0xff]
    %v717 = vld [vmem:[#allocation2 + $0x1018] sm:$0xff]
    %v718 = vld [vmem:[#allocation2 + $0x1020] sm:$0xff]
    %v719 = vld [vmem:[#allocation2 + $0x1028] sm:$0xff]
    %v720 = vld [vmem:[#allocation2 + $0x1030] sm:$0xff]
    %v721 = vld [vmem:[#allocation2 + $0x1038] sm:$0xff]
    %v722 = vld [vmem:[#allocation2 + $0x1040] sm:$0xff]
    %v723 = vld [vmem:[#allocation2 + $0x1048] sm:$0xff]
    %v724 = vld [vmem:[#allocation2 + $0x1050] sm:$0xff]
    %v725 = vld [vmem:[#allocation2 + $0x1058] sm:$0xff]
    %v726 = vld [vmem:[#allocation2 + $0x1060] sm:$0xff]
    %v727 = vld [vmem:[#allocation2 + $0x1068] sm:$0xff]
    %v728 = vld [vmem:[#allocation2 + $0x1070] sm:$0xff]
    %v729 = vld [vmem:[#allocation2 + $0x1078] sm:$0xff]
    %v730 = vld [vmem:[#allocation2 + $0x1080] sm:$0xff]
    %v731 = vld [vmem:[#allocation2 + $0x1088] sm:$0xff]
    %v732 = vld [vmem:[#allocation2 + $0x1090] sm:$0xff]
    %v733 = vld [vmem:[#allocation2 + $0x1098] sm:$0xff]
    %v734 = vld [vmem:[#allocation2 + $0x10a0] sm:$0xff]
    %v735 = vld [vmem:[#allocation2 + $0x10a8] sm:$0xff]
    %v736 = vld [vmem:[#allocation2 + $0x10b0] sm:$0xff]
    %v737 = vld [vmem:[#allocation2 + $0x10b8] sm:$0xff]
    %v738 = vld [vmem:[#allocation2 + $0x10c0] sm:$0xff]
    %v739 = vld [vmem:[#allocation2 + $0x10c8] sm:$0xff]
    %v740 = vld [vmem:[#allocation2 + $0x10d0] sm:$0xff]
    %v741 = vld [vmem:[#allocation2 + $0x10d8] sm:$0xff]
    %v742 = vld [vmem:[#allocation2 + $0x10e0] sm:$0xff]
    %v743 = vld [vmem:[#allocation2 + $0x10e8] sm:$0xff]
    %v744 = vld [vmem:[#allocation2 + $0x10f0] sm:$0xff]
    %v745 = vld [vmem:[#allocation2 + $0x10f8] sm:$0xff]
    %v746 = vld [vmem:[#allocation2 + $0x1100] sm:$0xff]
    %v747 = vld [vmem:[#allocation2 + $0x1108] sm:$0xff]
    %v748 = vld [vmem:[#allocation2 + $0x1110] sm:$0xff]
    %v749 = vld [vmem:[#allocation2 + $0x1118] sm:$0xff]
    %v750 = vld [vmem:[#allocation2 + $0x1120] sm:$0xff]
    %v751 = vld [vmem:[#allocation2 + $0x1128] sm:$0xff]
    %v752 = vld [vmem:[#allocation2 + $0x1130] sm:$0xff]
    %v753 = vld [vmem:[#allocation2 + $0x1138] sm:$0xff]
    %v754 = vld [vmem:[#allocation2 + $0x1140] sm:$0xff]
    %v755 = vld [vmem:[#allocation2 + $0x1148] sm:$0xff]
    %v756 = vld [vmem:[#allocation2 + $0x1150] sm:$0xff]
    %v757 = vld [vmem:[#allocation2 + $0x1158] sm:$0xff]
    %v758 = vld [vmem:[#allocation2 + $0x1160] sm:$0xff]
    %v759 = vld [vmem:[#allocation2 + $0x1168] sm:$0xff]
    %v760 = vld [vmem:[#allocation2 + $0x1170] sm:$0xff]
    %v761 = vld [vmem:[#allocation2 + $0x1178] sm:$0xff]
    %v762 = vld [vmem:[#allocation2 + $0x1180] sm:$0xff]
    %v763 = vld [vmem:[#allocation2 + $0x1188] sm:$0xff]
    %v764 = vld [vmem:[#allocation2 + $0x1190] sm:$0xff]
    %v765 = vld [vmem:[#allocation2 + $0x1198] sm:$0xff]
    %v766 = vld [vmem:[#allocation2 + $0x11a0] sm:$0xff]
    %v767 = vld [vmem:[#allocation2 + $0x11a8] sm:$0xff]
    %v768 = vld [vmem:[#allocation2 + $0x11b0] sm:$0xff]
    %v769 = vld [vmem:[#allocation2 + $0x11b8] sm:$0xff]
    %v770 = vld [vmem:[#allocation2 + $0x11c0] sm:$0xff]
    %v771 = vld [vmem:[#allocation2 + $0x11c8] sm:$0xff]
    %v772 = vld [vmem:[#allocation2 + $0x11d0] sm:$0xff]
    %v773 = vld [vmem:[#allocation2 + $0x11d8] sm:$0xff]
    %v774 = vld [vmem:[#allocation2 + $0x11e0] sm:$0xff]
    %v775 = vld [vmem:[#allocation2 + $0x11e8] sm:$0xff]
    %v776 = vld [vmem:[#allocation2 + $0x11f0] sm:$0xff]
    %v777 = vld [vmem:[#allocation2 + $0x11f8] sm:$0xff]
    %v778 = vld [vmem:[#allocation2 + $0x1200] sm:$0xff]
    %v779 = vld [vmem:[#allocation2 + $0x1208] sm:$0xff]
    %v780 = vld [vmem:[#allocation2 + $0x1210] sm:$0xff]
    %v781 = vld [vmem:[#allocation2 + $0x1218] sm:$0xff]
    %v782 = vld [vmem:[#allocation2 + $0x1220] sm:$0xff]
    %v783 = vld [vmem:[#allocation2 + $0x1228] sm:$0xff]
    %v784 = vld [vmem:[#allocation2 + $0x1230] sm:$0xff]
    %v785 = vld [vmem:[#allocation2 + $0x1238] sm:$0xff]
    %v786 = vld [vmem:[#allocation2 + $0x1240] sm:$0xff]
    %v787 = vld [vmem:[#allocation2 + $0x1248] sm:$0xff]
    %v788 = vld [vmem:[#allocation2 + $0x1250] sm:$0xff]
    %v789 = vld [vmem:[#allocation2 + $0x1258] sm:$0xff]
    %v790 = vld [vmem:[#allocation2 + $0x1260] sm:$0xff]
    %v791 = vld [vmem:[#allocation2 + $0x1268] sm:$0xff]
    %v792 = vld [vmem:[#allocation2 + $0x1270] sm:$0xff]
    %v793 = vld [vmem:[#allocation2 + $0x1278] sm:$0xff]
    %v794 = vld [vmem:[#allocation2 + $0x1280] sm:$0xff]
    %v795 = vld [vmem:[#allocation2 + $0x1288] sm:$0xff]
    %v796 = vld [vmem:[#allocation2 + $0x1290] sm:$0xff]
    %v797 = vld [vmem:[#allocation2 + $0x1298] sm:$0xff]
    %v798 = vld [vmem:[#allocation2 + $0x12a0] sm:$0xff]
    %v799 = vld [vmem:[#allocation2 + $0x12a8] sm:$0xff]
    %v800 = vld [vmem:[#allocation2 + $0x12b0] sm:$0xff]
    %v801 = vld [vmem:[#allocation2 + $0x12b8] sm:$0xff]
    %v802 = vld [vmem:[#allocation2 + $0x12c0] sm:$0xff]
    %v803 = vld [vmem:[#allocation2 + $0x12c8] sm:$0xff]
    %v804 = vld [vmem:[#allocation2 + $0x12d0] sm:$0xff]
    %v805 = vld [vmem:[#allocation2 + $0x12d8] sm:$0xff]
    %v806 = vld [vmem:[#allocation2 + $0x12e0] sm:$0xff]
    %v807 = vld [vmem:[#allocation2 + $0x12e8] sm:$0xff]
    %v808 = vld [vmem:[#allocation2 + $0x12f0] sm:$0xff]
    %v809 = vld [vmem:[#allocation2 + $0x12f8] sm:$0xff]
    %v810 = vld [vmem:[#allocation2 + $0x1300] sm:$0xff]
    %v811 = vld [vmem:[#allocation2 + $0x1308] sm:$0xff]
    %v812 = vld [vmem:[#allocation2 + $0x1310] sm:$0xff]
    %v813 = vld [vmem:[#allocation2 + $0x1318] sm:$0xff]
    %v814 = vld [vmem:[#allocation2 + $0x1320] sm:$0xff]
    %v815 = vld [vmem:[#allocation2 + $0x1328] sm:$0xff]
    %v816 = vld [vmem:[#allocation2 + $0x1330] sm:$0xff]
    %v817 = vld [vmem:[#allocation2 + $0x1338] sm:$0xff]
    %v818 = vld [vmem:[#allocation2 + $0x1340] sm:$0xff]
    %v819 = vld [vmem:[#allocation2 + $0x1348] sm:$0xff]
    %v820 = vld [vmem:[#allocation2 + $0x1350] sm:$0xff]
    %v821 = vld [vmem:[#allocation2 + $0x1358] sm:$0xff]
    %v822 = vld [vmem:[#allocation2 + $0x1360] sm:$0xff]
    %v823 = vld [vmem:[#allocation2 + $0x1368] sm:$0xff]
    %v824 = vld [vmem:[#allocation2 + $0x1370] sm:$0xff]
    %v825 = vld [vmem:[#allocation2 + $0x1378] sm:$0xff]
    %v826 = vld [vmem:[#allocation2 + $0x1380] sm:$0xff]
    %v827 = vld [vmem:[#allocation2 + $0x1388] sm:$0xff]
    %v828 = vld [vmem:[#allocation2 + $0x1390] sm:$0xff]
    %v829 = vld [vmem:[#allocation2 + $0x1398] sm:$0xff]
    %v830 = vld [vmem:[#allocation2 + $0x13a0] sm:$0xff]
    %v831 = vld [vmem:[#allocation2 + $0x13a8] sm:$0xff]
    %v832 = vld [vmem:[#allocation2 + $0x13b0] sm:$0xff]
    %v833 = vld [vmem:[#allocation2 + $0x13b8] sm:$0xff]
    %v834 = vld [vmem:[#allocation2 + $0x13c0] sm:$0xff]
    %v835 = vld [vmem:[#allocation2 + $0x13c8] sm:$0xff]
    %v836 = vld [vmem:[#allocation2 + $0x13d0] sm:$0xff]
    %v837 = vld [vmem:[#allocation2 + $0x13d8] sm:$0xff]
    %v838 = vld [vmem:[#allocation2 + $0x13e0] sm:$0xff]
    %v839 = vld [vmem:[#allocation2 + $0x13e8] sm:$0xff]
    %v840 = vld [vmem:[#allocation2 + $0x13f0] sm:$0xff]
    %v841 = vld [vmem:[#allocation2 + $0x13f8] sm:$0xff]
    %v842 = vld [vmem:[#allocation2 + $0x1400] sm:$0xff]
    %v843 = vld [vmem:[#allocation2 + $0x1408] sm:$0xff]
    %v844 = vld [vmem:[#allocation2 + $0x1410] sm:$0xff]
    %v845 = vld [vmem:[#allocation2 + $0x1418] sm:$0xff]
    %v846 = vld [vmem:[#allocation2 + $0x1420] sm:$0xff]
    %v847 = vld [vmem:[#allocation2 + $0x1428] sm:$0xff]
    %v848 = vld [vmem:[#allocation2 + $0x1430] sm:$0xff]
    %v849 = vld [vmem:[#allocation2 + $0x1438] sm:$0xff]
    %v850 = vld [vmem:[#allocation2 + $0x1440] sm:$0xff]
    %v851 = vld [vmem:[#allocation2 + $0x1448] sm:$0xff]
    %v852 = vld [vmem:[#allocation2 + $0x1450] sm:$0xff]
    %v853 = vld [vmem:[#allocation2 + $0x1458] sm:$0xff]
    %v854 = vld [vmem:[#allocation2 + $0x1460] sm:$0xff]
    %v855 = vld [vmem:[#allocation2 + $0x1468] sm:$0xff]
    %v856 = vld [vmem:[#allocation2 + $0x1470] sm:$0xff]
    %v857 = vld [vmem:[#allocation2 + $0x1478] sm:$0xff]
    %v858 = vld [vmem:[#allocation2 + $0x1480] sm:$0xff]
    %v859 = vld [vmem:[#allocation2 + $0x1488] sm:$0xff]
    %v860 = vld [vmem:[#allocation2 + $0x1490] sm:$0xff]
    %v861 = vld [vmem:[#allocation2 + $0x1498] sm:$0xff]
    %v862 = vld [vmem:[#allocation2 + $0x14a0] sm:$0xff]
    %v863 = vld [vmem:[#allocation2 + $0x14a8] sm:$0xff]
    %v864 = vld [vmem:[#allocation2 + $0x14b0] sm:$0xff]
    %v865 = vld [vmem:[#allocation2 + $0x14b8] sm:$0xff]
    %v866 = vld [vmem:[#allocation2 + $0x14c0] sm:$0xff]
    %v867 = vld [vmem:[#allocation2 + $0x14c8] sm:$0xff]
    %v868 = vld [vmem:[#allocation2 + $0x14d0] sm:$0xff]
    %v869 = vld [vmem:[#allocation2 + $0x14d8] sm:$0xff]
    %v870 = vld [vmem:[#allocation2 + $0x14e0] sm:$0xff]
    %v871 = vld [vmem:[#allocation2 + $0x14e8] sm:$0xff]
    %v872 = vld [vmem:[#allocation2 + $0x14f0] sm:$0xff]
    %v873 = vld [vmem:[#allocation2 + $0x14f8] sm:$0xff]
    %v874 = vld [vmem:[#allocation2 + $0x1500] sm:$0xff]
    %v875 = vld [vmem:[#allocation2 + $0x1508] sm:$0xff]
    %v876 = vld [vmem:[#allocation2 + $0x1510] sm:$0xff]
    %v877 = vld [vmem:[#allocation2 + $0x1518] sm:$0xff]
    %v878 = vld [vmem:[#allocation2 + $0x1520] sm:$0xff]
    %v879 = vld [vmem:[#allocation2 + $0x1528] sm:$0xff]
    %v880 = vld [vmem:[#allocation2 + $0x1530] sm:$0xff]
    %v881 = vld [vmem:[#allocation2 + $0x1538] sm:$0xff]
    %v882 = vld [vmem:[#allocation2 + $0x1540] sm:$0xff]
    %v883 = vld [vmem:[#allocation2 + $0x1548] sm:$0xff]
    %v884 = vld [vmem:[#allocation2 + $0x1550] sm:$0xff]
    %v885 = vld [vmem:[#allocation2 + $0x1558] sm:$0xff]
    %v886 = vld [vmem:[#allocation2 + $0x1560] sm:$0xff]
    %v887 = vld [vmem:[#allocation2 + $0x1568] sm:$0xff]
    %v888 = vld [vmem:[#allocation2 + $0x1570] sm:$0xff]
    %v889 = vld [vmem:[#allocation2 + $0x1578] sm:$0xff]
    %v890 = vld [vmem:[#allocation2 + $0x1580] sm:$0xff]
    %v891 = vld [vmem:[#allocation2 + $0x1588] sm:$0xff]
    %v892 = vld [vmem:[#allocation2 + $0x1590] sm:$0xff]
    %v893 = vld [vmem:[#allocation2 + $0x1598] sm:$0xff]
    %v894 = vld [vmem:[#allocation2 + $0x15a0] sm:$0xff]
    %v895 = vld [vmem:[#allocation2 + $0x15a8] sm:$0xff]
    %v896 = vld [vmem:[#allocation2 + $0x15b0] sm:$0xff]
    %v897 = vld [vmem:[#allocation2 + $0x15b8] sm:$0xff]
    %v898 = vld [vmem:[#allocation2 + $0x15c0] sm:$0xff]
    %v899 = vld [vmem:[#allocation2 + $0x15c8] sm:$0xff]
    %v900 = vld [vmem:[#allocation2 + $0x15d0] sm:$0xff]
    %v901 = vld [vmem:[#allocation2 + $0x15d8] sm:$0xff]
    %v902 = vld [vmem:[#allocation2 + $0x15e0] sm:$0xff]
    %v903 = vld [vmem:[#allocation2 + $0x15e8] sm:$0xff]
    %v904 = vld [vmem:[#allocation2 + $0x15f0] sm:$0xff]
    %v905 = vld [vmem:[#allocation2 + $0x15f8] sm:$0xff]
    %v906 = vld [vmem:[#allocation2 + $0x1600] sm:$0xff]
    %v907 = vld [vmem:[#allocation2 + $0x1608] sm:$0xff]
    %v908 = vld [vmem:[#allocation2 + $0x1610] sm:$0xff]
    %v909 = vld [vmem:[#allocation2 + $0x1618] sm:$0xff]
    %v910 = vld [vmem:[#allocation2 + $0x1620] sm:$0xff]
    %v911 = vld [vmem:[#allocation2 + $0x1628] sm:$0xff]
    %v912 = vld [vmem:[#allocation2 + $0x1630] sm:$0xff]
    %v913 = vld [vmem:[#allocation2 + $0x1638] sm:$0xff]
    %v914 = vld [vmem:[#allocation2 + $0x1640] sm:$0xff]
    %v915 = vld [vmem:[#allocation2 + $0x1648] sm:$0xff]
    %v916 = vld [vmem:[#allocation2 + $0x1650] sm:$0xff]
    %v917 = vld [vmem:[#allocation2 + $0x1658] sm:$0xff]
    %v918 = vld [vmem:[#allocation2 + $0x1660] sm:$0xff]
    %v919 = vld [vmem:[#allocation2 + $0x1668] sm:$0xff]
    %v920 = vld [vmem:[#allocation2 + $0x1670] sm:$0xff]
    %v921 = vld [vmem:[#allocation2 + $0x1678] sm:$0xff]
    %v922 = vld [vmem:[#allocation2 + $0x1680] sm:$0xff]
    %v923 = vld [vmem:[#allocation2 + $0x1688] sm:$0xff]
    %v924 = vld [vmem:[#allocation2 + $0x1690] sm:$0xff]
    %v925 = vld [vmem:[#allocation2 + $0x1698] sm:$0xff]
    %v926 = vld [vmem:[#allocation2 + $0x16a0] sm:$0xff]
    %v927 = vld [vmem:[#allocation2 + $0x16a8] sm:$0xff]
    %v928 = vld [vmem:[#allocation2 + $0x16b0] sm:$0xff]
    %v929 = vld [vmem:[#allocation2 + $0x16b8] sm:$0xff]
    %v930 = vld [vmem:[#allocation2 + $0x16c0] sm:$0xff]
    %v931 = vld [vmem:[#allocation2 + $0x16c8] sm:$0xff]
    %v932 = vld [vmem:[#allocation2 + $0x16d0] sm:$0xff]
    %v933 = vld [vmem:[#allocation2 + $0x16d8] sm:$0xff]
    %v934 = vld [vmem:[#allocation2 + $0x16e0] sm:$0xff]
    %v935 = vld [vmem:[#allocation2 + $0x16e8] sm:$0xff]
    %v936 = vld [vmem:[#allocation2 + $0x16f0] sm:$0xff]
    %v937 = vld [vmem:[#allocation2 + $0x16f8] sm:$0xff]
    %v938 = vld [vmem:[#allocation2 + $0x1700] sm:$0xff]
    %v939 = vld [vmem:[#allocation2 + $0x1708] sm:$0xff]
    %v940 = vld [vmem:[#allocation2 + $0x1710] sm:$0xff]
    %v941 = vld [vmem:[#allocation2 + $0x1718] sm:$0xff]
    %v942 = vld [vmem:[#allocation2 + $0x1720] sm:$0xff]
    %v943 = vld [vmem:[#allocation2 + $0x1728] sm:$0xff]
    %v944 = vld [vmem:[#allocation2 + $0x1730] sm:$0xff]
    %v945 = vld [vmem:[#allocation2 + $0x1738] sm:$0xff]
    %v946 = vld [vmem:[#allocation2 + $0x1740] sm:$0xff]
    %v947 = vld [vmem:[#allocation2 + $0x1748] sm:$0xff]
    %v948 = vld [vmem:[#allocation2 + $0x1750] sm:$0xff]
    %v949 = vld [vmem:[#allocation2 + $0x1758] sm:$0xff]
    %v950 = vld [vmem:[#allocation2 + $0x1760] sm:$0xff]
    %v951 = vld [vmem:[#allocation2 + $0x1768] sm:$0xff]
    %v952 = vld [vmem:[#allocation2 + $0x1770] sm:$0xff]
    %v953 = vld [vmem:[#allocation2 + $0x1778] sm:$0xff]
    %v954 = vld [vmem:[#allocation2 + $0x1780] sm:$0xff]
    %v955 = vld [vmem:[#allocation2 + $0x1788] sm:$0xff]
    %v956 = vld [vmem:[#allocation2 + $0x1790] sm:$0xff]
    %v957 = vld [vmem:[#allocation2 + $0x1798] sm:$0xff]
    %v958 = vld [vmem:[#allocation2 + $0x17a0] sm:$0xff]
    %v959 = vld [vmem:[#allocation2 + $0x17a8] sm:$0xff]
    %v960 = vld [vmem:[#allocation2 + $0x17b0] sm:$0xff]
    %v961 = vld [vmem:[#allocation2 + $0x17b8] sm:$0xff]
    %v962 = vld [vmem:[#allocation2 + $0x17c0] sm:$0xff]
    %v963 = vld [vmem:[#allocation2 + $0x17c8] sm:$0xff]
    %v964 = vld [vmem:[#allocation2 + $0x17d0] sm:$0xff]
    %v965 = vld [vmem:[#allocation2 + $0x17d8] sm:$0xff]
    %v966 = vld [vmem:[#allocation2 + $0x17e0] sm:$0xff]
    %v967 = vld [vmem:[#allocation2 + $0x17e8] sm:$0xff]
    %v968 = vld [vmem:[#allocation2 + $0x17f0] sm:$0xff]
    %v969 = vld [vmem:[#allocation2 + $0x17f8] sm:$0xff]
    %v970 = vld [vmem:[#allocation2 + $0x1800] sm:$0xff]
    %v971 = vld [vmem:[#allocation2 + $0x1808] sm:$0xff]
    %v972 = vld [vmem:[#allocation2 + $0x1810] sm:$0xff]
    %v973 = vld [vmem:[#allocation2 + $0x1818] sm:$0xff]
    %v974 = vld [vmem:[#allocation2 + $0x1820] sm:$0xff]
    %v975 = vld [vmem:[#allocation2 + $0x1828] sm:$0xff]
    %v976 = vld [vmem:[#allocation2 + $0x1830] sm:$0xff]
    %v977 = vld [vmem:[#allocation2 + $0x1838] sm:$0xff]
    %v978 = vld [vmem:[#allocation2 + $0x1840] sm:$0xff]
    %v979 = vld [vmem:[#allocation2 + $0x1848] sm:$0xff]
    %v980 = vld [vmem:[#allocation2 + $0x1850] sm:$0xff]
    %v981 = vld [vmem:[#allocation2 + $0x1858] sm:$0xff]
    %v982 = vld [vmem:[#allocation2 + $0x1860] sm:$0xff]
    %v983 = vld [vmem:[#allocation2 + $0x1868] sm:$0xff]
    %v984 = vld [vmem:[#allocation2 + $0x1870] sm:$0xff]
    %v985 = vld [vmem:[#allocation2 + $0x1878] sm:$0xff]
    %v986 = vld [vmem:[#allocation2 + $0x1880] sm:$0xff]
    %v987 = vld [vmem:[#allocation2 + $0x1888] sm:$0xff]
    %v988 = vld [vmem:[#allocation2 + $0x1890] sm:$0xff]
    %v989 = vld [vmem:[#allocation2 + $0x1898] sm:$0xff]
    %v990 = vld [vmem:[#allocation2 + $0x18a0] sm:$0xff]
    %v991 = vld [vmem:[#allocation2 + $0x18a8] sm:$0xff]
    %v992 = vld [vmem:[#allocation2 + $0x18b0] sm:$0xff]
    %v993 = vld [vmem:[#allocation2 + $0x18b8] sm:$0xff]
    %v994 = vld [vmem:[#allocation2 + $0x18c0] sm:$0xff]
    %v995 = vld [vmem:[#allocation2 + $0x18c8] sm:$0xff]
    %v996 = vld [vmem:[#allocation2 + $0x18d0] sm:$0xff]
    %v997 = vld [vmem:[#allocation2 + $0x18d8] sm:$0xff]
    %v998 = vld [vmem:[#allocation2 + $0x18e0] sm:$0xff]
    %v999 = vld [vmem:[#allocation2 + $0x18e8] sm:$0xff]
    %v1000 = vld [vmem:[#allocation2 + $0x18f0] sm:$0xff]
    %v1001 = vld [vmem:[#allocation2 + $0x18f8] sm:$0xff]
    %v1002 = vld [vmem:[#allocation2 + $0x1900] sm:$0xff]
    %v1003 = vld [vmem:[#allocation2 + $0x1908] sm:$0xff]
    %v1004 = vld [vmem:[#allocation2 + $0x1910] sm:$0xff]
    %v1005 = vld [vmem:[#allocation2 + $0x1918] sm:$0xff]
    %v1006 = vld [vmem:[#allocation2 + $0x1920] sm:$0xff]
    %v1007 = vld [vmem:[#allocation2 + $0x1928] sm:$0xff]
    %v1008 = vld [vmem:[#allocation2 + $0x1930] sm:$0xff]
    %v1009 = vld [vmem:[#allocation2 + $0x1938] sm:$0xff]
    %v1010 = vld [vmem:[#allocation2 + $0x1940] sm:$0xff]
    %v1011 = vld [vmem:[#allocation2 + $0x1948] sm:$0xff]
    %v1012 = vld [vmem:[#allocation2 + $0x1950] sm:$0xff]
    %v1013 = vld [vmem:[#allocation2 + $0x1958] sm:$0xff]
    %v1014 = vld [vmem:[#allocation2 + $0x1960] sm:$0xff]
    %v1015 = vld [vmem:[#allocation2 + $0x1968] sm:$0xff]
    %v1016 = vld [vmem:[#allocation2 + $0x1970] sm:$0xff]
    %v1017 = vld [vmem:[#allocation2 + $0x1978] sm:$0xff]
    %v1018 = vld [vmem:[#allocation2 + $0x1980] sm:$0xff]
    %v1019 = vld [vmem:[#allocation2 + $0x1988] sm:$0xff]
    %v1020 = vld [vmem:[#allocation2 + $0x1990] sm:$0xff]
    %v1021 = vld [vmem:[#allocation2 + $0x1998] sm:$0xff]
    %v1022 = vld [vmem:[#allocation2 + $0x19a0] sm:$0xff]
    %v1023 = vld [vmem:[#allocation2 + $0x19a8] sm:$0xff]
    %v1024 = vld [vmem:[#allocation2 + $0x19b0] sm:$0xff]
    %v1025 = vld [vmem:[#allocation2 + $0x19b8] sm:$0xff]
    %v1026 = vld [vmem:[#allocation2 + $0x19c0] sm:$0xff]
    %v1027 = vld [vmem:[#allocation2 + $0x19c8] sm:$0xff]
    %v1028 = vld [vmem:[#allocation2 + $0x19d0] sm:$0xff]
    %v1029 = vld [vmem:[#allocation2 + $0x19d8] sm:$0xff]
    %v1030 = vld [vmem:[#allocation2 + $0x19e0] sm:$0xff]
    %v1031 = vld [vmem:[#allocation2 + $0x19e8] sm:$0xff]
    %v1032 = vld [vmem:[#allocation2 + $0x19f0] sm:$0xff]
    %v1033 = vld [vmem:[#allocation2 + $0x19f8] sm:$0xff]
    %v1034 = vld [vmem:[#allocation2 + $0x1a00] sm:$0xff]
    %v1035 = vld [vmem:[#allocation2 + $0x1a08] sm:$0xff]
    %v1036 = vld [vmem:[#allocation2 + $0x1a10] sm:$0xff]
    %v1037 = vld [vmem:[#allocation2 + $0x1a18] sm:$0xff]
    %v1038 = vld [vmem:[#allocation2 + $0x1a20] sm:$0xff]
    %v1039 = vld [vmem:[#allocation2 + $0x1a28] sm:$0xff]
    %v1040 = vld [vmem:[#allocation2 + $0x1a30] sm:$0xff]
    %v1041 = vld [vmem:[#allocation2 + $0x1a38] sm:$0xff]
    %v1042 = vld [vmem:[#allocation2 + $0x1a40] sm:$0xff]
    %v1043 = vld [vmem:[#allocation2 + $0x1a48] sm:$0xff]
    %v1044 = vld [vmem:[#allocation2 + $0x1a50] sm:$0xff]
    %v1045 = vld [vmem:[#allocation2 + $0x1a58] sm:$0xff]
    %v1046 = vld [vmem:[#allocation2 + $0x1a60] sm:$0xff]
    %v1047 = vld [vmem:[#allocation2 + $0x1a68] sm:$0xff]
    %v1048 = vld [vmem:[#allocation2 + $0x1a70] sm:$0xff]
    %v1049 = vld [vmem:[#allocation2 + $0x1a78] sm:$0xff]
    %v1050 = vld [vmem:[#allocation2 + $0x1a80] sm:$0xff]
    %v1051 = vld [vmem:[#allocation2 + $0x1a88] sm:$0xff]
    %v1052 = vld [vmem:[#allocation2 + $0x1a90] sm:$0xff]
    %v1053 = vld [vmem:[#allocation2 + $0x1a98] sm:$0xff]
    %v1054 = vld [vmem:[#allocation2 + $0x1aa0] sm:$0xff]
    %v1055 = vld [vmem:[#allocation2 + $0x1aa8] sm:$0xff]
    %v1056 = vld [vmem:[#allocation2 + $0x1ab0] sm:$0xff]
    %v1057 = vld [vmem:[#allocation2 + $0x1ab8] sm:$0xff]
    %v1058 = vld [vmem:[#allocation2 + $0x1ac0] sm:$0xff]
    %v1059 = vld [vmem:[#allocation2 + $0x1ac8] sm:$0xff]
    %v1060 = vld [vmem:[#allocation2 + $0x1ad0] sm:$0xff]
    %v1061 = vld [vmem:[#allocation2 + $0x1ad8] sm:$0xff]
    %v1062 = vld [vmem:[#allocation2 + $0x1ae0] sm:$0xff]
    %v1063 = vld [vmem:[#allocation2 + $0x1ae8] sm:$0xff]
    %v1064 = vld [vmem:[#allocation2 + $0x1af0] sm:$0xff]
    %v1065 = vld [vmem:[#allocation2 + $0x1af8] sm:$0xff]
    %v1066 = vld [vmem:[#allocation2 + $0x1b00] sm:$0xff]
    %v1067 = vld [vmem:[#allocation2 + $0x1b08] sm:$0xff]
    %v1068 = vld [vmem:[#allocation2 + $0x1b10] sm:$0xff]
    %v1069 = vld [vmem:[#allocation2 + $0x1b18] sm:$0xff]
    %v1070 = vld [vmem:[#allocation2 + $0x1b20] sm:$0xff]
    %v1071 = vld [vmem:[#allocation2 + $0x1b28] sm:$0xff]
    %v1072 = vld [vmem:[#allocation2 + $0x1b30] sm:$0xff]
    %v1073 = vld [vmem:[#allocation2 + $0x1b38] sm:$0xff]
    %v1074 = vld [vmem:[#allocation2 + $0x1b40] sm:$0xff]
    %v1075 = vld [vmem:[#allocation2 + $0x1b48] sm:$0xff]
    %v1076 = vld [vmem:[#allocation2 + $0x1b50] sm:$0xff]
    %v1077 = vld [vmem:[#allocation2 + $0x1b58] sm:$0xff]
    %v1078 = vld [vmem:[#allocation2 + $0x1b60] sm:$0xff]
    %v1079 = vld [vmem:[#allocation2 + $0x1b68] sm:$0xff]
    %v1080 = vld [vmem:[#allocation2 + $0x1b70] sm:$0xff]
    %v1081 = vld [vmem:[#allocation2 + $0x1b78] sm:$0xff]
    %v1082 = vld [vmem:[#allocation2 + $0x1b80] sm:$0xff]
    %v1083 = vld [vmem:[#allocation2 + $0x1b88] sm:$0xff]
    %v1084 = vld [vmem:[#allocation2 + $0x1b90] sm:$0xff]
    %v1085 = vld [vmem:[#allocation2 + $0x1b98] sm:$0xff]
    %v1086 = vld [vmem:[#allocation2 + $0x1ba0] sm:$0xff]
    %v1087 = vld [vmem:[#allocation2 + $0x1ba8] sm:$0xff]
    %v1088 = vld [vmem:[#allocation2 + $0x1bb0] sm:$0xff]
    %v1089 = vld [vmem:[#allocation2 + $0x1bb8] sm:$0xff]
    %v1090 = vld [vmem:[#allocation2 + $0x1bc0] sm:$0xff]
    %v1091 = vld [vmem:[#allocation2 + $0x1bc8] sm:$0xff]
    %v1092 = vld [vmem:[#allocation2 + $0x1bd0] sm:$0xff]
    %v1093 = vld [vmem:[#allocation2 + $0x1bd8] sm:$0xff]
    %v1094 = vld [vmem:[#allocation2 + $0x1be0] sm:$0xff]
    %v1095 = vld [vmem:[#allocation2 + $0x1be8] sm:$0xff]
    %v1096 = vld [vmem:[#allocation2 + $0x1bf0] sm:$0xff]
    %v1097 = vld [vmem:[#allocation2 + $0x1bf8] sm:$0xff]
    %v1098 = vld [vmem:[#allocation2 + $0x1c00] sm:$0xff]
    %v1099 = vld [vmem:[#allocation2 + $0x1c08] sm:$0xff]
    %v1100 = vld [vmem:[#allocation2 + $0x1c10] sm:$0xff]
    %v1101 = vld [vmem:[#allocation2 + $0x1c18] sm:$0xff]
    %v1102 = vld [vmem:[#allocation2 + $0x1c20] sm:$0xff]
    %v1103 = vld [vmem:[#allocation2 + $0x1c28] sm:$0xff]
    %v1104 = vld [vmem:[#allocation2 + $0x1c30] sm:$0xff]
    %v1105 = vld [vmem:[#allocation2 + $0x1c38] sm:$0xff]
    %v1106 = vld [vmem:[#allocation2 + $0x1c40] sm:$0xff]
    %v1107 = vld [vmem:[#allocation2 + $0x1c48] sm:$0xff]
    %v1108 = vld [vmem:[#allocation2 + $0x1c50] sm:$0xff]
    %v1109 = vld [vmem:[#allocation2 + $0x1c58] sm:$0xff]
    %v1110 = vld [vmem:[#allocation2 + $0x1c60] sm:$0xff]
    %v1111 = vld [vmem:[#allocation2 + $0x1c68] sm:$0xff]
    %v1112 = vld [vmem:[#allocation2 + $0x1c70] sm:$0xff]
    %v1113 = vld [vmem:[#allocation2 + $0x1c78] sm:$0xff]
    %v1114 = vld [vmem:[#allocation2 + $0x1c80] sm:$0xff]
    %v1115 = vld [vmem:[#allocation2 + $0x1c88] sm:$0xff]
    %v1116 = vld [vmem:[#allocation2 + $0x1c90] sm:$0xff]
    %v1117 = vld [vmem:[#allocation2 + $0x1c98] sm:$0xff]
    %v1118 = vld [vmem:[#allocation2 + $0x1ca0] sm:$0xff]
    %v1119 = vld [vmem:[#allocation2 + $0x1ca8] sm:$0xff]
    %v1120 = vld [vmem:[#allocation2 + $0x1cb0] sm:$0xff]
    %v1121 = vld [vmem:[#allocation2 + $0x1cb8] sm:$0xff]
    %v1122 = vld [vmem:[#allocation2 + $0x1cc0] sm:$0xff]
    %v1123 = vld [vmem:[#allocation2 + $0x1cc8] sm:$0xff]
    %v1124 = vld [vmem:[#allocation2 + $0x1cd0] sm:$0xff]
    %v1125 = vld [vmem:[#allocation2 + $0x1cd8] sm:$0xff]
    %v1126 = vld [vmem:[#allocation2 + $0x1ce0] sm:$0xff]
    %v1127 = vld [vmem:[#allocation2 + $0x1ce8] sm:$0xff]
    %v1128 = vld [vmem:[#allocation2 + $0x1cf0] sm:$0xff]
    %v1129 = vld [vmem:[#allocation2 + $0x1cf8] sm:$0xff]
    %v1130 = vld [vmem:[#allocation2 + $0x1d00] sm:$0xff]
    %v1131 = vld [vmem:[#allocation2 + $0x1d08] sm:$0xff]
    %v1132 = vld [vmem:[#allocation2 + $0x1d10] sm:$0xff]
    %v1133 = vld [vmem:[#allocation2 + $0x1d18] sm:$0xff]
    %v1134 = vld [vmem:[#allocation2 + $0x1d20] sm:$0xff]
    %v1135 = vld [vmem:[#allocation2 + $0x1d28] sm:$0xff]
    %v1136 = vld [vmem:[#allocation2 + $0x1d30] sm:$0xff]
    %v1137 = vld [vmem:[#allocation2 + $0x1d38] sm:$0xff]
    %v1138 = vld [vmem:[#allocation2 + $0x1d40] sm:$0xff]
    %v1139 = vld [vmem:[#allocation2 + $0x1d48] sm:$0xff]
    %v1140 = vld [vmem:[#allocation2 + $0x1d50] sm:$0xff]
    %v1141 = vld [vmem:[#allocation2 + $0x1d58] sm:$0xff]
    %v1142 = vld [vmem:[#allocation2 + $0x1d60] sm:$0xff]
    %v1143 = vld [vmem:[#allocation2 + $0x1d68] sm:$0xff]
    %v1144 = vld [vmem:[#allocation2 + $0x1d70] sm:$0xff]
    %v1145 = vld [vmem:[#allocation2 + $0x1d78] sm:$0xff]
    %v1146 = vld [vmem:[#allocation2 + $0x1d80] sm:$0xff]
    %v1147 = vld [vmem:[#allocation2 + $0x1d88] sm:$0xff]
    %v1148 = vld [vmem:[#allocation2 + $0x1d90] sm:$0xff]
    %v1149 = vld [vmem:[#allocation2 + $0x1d98] sm:$0xff]
    %v1150 = vld [vmem:[#allocation2 + $0x1da0] sm:$0xff]
    %v1151 = vld [vmem:[#allocation2 + $0x1da8] sm:$0xff]
    %v1152 = vld [vmem:[#allocation2 + $0x1db0] sm:$0xff]
    %v1153 = vld [vmem:[#allocation2 + $0x1db8] sm:$0xff]
    %v1154 = vld [vmem:[#allocation2 + $0x1dc0] sm:$0xff]
    %v1155 = vld [vmem:[#allocation2 + $0x1dc8] sm:$0xff]
    %v1156 = vld [vmem:[#allocation2 + $0x1dd0] sm:$0xff]
    %v1157 = vld [vmem:[#allocation2 + $0x1dd8] sm:$0xff]
    %v1158 = vld [vmem:[#allocation2 + $0x1de0] sm:$0xff]
    %v1159 = vld [vmem:[#allocation2 + $0x1de8] sm:$0xff]
    %v1160 = vld [vmem:[#allocation2 + $0x1df0] sm:$0xff]
    %v1161 = vld [vmem:[#allocation2 + $0x1df8] sm:$0xff]
    %v1162 = vld [vmem:[#allocation2 + $0x1e00] sm:$0xff]
    %v1163 = vld [vmem:[#allocation2 + $0x1e08] sm:$0xff]
    %v1164 = vld [vmem:[#allocation2 + $0x1e10] sm:$0xff]
    %v1165 = vld [vmem:[#allocation2 + $0x1e18] sm:$0xff]
    %v1166 = vld [vmem:[#allocation2 + $0x1e20] sm:$0xff]
    %v1167 = vld [vmem:[#allocation2 + $0x1e28] sm:$0xff]
    %v1168 = vld [vmem:[#allocation2 + $0x1e30] sm:$0xff]
    %v1169 = vld [vmem:[#allocation2 + $0x1e38] sm:$0xff]
    %v1170 = vld [vmem:[#allocation2 + $0x1e40] sm:$0xff]
    %v1171 = vld [vmem:[#allocation2 + $0x1e48] sm:$0xff]
    %v1172 = vld [vmem:[#allocation2 + $0x1e50] sm:$0xff]
    %v1173 = vld [vmem:[#allocation2 + $0x1e58] sm:$0xff]
    %v1174 = vld [vmem:[#allocation2 + $0x1e60] sm:$0xff]
    %v1175 = vld [vmem:[#allocation2 + $0x1e68] sm:$0xff]
    %v1176 = vld [vmem:[#allocation2 + $0x1e70] sm:$0xff]
    %v1177 = vld [vmem:[#allocation2 + $0x1e78] sm:$0xff]
    %v1178 = vld [vmem:[#allocation2 + $0x1e80] sm:$0xff]
    %v1179 = vld [vmem:[#allocation2 + $0x1e88] sm:$0xff]
    %v1180 = vld [vmem:[#allocation2 + $0x1e90] sm:$0xff]
    %v1181 = vld [vmem:[#allocation2 + $0x1e98] sm:$0xff]
    %v1182 = vld [vmem:[#allocation2 + $0x1ea0] sm:$0xff]
    %v1183 = vld [vmem:[#allocation2 + $0x1ea8] sm:$0xff]
    %v1184 = vld [vmem:[#allocation2 + $0x1eb0] sm:$0xff]
    %v1185 = vld [vmem:[#allocation2 + $0x1eb8] sm:$0xff]
    %v1186 = vld [vmem:[#allocation2 + $0x1ec0] sm:$0xff]
    %v1187 = vld [vmem:[#allocation2 + $0x1ec8] sm:$0xff]
    %v1188 = vld [vmem:[#allocation2 + $0x1ed0] sm:$0xff]
    %v1189 = vld [vmem:[#allocation2 + $0x1ed8] sm:$0xff]
    %v1190 = vld [vmem:[#allocation2 + $0x1ee0] sm:$0xff]
    %v1191 = vld [vmem:[#allocation2 + $0x1ee8] sm:$0xff]
    %v1192 = vld [vmem:[#allocation2 + $0x1ef0] sm:$0xff]
    %v1193 = vld [vmem:[#allocation2 + $0x1ef8] sm:$0xff]
    %v1194 = vld [vmem:[#allocation2 + $0x1f00] sm:$0xff]
    %v1195 = vld [vmem:[#allocation2 + $0x1f08] sm:$0xff]
    %v1196 = vld [vmem:[#allocation2 + $0x1f10] sm:$0xff]
    %v1197 = vld [vmem:[#allocation2 + $0x1f18] sm:$0xff]
    %v1198 = vld [vmem:[#allocation2 + $0x1f20] sm:$0xff]
    %v1199 = vld [vmem:[#allocation2 + $0x1f28] sm:$0xff]
    %v1200 = vld [vmem:[#allocation2 + $0x1f30] sm:$0xff]
    %v1201 = vld [vmem:[#allocation2 + $0x1f38] sm:$0xff]
    %v1202 = vld [vmem:[#allocation2 + $0x1f40] sm:$0xff]
    %v1203 = vld [vmem:[#allocation2 + $0x1f48] sm:$0xff]
    %v1204 = vld [vmem:[#allocation2 + $0x1f50] sm:$0xff]
    %v1205 = vld [vmem:[#allocation2 + $0x1f58] sm:$0xff]
    %v1206 = vld [vmem:[#allocation2 + $0x1f60] sm:$0xff]
    %v1207 = vld [vmem:[#allocation2 + $0x1f68] sm:$0xff]
    %v1208 = vld [vmem:[#allocation2 + $0x1f70] sm:$0xff]
    %v1209 = vld [vmem:[#allocation2 + $0x1f78] sm:$0xff]
    %v1210 = vld [vmem:[#allocation2 + $0x1f80] sm:$0xff]
    %v1211 = vld [vmem:[#allocation2 + $0x1f88] sm:$0xff]
    %v1212 = vld [vmem:[#allocation2 + $0x1f90] sm:$0xff]
    %v1213 = vld [vmem:[#allocation2 + $0x1f98] sm:$0xff]
    %v1214 = vld [vmem:[#allocation2 + $0x1fa0] sm:$0xff]
    %v1215 = vld [vmem:[#allocation2 + $0x1fa8] sm:$0xff]
    %v1216 = vld [vmem:[#allocation2 + $0x1fb0] sm:$0xff]
    %v1217 = vld [vmem:[#allocation2 + $0x1fb8] sm:$0xff]
    %v1218 = vld [vmem:[#allocation2 + $0x1fc0] sm:$0xff]
    %v1219 = vld [vmem:[#allocation2 + $0x1fc8] sm:$0xff]
    %v1220 = vld [vmem:[#allocation2 + $0x1fd0] sm:$0xff]
    %v1221 = vld [vmem:[#allocation2 + $0x1fd8] sm:$0xff]
    %v1222 = vld [vmem:[#allocation2 + $0x1fe0] sm:$0xff]
    %v1223 = vld [vmem:[#allocation2 + $0x1fe8] sm:$0xff]
    %v1224 = vld [vmem:[#allocation2 + $0x1ff0] sm:$0xff]
    %v1225 = vld [vmem:[#allocation2 + $0x1ff8] sm:$0xff]
    %v1226 = vld [vmem:[#allocation7] sm:$0xff]
    %v1228 = vlaneseq
    %v1229 = vshrl.u32 %v1228, 7
    %v1230 = vsub.s32 0, %v1229
    %v1231 = vrot.slane %v1226, %v1230
    %v1232 = vlaneseq
    %v1233 = vshrl.u32 %v1232, 7
    %v1234 = vsub.s32 1, %v1233
    %v1235 = vrot.slane %v1226, %v1234
    %v1236 = vlaneseq
    %v1237 = vshrl.u32 %v1236, 7
    %v1238 = vsub.s32 2, %v1237
    %v1239 = vrot.slane %v1226, %v1238
    %v1240 = vlaneseq
    %v1241 = vshrl.u32 %v1240, 7
    %v1242 = vsub.s32 3, %v1241
    %v1243 = vrot.slane %v1226, %v1242
    %v1244 = vlaneseq
    %v1245 = vshrl.u32 %v1244, 7
    %v1246 = vsub.s32 4, %v1245
    %v1247 = vrot.slane %v1226, %v1246
    %v1248 = vlaneseq
    %v1249 = vshrl.u32 %v1248, 7
    %v1250 = vsub.s32 5, %v1249
    %v1251 = vrot.slane %v1226, %v1250
    %v1252 = vlaneseq
    %v1253 = vshrl.u32 %v1252, 7
    %v1254 = vsub.s32 6, %v1253
    %v1255 = vrot.slane %v1226, %v1254
    %v1256 = vlaneseq
    %v1257 = vshrl.u32 %v1256, 7
    %v1258 = vsub.s32 7, %v1257
    %v1259 = vrot.slane %v1226, %v1258
    %v1276 = vunpack.c.l.b16 %v190
    %v1277 = vunpack.c.h.b16 %v190
    %v1278 = vunpack.c.l.b16 %v191
    %v1279 = vunpack.c.h.b16 %v191
    %v1280 = vunpack.c.l.b16 %v192
    %v1281 = vunpack.c.h.b16 %v192
    %v1282 = vunpack.c.l.b16 %v193
    %v1283 = vunpack.c.h.b16 %v193
    %v1284 = vunpack.c.l.b16 %v194
    %v1285 = vunpack.c.h.b16 %v194
    %v1286 = vunpack.c.l.b16 %v195
    %v1287 = vunpack.c.h.b16 %v195
    %v1288 = vunpack.c.l.b16 %v196
    %v1289 = vunpack.c.h.b16 %v196
    %v1290 = vunpack.c.l.b16 %v197
    %v1291 = vunpack.c.h.b16 %v197
    %v1292 = vpack.c.b16 %v1276, %v1276
    %v1293 = vpack.c.b16 %v1277, %v1277
    %v1294 = vpack.c.b16 %v1278, %v1278
    %v1295 = vpack.c.b16 %v1279, %v1279
    %v1296 = vpack.c.b16 %v1280, %v1280
    %v1297 = vpack.c.b16 %v1281, %v1281
    %v1298 = vpack.c.b16 %v1282, %v1282
    %v1299 = vpack.c.b16 %v1283, %v1283
    %v1300 = vpack.c.b16 %v1284, %v1284
    %v1301 = vpack.c.b16 %v1285, %v1285
    %v1302 = vpack.c.b16 %v1286, %v1286
    %v1303 = vpack.c.b16 %v1287, %v1287
    %v1304 = vpack.c.b16 %v1288, %v1288
    %v1305 = vpack.c.b16 %v1289, %v1289
    %v1306 = vpack.c.b16 %v1290, %v1290
    %v1307 = vpack.c.b16 %v1291, %v1291
    %1324 = vmatprep.subr.bf16.mxu0 %v203
    %1325 = vmatpush1.bf16.msra.mxu0 %v202
    %1326 = vmatprep.subr.bf16.mxu0 %v211
    %1327 = vmatpush1.bf16.msra.mxu0 %v210
    %1328 = vmatprep.subr.bf16.mxu0 %v219
    %1329 = vmatpush1.bf16.msra.mxu0 %v218
    %1330 = vmatprep.subr.bf16.mxu0 %v227
    %1331 = vmatpush1.bf16.msra.mxu0 %v226
    %1332 = vmatprep.subr.bf16.mxu0 %v235
    %1333 = vmatpush1.bf16.msra.mxu0 %v234
    %1334 = vmatprep.subr.bf16.mxu0 %v243
    %1335 = vmatpush1.bf16.msra.mxu0 %v242
    %1336 = vmatprep.subr.bf16.mxu0 %v251
    %1337 = vmatpush1.bf16.msra.mxu0 %v250
    %1338 = vmatprep.subr.bf16.mxu0 %v259
    %1339 = vmatpush1.bf16.msra.mxu0 %v258
    %1340 = vmatprep.subr.bf16.mxu0 %v267
    %1341 = vmatpush1.bf16.msra.mxu0 %v266
    %1342 = vmatprep.subr.bf16.mxu0 %v275
    %1343 = vmatpush1.bf16.msra.mxu0 %v274
    %1344 = vmatprep.subr.bf16.mxu0 %v283
    %1345 = vmatpush1.bf16.msra.mxu0 %v282
    %1346 = vmatprep.subr.bf16.mxu0 %v291
    %1347 = vmatpush1.bf16.msra.mxu0 %v290
    %1348 = vmatprep.subr.bf16.mxu0 %v299
    %1349 = vmatpush1.bf16.msra.mxu0 %v298
    %1350 = vmatprep.subr.bf16.mxu0 %v307
    %1351 = vmatpush1.bf16.msra.mxu0 %v306
    %1352 = vmatprep.subr.bf16.mxu0 %v315
    %1353 = vmatpush1.bf16.msra.mxu0 %v314
    %1354 = vmatprep.subr.bf16.mxu0 %v323
    %1355 = vmatpush1.bf16.msra.mxu0 %v322
    %1356 = vmatprep.mubr.bf16.mxu0 %v1293
    %1357 = vmatmul.mubr.bf16.gmra.mrb[0].mxu0 %v1292
    %v1358 = vpop.f32.mrb[0].mxu0
    %v1359 = vadd.f32 %v1231, %v1358
    %v1360 = vpop.f32.mrb[0].mxu0
    %v1361 = vadd.f32 %v1235, %v1360
    %v1362 = vpop.f32.mrb[0].mxu0
    %v1363 = vpop.f32.mrb[0].mxu0
    %1364 = vdwg.mxu0
    %1365 = vmatprep.subr.bf16.mxu0 %v331
    %1366 = vmatpush1.bf16.msra.mxu0 %v330
    %1367 = vmatprep.subr.bf16.mxu0 %v339
    %1368 = vmatpush1.bf16.msra.mxu0 %v338
    %1369 = vmatprep.subr.bf16.mxu0 %v347
    %1370 = vmatpush1.bf16.msra.mxu0 %v346
    %1371 = vmatprep.subr.bf16.mxu0 %v355
    %1372 = vmatpush1.bf16.msra.mxu0 %v354
    %1373 = vmatprep.subr.bf16.mxu0 %v363
    %1374 = vmatpush1.bf16.msra.mxu0 %v362
    %1375 = vmatprep.subr.bf16.mxu0 %v371
    %1376 = vmatpush1.bf16.msra.mxu0 %v370
    %1377 = vmatprep.subr.bf16.mxu0 %v379
    %1378 = vmatpush1.bf16.msra.mxu0 %v378
    %1379 = vmatprep.subr.bf16.mxu0 %v387
    %1380 = vmatpush1.bf16.msra.mxu0 %v386
    %1381 = vmatprep.subr.bf16.mxu0 %v395
    %1382 = vmatpush1.bf16.msra.mxu0 %v394
    %1383 = vmatprep.subr.bf16.mxu0 %v403
    %1384 = vmatpush1.bf16.msra.mxu0 %v402
    %1385 = vmatprep.subr.bf16.mxu0 %v411
    %1386 = vmatpush1.bf16.msra.mxu0 %v410
    %1387 = vmatprep.subr.bf16.mxu0 %v419
    %1388 = vmatpush1.bf16.msra.mxu0 %v418
    %1389 = vmatprep.subr.bf16.mxu0 %v427
    %1390 = vmatpush1.bf16.msra.mxu0 %v426
    %1391 = vmatprep.subr.bf16.mxu0 %v435
    %1392 = vmatpush1.bf16.msra.mxu0 %v434
    %1393 = vmatprep.subr.bf16.mxu0 %v443
    %1394 = vmatpush1.bf16.msra.mxu0 %v442
    %1395 = vmatprep.subr.bf16.mxu0 %v451
    %1396 = vmatpush1.bf16.msra.mxu0 %v450
    %1397 = vmatprep.mubr.bf16.mxu0 %v1295
    %1398 = vmatmul.mubr.bf16.gmra.mrb[0].mxu0 %v1294
    %v1399 = vpop.f32.mrb[0].mxu0
    %v1400 = vadd.f32 %v1359, %v1399
    %v1401 = vpop.f32.mrb[0].mxu0
    %v1402 = vadd.f32 %v1361, %v1401
    %v1403 = vpop.f32.mrb[0].mxu0
    %v1404 = vpop.f32.mrb[0].mxu0
    %1405 = vdwg.mxu0
    %1406 = vmatprep.subr.bf16.mxu0 %v459
    %1407 = vmatpush1.bf16.msra.mxu0 %v458
    %1408 = vmatprep.subr.bf16.mxu0 %v467
    %1409 = vmatpush1.bf16.msra.mxu0 %v466
    %1410 = vmatprep.subr.bf16.mxu0 %v475
    %1411 = vmatpush1.bf16.msra.mxu0 %v474
    %1412 = vmatprep.subr.bf16.mxu0 %v483
    %1413 = vmatpush1.bf16.msra.mxu0 %v482
    %1414 = vmatprep.subr.bf16.mxu0 %v491
    %1415 = vmatpush1.bf16.msra.mxu0 %v490
    %1416 = vmatprep.subr.bf16.mxu0 %v499
    %1417 = vmatpush1.bf16.msra.mxu0 %v498
    %1418 = vmatprep.subr.bf16.mxu0 %v507
    %1419 = vmatpush1.bf16.msra.mxu0 %v506
    %1420 = vmatprep.subr.bf16.mxu0 %v515
    %1421 = vmatpush1.bf16.msra.mxu0 %v514
    %1422 = vmatprep.subr.bf16.mxu0 %v523
    %1423 = vmatpush1.bf16.msra.mxu0 %v522
    %1424 = vmatprep.subr.bf16.mxu0 %v531
    %1425 = vmatpush1.bf16.msra.mxu0 %v530
    %1426 = vmatprep.subr.bf16.mxu0 %v539
    %1427 = vmatpush1.bf16.msra.mxu0 %v538
    %1428 = vmatprep.subr.bf16.mxu0 %v547
    %1429 = vmatpush1.bf16.msra.mxu0 %v546
    %1430 = vmatprep.subr.bf16.mxu0 %v555
    %1431 = vmatpush1.bf16.msra.mxu0 %v554
    %1432 = vmatprep.subr.bf16.mxu0 %v563
    %1433 = vmatpush1.bf16.msra.mxu0 %v562
    %1434 = vmatprep.subr.bf16.mxu0 %v571
    %1435 = vmatpush1.bf16.msra.mxu0 %v570
    %1436 = vmatprep.subr.bf16.mxu0 %v579
    %1437 = vmatpush1.bf16.msra.mxu0 %v578
    %1438 = vmatprep.mubr.bf16.mxu0 %v1297
    %1439 = vmatmul.mubr.bf16.gmra.mrb[0].mxu0 %v1296
    %v1440 = vpop.f32.mrb[0].mxu0
    %v1441 = vadd.f32 %v1400, %v1440
    %v1442 = vpop.f32.mrb[0].mxu0
    %v1443 = vadd.f32 %v1402, %v1442
    %v1444 = vpop.f32.mrb[0].mxu0
    %v1445 = vpop.f32.mrb[0].mxu0
    %1446 = vdwg.mxu0
    %1447 = vmatprep.subr.bf16.mxu0 %v587
    %1448 = vmatpush1.bf16.msra.mxu0 %v586
    %1449 = vmatprep.subr.bf16.mxu0 %v595
    %1450 = vmatpush1.bf16.msra.mxu0 %v594
    %1451 = vmatprep.subr.bf16.mxu0 %v603
    %1452 = vmatpush1.bf16.msra.mxu0 %v602
    %1453 = vmatprep.subr.bf16.mxu0 %v611
    %1454 = vmatpush1.bf16.msra.mxu0 %v610
    %1455 = vmatprep.subr.bf16.mxu0 %v619
    %1456 = vmatpush1.bf16.msra.mxu0 %v618
    %1457 = vmatprep.subr.bf16.mxu0 %v627
    %1458 = vmatpush1.bf16.msra.mxu0 %v626
    %1459 = vmatprep.subr.bf16.mxu0 %v635
    %1460 = vmatpush1.bf16.msra.mxu0 %v634
    %1461 = vmatprep.subr.bf16.mxu0 %v643
    %1462 = vmatpush1.bf16.msra.mxu0 %v642
    %1463 = vmatprep.subr.bf16.mxu0 %v651
    %1464 = vmatpush1.bf16.msra.mxu0 %v650
    %1465 = vmatprep.subr.bf16.mxu0 %v659
    %1466 = vmatpush1.bf16.msra.mxu0 %v658
    %1467 = vmatprep.subr.bf16.mxu0 %v667
    %1468 = vmatpush1.bf16.msra.mxu0 %v666
    %1469 = vmatprep.subr.bf16.mxu0 %v675
    %1470 = vmatpush1.bf16.msra.mxu0 %v674
    %1471 = vmatprep.subr.bf16.mxu0 %v683
    %1472 = vmatpush1.bf16.msra.mxu0 %v682
    %1473 = vmatprep.subr.bf16.mxu0 %v691
    %1474 = vmatpush1.bf16.msra.mxu0 %v690
    %1475 = vmatprep.subr.bf16.mxu0 %v699
    %1476 = vmatpush1.bf16.msra.mxu0 %v698
    %1477 = vmatprep.subr.bf16.mxu0 %v707
    %1478 = vmatpush1.bf16.msra.mxu0 %v706
    %1479 = vmatprep.mubr.bf16.mxu0 %v1299
    %1480 = vmatmul.mubr.bf16.gmra.mrb[0].mxu0 %v1298
    %v1481 = vpop.f32.mrb[0].mxu0
    %v1482 = vadd.f32 %v1441, %v1481
    %v1483 = vpop.f32.mrb[0].mxu0
    %v1484 = vadd.f32 %v1443, %v1483
    %v1485 = vpop.f32.mrb[0].mxu0
    %v1486 = vpop.f32.mrb[0].mxu0
    %1487 = vdwg.mxu0
    %1488 = vmatprep.subr.bf16.mxu0 %v715
    %1489 = vmatpush1.bf16.msra.mxu0 %v714
    %1490 = vmatprep.subr.bf16.mxu0 %v723
    %1491 = vmatpush1.bf16.msra.mxu0 %v722
    %1492 = vmatprep.subr.bf16.mxu0 %v731
    %1493 = vmatpush1.bf16.msra.mxu0 %v730
    %1494 = vmatprep.subr.bf16.mxu0 %v739
    %1495 = vmatpush1.bf16.msra.mxu0 %v738
    %1496 = vmatprep.subr.bf16.mxu0 %v747
    %1497 = vmatpush1.bf16.msra.mxu0 %v746
    %1498 = vmatprep.subr.bf16.mxu0 %v755
    %1499 = vmatpush1.bf16.msra.mxu0 %v754
    %1500 = vmatprep.subr.bf16.mxu0 %v763
    %1501 = vmatpush1.bf16.msra.mxu0 %v762
    %1502 = vmatprep.subr.bf16.mxu0 %v771
    %1503 = vmatpush1.bf16.msra.mxu0 %v770
    %1504 = vmatprep.subr.bf16.mxu0 %v779
    %1505 = vmatpush1.bf16.msra.mxu0 %v778
    %1506 = vmatprep.subr.bf16.mxu0 %v787
    %1507 = vmatpush1.bf16.msra.mxu0 %v786
    %1508 = vmatprep.subr.bf16.mxu0 %v795
    %1509 = vmatpush1.bf16.msra.mxu0 %v794
    %1510 = vmatprep.subr.bf16.mxu0 %v803
    %1511 = vmatpush1.bf16.msra.mxu0 %v802
    %1512 = vmatprep.subr.bf16.mxu0 %v811
    %1513 = vmatpush1.bf16.msra.mxu0 %v810
    %1514 = vmatprep.subr.bf16.mxu0 %v819
    %1515 = vmatpush1.bf16.msra.mxu0 %v818
    %1516 = vmatprep.subr.bf16.mxu0 %v827
    %1517 = vmatpush1.bf16.msra.mxu0 %v826
    %1518 = vmatprep.subr.bf16.mxu0 %v835
    %1519 = vmatpush1.bf16.msra.mxu0 %v834
    %1520 = vmatprep.mubr.bf16.mxu0 %v1301
    %1521 = vmatmul.mubr.bf16.gmra.mrb[0].mxu0 %v1300
    %v1522 = vpop.f32.mrb[0].mxu0
    %v1523 = vadd.f32 %v1482, %v1522
    %v1524 = vpop.f32.mrb[0].mxu0
    %v1525 = vadd.f32 %v1484, %v1524
    %v1526 = vpop.f32.mrb[0].mxu0
    %v1527 = vpop.f32.mrb[0].mxu0
    %1528 = vdwg.mxu0
    %1529 = vmatprep.subr.bf16.mxu0 %v843
    %1530 = vmatpush1.bf16.msra.mxu0 %v842
    %1531 = vmatprep.subr.bf16.mxu0 %v851
    %1532 = vmatpush1.bf16.msra.mxu0 %v850
    %1533 = vmatprep.subr.bf16.mxu0 %v859
    %1534 = vmatpush1.bf16.msra.mxu0 %v858
    %1535 = vmatprep.subr.bf16.mxu0 %v867
    %1536 = vmatpush1.bf16.msra.mxu0 %v866
    %1537 = vmatprep.subr.bf16.mxu0 %v875
    %1538 = vmatpush1.bf16.msra.mxu0 %v874
    %1539 = vmatprep.subr.bf16.mxu0 %v883
    %1540 = vmatpush1.bf16.msra.mxu0 %v882
    %1541 = vmatprep.subr.bf16.mxu0 %v891
    %1542 = vmatpush1.bf16.msra.mxu0 %v890
    %1543 = vmatprep.subr.bf16.mxu0 %v899
    %1544 = vmatpush1.bf16.msra.mxu0 %v898
    %1545 = vmatprep.subr.bf16.mxu0 %v907
    %1546 = vmatpush1.bf16.msra.mxu0 %v906
    %1547 = vmatprep.subr.bf16.mxu0 %v915
    %1548 = vmatpush1.bf16.msra.mxu0 %v914
    %1549 = vmatprep.subr.bf16.mxu0 %v923
    %1550 = vmatpush1.bf16.msra.mxu0 %v922
    %1551 = vmatprep.subr.bf16.mxu0 %v931
    %1552 = vmatpush1.bf16.msra.mxu0 %v930
    %1553 = vmatprep.subr.bf16.mxu0 %v939
    %1554 = vmatpush1.bf16.msra.mxu0 %v938
    %1555 = vmatprep.subr.bf16.mxu0 %v947
    %1556 = vmatpush1.bf16.msra.mxu0 %v946
    %1557 = vmatprep.subr.bf16.mxu0 %v955
    %1558 = vmatpush1.bf16.msra.mxu0 %v954
    %1559 = vmatprep.subr.bf16.mxu0 %v963
    %1560 = vmatpush1.bf16.msra.mxu0 %v962
    %1561 = vmatprep.mubr.bf16.mxu0 %v1303
    %1562 = vmatmul.mubr.bf16.gmra.mrb[0].mxu0 %v1302
    %v1563 = vpop.f32.mrb[0].mxu0
    %v1564 = vadd.f32 %v1523, %v1563
    %v1565 = vpop.f32.mrb[0].mxu0
    %v1566 = vadd.f32 %v1525, %v1565
    %v1567 = vpop.f32.mrb[0].mxu0
    %v1568 = vpop.f32.mrb[0].mxu0
    %1569 = vdwg.mxu0
    %1570 = vmatprep.subr.bf16.mxu0 %v971
    %1571 = vmatpush1.bf16.msra.mxu0 %v970
    %1572 = vmatprep.subr.bf16.mxu0 %v979
    %1573 = vmatpush1.bf16.msra.mxu0 %v978
    %1574 = vmatprep.subr.bf16.mxu0 %v987
    %1575 = vmatpush1.bf16.msra.mxu0 %v986
    %1576 = vmatprep.subr.bf16.mxu0 %v995
    %1577 = vmatpush1.bf16.msra.mxu0 %v994
    %1578 = vmatprep.subr.bf16.mxu0 %v1003
    %1579 = vmatpush1.bf16.msra.mxu0 %v1002
    %1580 = vmatprep.subr.bf16.mxu0 %v1011
    %1581 = vmatpush1.bf16.msra.mxu0 %v1010
    %1582 = vmatprep.subr.bf16.mxu0 %v1019
    %1583 = vmatpush1.bf16.msra.mxu0 %v1018
    %1584 = vmatprep.subr.bf16.mxu0 %v1027
    %1585 = vmatpush1.bf16.msra.mxu0 %v1026
    %1586 = vmatprep.subr.bf16.mxu0 %v1035
    %1587 = vmatpush1.bf16.msra.mxu0 %v1034
    %1588 = vmatprep.subr.bf16.mxu0 %v1043
    %1589 = vmatpush1.bf16.msra.mxu0 %v1042
    %1590 = vmatprep.subr.bf16.mxu0 %v1051
    %1591 = vmatpush1.bf16.msra.mxu0 %v1050
    %1592 = vmatprep.subr.bf16.mxu0 %v1059
    %1593 = vmatpush1.bf16.msra.mxu0 %v1058
    %1594 = vmatprep.subr.bf16.mxu0 %v1067
    %1595 = vmatpush1.bf16.msra.mxu0 %v1066
    %1596 = vmatprep.subr.bf16.mxu0 %v1075
    %1597 = vmatpush1.bf16.msra.mxu0 %v1074
    %1598 = vmatprep.subr.bf16.mxu0 %v1083
    %1599 = vmatpush1.bf16.msra.mxu0 %v1082
    %1600 = vmatprep.subr.bf16.mxu0 %v1091
    %1601 = vmatpush1.bf16.msra.mxu0 %v1090
    %1602 = vmatprep.mubr.bf16.mxu0 %v1305
    %1603 = vmatmul.mubr.bf16.gmra.mrb[0].mxu0 %v1304
    %v1604 = vpop.f32.mrb[0].mxu0
    %v1605 = vadd.f32 %v1564, %v1604
    %v1606 = vpop.f32.mrb[0].mxu0
    %v1607 = vadd.f32 %v1566, %v1606
    %v1608 = vpop.f32.mrb[0].mxu0
    %v1609 = vpop.f32.mrb[0].mxu0
    %1610 = vdwg.mxu0
    %1611 = vmatprep.subr.bf16.mxu0 %v1099
    %1612 = vmatpush1.bf16.msra.mxu0 %v1098
    %1613 = vmatprep.subr.bf16.mxu0 %v1107
    %1614 = vmatpush1.bf16.msra.mxu0 %v1106
    %1615 = vmatprep.subr.bf16.mxu0 %v1115
    %1616 = vmatpush1.bf16.msra.mxu0 %v1114
    %1617 = vmatprep.subr.bf16.mxu0 %v1123
    %1618 = vmatpush1.bf16.msra.mxu0 %v1122
    %1619 = vmatprep.subr.bf16.mxu0 %v1131
    %1620 = vmatpush1.bf16.msra.mxu0 %v1130
    %1621 = vmatprep.subr.bf16.mxu0 %v1139
    %1622 = vmatpush1.bf16.msra.mxu0 %v1138
    %1623 = vmatprep.subr.bf16.mxu0 %v1147
    %1624 = vmatpush1.bf16.msra.mxu0 %v1146
    %1625 = vmatprep.subr.bf16.mxu0 %v1155
    %1626 = vmatpush1.bf16.msra.mxu0 %v1154
    %1627 = vmatprep.subr.bf16.mxu0 %v1163
    %1628 = vmatpush1.bf16.msra.mxu0 %v1162
    %1629 = vmatprep.subr.bf16.mxu0 %v1171
    %1630 = vmatpush1.bf16.msra.mxu0 %v1170
    %1631 = vmatprep.subr.bf16.mxu0 %v1179
    %1632 = vmatpush1.bf16.msra.mxu0 %v1178
    %1633 = vmatprep.subr.bf16.mxu0 %v1187
    %1634 = vmatpush1.bf16.msra.mxu0 %v1186
    %1635 = vmatprep.subr.bf16.mxu0 %v1195
    %1636 = vmatpush1.bf16.msra.mxu0 %v1194
    %1637 = vmatprep.subr.bf16.mxu0 %v1203
    %1638 = vmatpush1.bf16.msra.mxu0 %v1202
    %1639 = vmatprep.subr.bf16.mxu0 %v1211
    %1640 = vmatpush1.bf16.msra.mxu0 %v1210
    %1641 = vmatprep.subr.bf16.mxu0 %v1219
    %1642 = vmatpush1.bf16.msra.mxu0 %v1218
    %1643 = vmatprep.mubr.bf16.mxu0 %v1307
    %1644 = vmatmul.mubr.bf16.gmra.mrb[0].mxu0 %v1306
    %v1645 = vpop.f32.mrb[0].mxu0
    %v1646 = vadd.f32 %v1605, %v1645
    %v1647 = vpop.f32.mrb[0].mxu0
    %v1648 = vadd.f32 %v1607, %v1647
    %v1649 = vpop.f32.mrb[0].mxu0
    %v1650 = vpop.f32.mrb[0].mxu0
    %1651 = vdwg.mxu0
    %1652 = vmatprep.subr.bf16.mxu0 %v205
    %1653 = vmatpush1.bf16.msra.mxu0 %v204
    %1654 = vmatprep.subr.bf16.mxu0 %v213
    %1655 = vmatpush1.bf16.msra.mxu0 %v212
    %1656 = vmatprep.subr.bf16.mxu0 %v221
    %1657 = vmatpush1.bf16.msra.mxu0 %v220
    %1658 = vmatprep.subr.bf16.mxu0 %v229
    %1659 = vmatpush1.bf16.msra.mxu0 %v228
    %1660 = vmatprep.subr.bf16.mxu0 %v237
    %1661 = vmatpush1.bf16.msra.mxu0 %v236
    %1662 = vmatprep.subr.bf16.mxu0 %v245
    %1663 = vmatpush1.bf16.msra.mxu0 %v244
    %1664 = vmatprep.subr.bf16.mxu0 %v253
    %1665 = vmatpush1.bf16.msra.mxu0 %v252
    %1666 = vmatprep.subr.bf16.mxu0 %v261
    %1667 = vmatpush1.bf16.msra.mxu0 %v260
    %1668 = vmatprep.subr.bf16.mxu0 %v269
    %1669 = vmatpush1.bf16.msra.mxu0 %v268
    %1670 = vmatprep.subr.bf16.mxu0 %v277
    %1671 = vmatpush1.bf16.msra.mxu0 %v276
    %1672 = vmatprep.subr.bf16.mxu0 %v285
    %1673 = vmatpush1.bf16.msra.mxu0 %v284
    %1674 = vmatprep.subr.bf16.mxu0 %v293
    %1675 = vmatpush1.bf16.msra.mxu0 %v292
    %1676 = vmatprep.subr.bf16.mxu0 %v301
    %1677 = vmatpush1.bf16.msra.mxu0 %v300
    %1678 = vmatprep.subr.bf16.mxu0 %v309
    %1679 = vmatpush1.bf16.msra.mxu0 %v308
    %1680 = vmatprep.subr.bf16.mxu0 %v317
    %1681 = vmatpush1.bf16.msra.mxu0 %v316
    %1682 = vmatprep.subr.bf16.mxu0 %v325
    %1683 = vmatpush1.bf16.msra.mxu0 %v324
    %1684 = vmatprep.mubr.bf16.mxu0 %v1293
    %1685 = vmatmul.mubr.bf16.gmra.mrb[0].mxu0 %v1292
    %v1686 = vpop.f32.mrb[0].mxu0
    %v1687 = vadd.f32 %v1239, %v1686
    %v1688 = vpop.f32.mrb[0].mxu0
    %v1689 = vadd.f32 %v1243, %v1688
    %v1690 = vpop.f32.mrb[0].mxu0
    %v1691 = vpop.f32.mrb[0].mxu0
    %1692 = vdwg.mxu0
    %1693 = vmatprep.subr.bf16.mxu0 %v333
    %1694 = vmatpush1.bf16.msra.mxu0 %v332
    %1695 = vmatprep.subr.bf16.mxu0 %v341
    %1696 = vmatpush1.bf16.msra.mxu0 %v340
    %1697 = vmatprep.subr.bf16.mxu0 %v349
    %1698 = vmatpush1.bf16.msra.mxu0 %v348
    %1699 = vmatprep.subr.bf16.mxu0 %v357
    %1700 = vmatpush1.bf16.msra.mxu0 %v356
    %1701 = vmatprep.subr.bf16.mxu0 %v365
    %1702 = vmatpush1.bf16.msra.mxu0 %v364
    %1703 = vmatprep.subr.bf16.mxu0 %v373
    %1704 = vmatpush1.bf16.msra.mxu0 %v372
    %1705 = vmatprep.subr.bf16.mxu0 %v381
    %1706 = vmatpush1.bf16.msra.mxu0 %v380
    %1707 = vmatprep.subr.bf16.mxu0 %v389
    %1708 = vmatpush1.bf16.msra.mxu0 %v388
    %1709 = vmatprep.subr.bf16.mxu0 %v397
    %1710 = vmatpush1.bf16.msra.mxu0 %v396
    %1711 = vmatprep.subr.bf16.mxu0 %v405
    %1712 = vmatpush1.bf16.msra.mxu0 %v404
    %1713 = vmatprep.subr.bf16.mxu0 %v413
    %1714 = vmatpush1.bf16.msra.mxu0 %v412
    %1715 = vmatprep.subr.bf16.mxu0 %v421
    %1716 = vmatpush1.bf16.msra.mxu0 %v420
    %1717 = vmatprep.subr.bf16.mxu0 %v429
    %1718 = vmatpush1.bf16.msra.mxu0 %v428
    %1719 = vmatprep.subr.bf16.mxu0 %v437
    %1720 = vmatpush1.bf16.msra.mxu0 %v436
    %1721 = vmatprep.subr.bf16.mxu0 %v445
    %1722 = vmatpush1.bf16.msra.mxu0 %v444
    %1723 = vmatprep.subr.bf16.mxu0 %v453
    %1724 = vmatpush1.bf16.msra.mxu0 %v452
    %1725 = vmatprep.mubr.bf16.mxu0 %v1295
    %1726 = vmatmul.mubr.bf16.gmra.mrb[0].mxu0 %v1294
    %v1727 = vpop.f32.mrb[0].mxu0
    %v1728 = vadd.f32 %v1687, %v1727
    %v1729 = vpop.f32.mrb[0].mxu0
    %v1730 = vadd.f32 %v1689, %v1729
    %v1731 = vpop.f32.mrb[0].mxu0
    %v1732 = vpop.f32.mrb[0].mxu0
    %1733 = vdwg.mxu0
    %1734 = vmatprep.subr.bf16.mxu0 %v461
    %1735 = vmatpush1.bf16.msra.mxu0 %v460
    %1736 = vmatprep.subr.bf16.mxu0 %v469
    %1737 = vmatpush1.bf16.msra.mxu0 %v468
    %1738 = vmatprep.subr.bf16.mxu0 %v477
    %1739 = vmatpush1.bf16.msra.mxu0 %v476
    %1740 = vmatprep.subr.bf16.mxu0 %v485
    %1741 = vmatpush1.bf16.msra.mxu0 %v484
    %1742 = vmatprep.subr.bf16.mxu0 %v493
    %1743 = vmatpush1.bf16.msra.mxu0 %v492
    %1744 = vmatprep.subr.bf16.mxu0 %v501
    %1745 = vmatpush1.bf16.msra.mxu0 %v500
    %1746 = vmatprep.subr.bf16.mxu0 %v509
    %1747 = vmatpush1.bf16.msra.mxu0 %v508
    %1748 = vmatprep.subr.bf16.mxu0 %v517
    %1749 = vmatpush1.bf16.msra.mxu0 %v516
    %1750 = vmatprep.subr.bf16.mxu0 %v525
    %1751 = vmatpush1.bf16.msra.mxu0 %v524
    %1752 = vmatprep.subr.bf16.mxu0 %v533
    %1753 = vmatpush1.bf16.msra.mxu0 %v532
    %1754 = vmatprep.subr.bf16.mxu0 %v541
    %1755 = vmatpush1.bf16.msra.mxu0 %v540
    %1756 = vmatprep.subr.bf16.mxu0 %v549
    %1757 = vmatpush1.bf16.msra.mxu0 %v548
    %1758 = vmatprep.subr.bf16.mxu0 %v557
    %1759 = vmatpush1.bf16.msra.mxu0 %v556
    %1760 = vmatprep.subr.bf16.mxu0 %v565
    %1761 = vmatpush1.bf16.msra.mxu0 %v564
    %1762 = vmatprep.subr.bf16.mxu0 %v573
    %1763 = vmatpush1.bf16.msra.mxu0 %v572
    %1764 = vmatprep.subr.bf16.mxu0 %v581
    %1765 = vmatpush1.bf16.msra.mxu0 %v580
    %1766 = vmatprep.mubr.bf16.mxu0 %v1297
    %1767 = vmatmul.mubr.bf16.gmra.mrb[0].mxu0 %v1296
    %v1768 = vpop.f32.mrb[0].mxu0
    %v1769 = vadd.f32 %v1728, %v1768
    %v1770 = vpop.f32.mrb[0].mxu0
    %v1771 = vadd.f32 %v1730, %v1770
    %v1772 = vpop.f32.mrb[0].mxu0
    %v1773 = vpop.f32.mrb[0].mxu0
    %1774 = vdwg.mxu0
    %1775 = vmatprep.subr.bf16.mxu0 %v589
    %1776 = vmatpush1.bf16.msra.mxu0 %v588
    %1777 = vmatprep.subr.bf16.mxu0 %v597
    %1778 = vmatpush1.bf16.msra.mxu0 %v596
    %1779 = vmatprep.subr.bf16.mxu0 %v605
    %1780 = vmatpush1.bf16.msra.mxu0 %v604
    %1781 = vmatprep.subr.bf16.mxu0 %v613
    %1782 = vmatpush1.bf16.msra.mxu0 %v612
    %1783 = vmatprep.subr.bf16.mxu0 %v621
    %1784 = vmatpush1.bf16.msra.mxu0 %v620
    %1785 = vmatprep.subr.bf16.mxu0 %v629
    %1786 = vmatpush1.bf16.msra.mxu0 %v628
    %1787 = vmatprep.subr.bf16.mxu0 %v637
    %1788 = vmatpush1.bf16.msra.mxu0 %v636
    %1789 = vmatprep.subr.bf16.mxu0 %v645
    %1790 = vmatpush1.bf16.msra.mxu0 %v644
    %1791 = vmatprep.subr.bf16.mxu0 %v653
    %1792 = vmatpush1.bf16.msra.mxu0 %v652
    %1793 = vmatprep.subr.bf16.mxu0 %v661
    %1794 = vmatpush1.bf16.msra.mxu0 %v660
    %1795 = vmatprep.subr.bf16.mxu0 %v669
    %1796 = vmatpush1.bf16.msra.mxu0 %v668
    %1797 = vmatprep.subr.bf16.mxu0 %v677
    %1798 = vmatpush1.bf16.msra.mxu0 %v676
    %1799 = vmatprep.subr.bf16.mxu0 %v685
    %1800 = vmatpush1.bf16.msra.mxu0 %v684
    %1801 = vmatprep.subr.bf16.mxu0 %v693
    %1802 = vmatpush1.bf16.msra.mxu0 %v692
    %1803 = vmatprep.subr.bf16.mxu0 %v701
    %1804 = vmatpush1.bf16.msra.mxu0 %v700
    %1805 = vmatprep.subr.bf16.mxu0 %v709
    %1806 = vmatpush1.bf16.msra.mxu0 %v708
    %1807 = vmatprep.mubr.bf16.mxu0 %v1299
    %1808 = vmatmul.mubr.bf16.gmra.mrb[0].mxu0 %v1298
    %v1809 = vpop.f32.mrb[0].mxu0
    %v1810 = vadd.f32 %v1769, %v1809
    %v1811 = vpop.f32.mrb[0].mxu0
    %v1812 = vadd.f32 %v1771, %v1811
    %v1813 = vpop.f32.mrb[0].mxu0
    %v1814 = vpop.f32.mrb[0].mxu0
    %1815 = vdwg.mxu0
    %1816 = vmatprep.subr.bf16.mxu0 %v717
    %1817 = vmatpush1.bf16.msra.mxu0 %v716
    %1818 = vmatprep.subr.bf16.mxu0 %v725
    %1819 = vmatpush1.bf16.msra.mxu0 %v724
    %1820 = vmatprep.subr.bf16.mxu0 %v733
    %1821 = vmatpush1.bf16.msra.mxu0 %v732
    %1822 = vmatprep.subr.bf16.mxu0 %v741
    %1823 = vmatpush1.bf16.msra.mxu0 %v740
    %1824 = vmatprep.subr.bf16.mxu0 %v749
    %1825 = vmatpush1.bf16.msra.mxu0 %v748
    %1826 = vmatprep.subr.bf16.mxu0 %v757
    %1827 = vmatpush1.bf16.msra.mxu0 %v756
    %1828 = vmatprep.subr.bf16.mxu0 %v765
    %1829 = vmatpush1.bf16.msra.mxu0 %v764
    %1830 = vmatprep.subr.bf16.mxu0 %v773
    %1831 = vmatpush1.bf16.msra.mxu0 %v772
    %1832 = vmatprep.subr.bf16.mxu0 %v781
    %1833 = vmatpush1.bf16.msra.mxu0 %v780
    %1834 = vmatprep.subr.bf16.mxu0 %v789
    %1835 = vmatpush1.bf16.msra.mxu0 %v788
    %1836 = vmatprep.subr.bf16.mxu0 %v797
    %1837 = vmatpush1.bf16.msra.mxu0 %v796
    %1838 = vmatprep.subr.bf16.mxu0 %v805
    %1839 = vmatpush1.bf16.msra.mxu0 %v804
    %1840 = vmatprep.subr.bf16.mxu0 %v813
    %1841 = vmatpush1.bf16.msra.mxu0 %v812
    %1842 = vmatprep.subr.bf16.mxu0 %v821
    %1843 = vmatpush1.bf16.msra.mxu0 %v820
    %1844 = vmatprep.subr.bf16.mxu0 %v829
    %1845 = vmatpush1.bf16.msra.mxu0 %v828
    %1846 = vmatprep.subr.bf16.mxu0 %v837
    %1847 = vmatpush1.bf16.msra.mxu0 %v836
    %1848 = vmatprep.mubr.bf16.mxu0 %v1301
    %1849 = vmatmul.mubr.bf16.gmra.mrb[0].mxu0 %v1300
    %v1850 = vpop.f32.mrb[0].mxu0
    %v1851 = vadd.f32 %v1810, %v1850
    %v1852 = vpop.f32.mrb[0].mxu0
    %v1853 = vadd.f32 %v1812, %v1852
    %v1854 = vpop.f32.mrb[0].mxu0
    %v1855 = vpop.f32.mrb[0].mxu0
    %1856 = vdwg.mxu0
    %1857 = vmatprep.subr.bf16.mxu0 %v845
    %1858 = vmatpush1.bf16.msra.mxu0 %v844
    %1859 = vmatprep.subr.bf16.mxu0 %v853
    %1860 = vmatpush1.bf16.msra.mxu0 %v852
    %1861 = vmatprep.subr.bf16.mxu0 %v861
    %1862 = vmatpush1.bf16.msra.mxu0 %v860
    %1863 = vmatprep.subr.bf16.mxu0 %v869
    %1864 = vmatpush1.bf16.msra.mxu0 %v868
    %1865 = vmatprep.subr.bf16.mxu0 %v877
    %1866 = vmatpush1.bf16.msra.mxu0 %v876
    %1867 = vmatprep.subr.bf16.mxu0 %v885
    %1868 = vmatpush1.bf16.msra.mxu0 %v884
    %1869 = vmatprep.subr.bf16.mxu0 %v893
    %1870 = vmatpush1.bf16.msra.mxu0 %v892
    %1871 = vmatprep.subr.bf16.mxu0 %v901
    %1872 = vmatpush1.bf16.msra.mxu0 %v900
    %1873 = vmatprep.subr.bf16.mxu0 %v909
    %1874 = vmatpush1.bf16.msra.mxu0 %v908
    %1875 = vmatprep.subr.bf16.mxu0 %v917
    %1876 = vmatpush1.bf16.msra.mxu0 %v916
    %1877 = vmatprep.subr.bf16.mxu0 %v925
    %1878 = vmatpush1.bf16.msra.mxu0 %v924
    %1879 = vmatprep.subr.bf16.mxu0 %v933
    %1880 = vmatpush1.bf16.msra.mxu0 %v932
    %1881 = vmatprep.subr.bf16.mxu0 %v941
    %1882 = vmatpush1.bf16.msra.mxu0 %v940
    %1883 = vmatprep.subr.bf16.mxu0 %v949
    %1884 = vmatpush1.bf16.msra.mxu0 %v948
    %1885 = vmatprep.subr.bf16.mxu0 %v957
    %1886 = vmatpush1.bf16.msra.mxu0 %v956
    %1887 = vmatprep.subr.bf16.mxu0 %v965
    %1888 = vmatpush1.bf16.msra.mxu0 %v964
    %1889 = vmatprep.mubr.bf16.mxu0 %v1303
    %1890 = vmatmul.mubr.bf16.gmra.mrb[0].mxu0 %v1302
    %v1891 = vpop.f32.mrb[0].mxu0
    %v1892 = vadd.f32 %v1851, %v1891
    %v1893 = vpop.f32.mrb[0].mxu0
    %v1894 = vadd.f32 %v1853, %v1893
    %v1895 = vpop.f32.mrb[0].mxu0
    %v1896 = vpop.f32.mrb[0].mxu0
    %1897 = vdwg.mxu0
    %1898 = vmatprep.subr.bf16.mxu0 %v973
    %1899 = vmatpush1.bf16.msra.mxu0 %v972
    %1900 = vmatprep.subr.bf16.mxu0 %v981
    %1901 = vmatpush1.bf16.msra.mxu0 %v980
    %1902 = vmatprep.subr.bf16.mxu0 %v989
    %1903 = vmatpush1.bf16.msra.mxu0 %v988
    %1904 = vmatprep.subr.bf16.mxu0 %v997
    %1905 = vmatpush1.bf16.msra.mxu0 %v996
    %1906 = vmatprep.subr.bf16.mxu0 %v1005
    %1907 = vmatpush1.bf16.msra.mxu0 %v1004
    %1908 = vmatprep.subr.bf16.mxu0 %v1013
    %1909 = vmatpush1.bf16.msra.mxu0 %v1012
    %1910 = vmatprep.subr.bf16.mxu0 %v1021
    %1911 = vmatpush1.bf16.msra.mxu0 %v1020
    %1912 = vmatprep.subr.bf16.mxu0 %v1029
    %1913 = vmatpush1.bf16.msra.mxu0 %v1028
    %1914 = vmatprep.subr.bf16.mxu0 %v1037
    %1915 = vmatpush1.bf16.msra.mxu0 %v1036
    %1916 = vmatprep.subr.bf16.mxu0 %v1045
    %1917 = vmatpush1.bf16.msra.mxu0 %v1044
    %1918 = vmatprep.subr.bf16.mxu0 %v1053
    %1919 = vmatpush1.bf16.msra.mxu0 %v1052
    %1920 = vmatprep.subr.bf16.mxu0 %v1061
    %1921 = vmatpush1.bf16.msra.mxu0 %v1060
    %1922 = vmatprep.subr.bf16.mxu0 %v1069
    %1923 = vmatpush1.bf16.msra.mxu0 %v1068
    %1924 = vmatprep.subr.bf16.mxu0 %v1077
    %1925 = vmatpush1.bf16.msra.mxu0 %v1076
    %1926 = vmatprep.subr.bf16.mxu0 %v1085
    %1927 = vmatpush1.bf16.msra.mxu0 %v1084
    %1928 = vmatprep.subr.bf16.mxu0 %v1093
    %1929 = vmatpush1.bf16.msra.mxu0 %v1092
    %1930 = vmatprep.mubr.bf16.mxu0 %v1305
    %1931 = vmatmul.mubr.bf16.gmra.mrb[0].mxu0 %v1304
    %v1932 = vpop.f32.mrb[0].mxu0
    %v1933 = vadd.f32 %v1892, %v1932
    %v1934 = vpop.f32.mrb[0].mxu0
    %v1935 = vadd.f32 %v1894, %v1934
    %v1936 = vpop.f32.mrb[0].mxu0
    %v1937 = vpop.f32.mrb[0].mxu0
    %1938 = vdwg.mxu0
    %1939 = vmatprep.subr.bf16.mxu0 %v1101
    %1940 = vmatpush1.bf16.msra.mxu0 %v1100
    %1941 = vmatprep.subr.bf16.mxu0 %v1109
    %1942 = vmatpush1.bf16.msra.mxu0 %v1108
    %1943 = vmatprep.subr.bf16.mxu0 %v1117
    %1944 = vmatpush1.bf16.msra.mxu0 %v1116
    %1945 = vmatprep.subr.bf16.mxu0 %v1125
    %1946 = vmatpush1.bf16.msra.mxu0 %v1124
    %1947 = vmatprep.subr.bf16.mxu0 %v1133
    %1948 = vmatpush1.bf16.msra.mxu0 %v1132
    %1949 = vmatprep.subr.bf16.mxu0 %v1141
    %1950 = vmatpush1.bf16.msra.mxu0 %v1140
    %1951 = vmatprep.subr.bf16.mxu0 %v1149
    %1952 = vmatpush1.bf16.msra.mxu0 %v1148
    %1953 = vmatprep.subr.bf16.mxu0 %v1157
    %1954 = vmatpush1.bf16.msra.mxu0 %v1156
    %1955 = vmatprep.subr.bf16.mxu0 %v1165
    %1956 = vmatpush1.bf16.msra.mxu0 %v1164
    %1957 = vmatprep.subr.bf16.mxu0 %v1173
    %1958 = vmatpush1.bf16.msra.mxu0 %v1172
    %1959 = vmatprep.subr.bf16.mxu0 %v1181
    %1960 = vmatpush1.bf16.msra.mxu0 %v1180
    %1961 = vmatprep.subr.bf16.mxu0 %v1189
    %1962 = vmatpush1.bf16.msra.mxu0 %v1188
    %1963 = vmatprep.subr.bf16.mxu0 %v1197
    %1964 = vmatpush1.bf16.msra.mxu0 %v1196
    %1965 = vmatprep.subr.bf16.mxu0 %v1205
    %1966 = vmatpush1.bf16.msra.mxu0 %v1204
    %1967 = vmatprep.subr.bf16.mxu0 %v1213
    %1968 = vmatpush1.bf16.msra.mxu0 %v1212
    %1969 = vmatprep.subr.bf16.mxu0 %v1221
    %1970 = vmatpush1.bf16.msra.mxu0 %v1220
    %1971 = vmatprep.mubr.bf16.mxu0 %v1307
    %1972 = vmatmul.mubr.bf16.gmra.mrb[0].mxu0 %v1306
    %v1973 = vpop.f32.mrb[0].mxu0
    %v1974 = vadd.f32 %v1933, %v1973
    %v1975 = vpop.f32.mrb[0].mxu0
    %v1976 = vadd.f32 %v1935, %v1975
    %v1977 = vpop.f32.mrb[0].mxu0
    %v1978 = vpop.f32.mrb[0].mxu0
    %1979 = vdwg.mxu0
    %1980 = vmatprep.subr.bf16.mxu0 %v207
    %1981 = vmatpush1.bf16.msra.mxu0 %v206
    %1982 = vmatprep.subr.bf16.mxu0 %v215
    %1983 = vmatpush1.bf16.msra.mxu0 %v214
    %1984 = vmatprep.subr.bf16.mxu0 %v223
    %1985 = vmatpush1.bf16.msra.mxu0 %v222
    %1986 = vmatprep.subr.bf16.mxu0 %v231
    %1987 = vmatpush1.bf16.msra.mxu0 %v230
    %1988 = vmatprep.subr.bf16.mxu0 %v239
    %1989 = vmatpush1.bf16.msra.mxu0 %v238
    %1990 = vmatprep.subr.bf16.mxu0 %v247
    %1991 = vmatpush1.bf16.msra.mxu0 %v246
    %1992 = vmatprep.subr.bf16.mxu0 %v255
    %1993 = vmatpush1.bf16.msra.mxu0 %v254
    %1994 = vmatprep.subr.bf16.mxu0 %v263
    %1995 = vmatpush1.bf16.msra.mxu0 %v262
    %1996 = vmatprep.subr.bf16.mxu0 %v271
    %1997 = vmatpush1.bf16.msra.mxu0 %v270
    %1998 = vmatprep.subr.bf16.mxu0 %v279
    %1999 = vmatpush1.bf16.msra.mxu0 %v278
    %2000 = vmatprep.subr.bf16.mxu0 %v287
    %2001 = vmatpush1.bf16.msra.mxu0 %v286
    %2002 = vmatprep.subr.bf16.mxu0 %v295
    %2003 = vmatpush1.bf16.msra.mxu0 %v294
    %2004 = vmatprep.subr.bf16.mxu0 %v303
    %2005 = vmatpush1.bf16.msra.mxu0 %v302
    %2006 = vmatprep.subr.bf16.mxu0 %v311
    %2007 = vmatpush1.bf16.msra.mxu0 %v310
    %2008 = vmatprep.subr.bf16.mxu0 %v319
    %2009 = vmatpush1.bf16.msra.mxu0 %v318
    %2010 = vmatprep.subr.bf16.mxu0 %v327
    %2011 = vmatpush1.bf16.msra.mxu0 %v326
    %2012 = vmatprep.mubr.bf16.mxu0 %v1293
    %2013 = vmatmul.mubr.bf16.gmra.mrb[0].mxu0 %v1292
    %v2014 = vpop.f32.mrb[0].mxu0
    %v2015 = vadd.f32 %v1247, %v2014
    %v2016 = vpop.f32.mrb[0].mxu0
    %v2017 = vadd.f32 %v1251, %v2016
    %v2018 = vpop.f32.mrb[0].mxu0
    %v2019 = vpop.f32.mrb[0].mxu0
    %2020 = vdwg.mxu0
    %2021 = vmatprep.subr.bf16.mxu0 %v335
    %2022 = vmatpush1.bf16.msra.mxu0 %v334
    %2023 = vmatprep.subr.bf16.mxu0 %v343
    %2024 = vmatpush1.bf16.msra.mxu0 %v342
    %2025 = vmatprep.subr.bf16.mxu0 %v351
    %2026 = vmatpush1.bf16.msra.mxu0 %v350
    %2027 = vmatprep.subr.bf16.mxu0 %v359
    %2028 = vmatpush1.bf16.msra.mxu0 %v358
    %2029 = vmatprep.subr.bf16.mxu0 %v367
    %2030 = vmatpush1.bf16.msra.mxu0 %v366
    %2031 = vmatprep.subr.bf16.mxu0 %v375
    %2032 = vmatpush1.bf16.msra.mxu0 %v374
    %2033 = vmatprep.subr.bf16.mxu0 %v383
    %2034 = vmatpush1.bf16.msra.mxu0 %v382
    %2035 = vmatprep.subr.bf16.mxu0 %v391
    %2036 = vmatpush1.bf16.msra.mxu0 %v390
    %2037 = vmatprep.subr.bf16.mxu0 %v399
    %2038 = vmatpush1.bf16.msra.mxu0 %v398
    %2039 = vmatprep.subr.bf16.mxu0 %v407
    %2040 = vmatpush1.bf16.msra.mxu0 %v406
    %2041 = vmatprep.subr.bf16.mxu0 %v415
    %2042 = vmatpush1.bf16.msra.mxu0 %v414
    %2043 = vmatprep.subr.bf16.mxu0 %v423
    %2044 = vmatpush1.bf16.msra.mxu0 %v422
    %2045 = vmatprep.subr.bf16.mxu0 %v431
    %2046 = vmatpush1.bf16.msra.mxu0 %v430
    %2047 = vmatprep.subr.bf16.mxu0 %v439
    %2048 = vmatpush1.bf16.msra.mxu0 %v438
    %2049 = vmatprep.subr.bf16.mxu0 %v447
    %2050 = vmatpush1.bf16.msra.mxu0 %v446
    %2051 = vmatprep.subr.bf16.mxu0 %v455
    %2052 = vmatpush1.bf16.msra.mxu0 %v454
    %2053 = vmatprep.mubr.bf16.mxu0 %v1295
    %2054 = vmatmul.mubr.bf16.gmra.mrb[0].mxu0 %v1294
    %v2055 = vpop.f32.mrb[0].mxu0
    %v2056 = vadd.f32 %v2015, %v2055
    %v2057 = vpop.f32.mrb[0].mxu0
    %v2058 = vadd.f32 %v2017, %v2057
    %v2059 = vpop.f32.mrb[0].mxu0
    %v2060 = vpop.f32.mrb[0].mxu0
    %2061 = vdwg.mxu0
    %2062 = vmatprep.subr.bf16.mxu0 %v463
    %2063 = vmatpush1.bf16.msra.mxu0 %v462
    %2064 = vmatprep.subr.bf16.mxu0 %v471
    %2065 = vmatpush1.bf16.msra.mxu0 %v470
    %2066 = vmatprep.subr.bf16.mxu0 %v479
    %2067 = vmatpush1.bf16.msra.mxu0 %v478
    %2068 = vmatprep.subr.bf16.mxu0 %v487
    %2069 = vmatpush1.bf16.msra.mxu0 %v486
    %2070 = vmatprep.subr.bf16.mxu0 %v495
    %2071 = vmatpush1.bf16.msra.mxu0 %v494
    %2072 = vmatprep.subr.bf16.mxu0 %v503
    %2073 = vmatpush1.bf16.msra.mxu0 %v502
    %2074 = vmatprep.subr.bf16.mxu0 %v511
    %2075 = vmatpush1.bf16.msra.mxu0 %v510
    %2076 = vmatprep.subr.bf16.mxu0 %v519
    %2077 = vmatpush1.bf16.msra.mxu0 %v518
    %2078 = vmatprep.subr.bf16.mxu0 %v527
    %2079 = vmatpush1.bf16.msra.mxu0 %v526
    %2080 = vmatprep.subr.bf16.mxu0 %v535
    %2081 = vmatpush1.bf16.msra.mxu0 %v534
    %2082 = vmatprep.subr.bf16.mxu0 %v543
    %2083 = vmatpush1.bf16.msra.mxu0 %v542
    %2084 = vmatprep.subr.bf16.mxu0 %v551
    %2085 = vmatpush1.bf16.msra.mxu0 %v550
    %2086 = vmatprep.subr.bf16.mxu0 %v559
    %2087 = vmatpush1.bf16.msra.mxu0 %v558
    %2088 = vmatprep.subr.bf16.mxu0 %v567
    %2089 = vmatpush1.bf16.msra.mxu0 %v566
    %2090 = vmatprep.subr.bf16.mxu0 %v575
    %2091 = vmatpush1.bf16.msra.mxu0 %v574
    %2092 = vmatprep.subr.bf16.mxu0 %v583
    %2093 = vmatpush1.bf16.msra.mxu0 %v582
    %2094 = vmatprep.mubr.bf16.mxu0 %v1297
    %2095 = vmatmul.mubr.bf16.gmra.mrb[0].mxu0 %v1296
    %v2096 = vpop.f32.mrb[0].mxu0
    %v2097 = vadd.f32 %v2056, %v2096
    %v2098 = vpop.f32.mrb[0].mxu0
    %v2099 = vadd.f32 %v2058, %v2098
    %v2100 = vpop.f32.mrb[0].mxu0
    %v2101 = vpop.f32.mrb[0].mxu0
    %2102 = vdwg.mxu0
    %2103 = vmatprep.subr.bf16.mxu0 %v591
    %2104 = vmatpush1.bf16.msra.mxu0 %v590
    %2105 = vmatprep.subr.bf16.mxu0 %v599
    %2106 = vmatpush1.bf16.msra.mxu0 %v598
    %2107 = vmatprep.subr.bf16.mxu0 %v607
    %2108 = vmatpush1.bf16.msra.mxu0 %v606
    %2109 = vmatprep.subr.bf16.mxu0 %v615
    %2110 = vmatpush1.bf16.msra.mxu0 %v614
    %2111 = vmatprep.subr.bf16.mxu0 %v623
    %2112 = vmatpush1.bf16.msra.mxu0 %v622
    %2113 = vmatprep.subr.bf16.mxu0 %v631
    %2114 = vmatpush1.bf16.msra.mxu0 %v630
    %2115 = vmatprep.subr.bf16.mxu0 %v639
    %2116 = vmatpush1.bf16.msra.mxu0 %v638
    %2117 = vmatprep.subr.bf16.mxu0 %v647
    %2118 = vmatpush1.bf16.msra.mxu0 %v646
    %2119 = vmatprep.subr.bf16.mxu0 %v655
    %2120 = vmatpush1.bf16.msra.mxu0 %v654
    %2121 = vmatprep.subr.bf16.mxu0 %v663
    %2122 = vmatpush1.bf16.msra.mxu0 %v662
    %2123 = vmatprep.subr.bf16.mxu0 %v671
    %2124 = vmatpush1.bf16.msra.mxu0 %v670
    %2125 = vmatprep.subr.bf16.mxu0 %v679
    %2126 = vmatpush1.bf16.msra.mxu0 %v678
    %2127 = vmatprep.subr.bf16.mxu0 %v687
    %2128 = vmatpush1.bf16.msra.mxu0 %v686
    %2129 = vmatprep.subr.bf16.mxu0 %v695
    %2130 = vmatpush1.bf16.msra.mxu0 %v694
    %2131 = vmatprep.subr.bf16.mxu0 %v703
    %2132 = vmatpush1.bf16.msra.mxu0 %v702
    %2133 = vmatprep.subr.bf16.mxu0 %v711
    %2134 = vmatpush1.bf16.msra.mxu0 %v710
    %2135 = vmatprep.mubr.bf16.mxu0 %v1299
    %2136 = vmatmul.mubr.bf16.gmra.mrb[0].mxu0 %v1298
    %v2137 = vpop.f32.mrb[0].mxu0
    %v2138 = vadd.f32 %v2097, %v2137
    %v2139 = vpop.f32.mrb[0].mxu0
    %v2140 = vadd.f32 %v2099, %v2139
    %v2141 = vpop.f32.mrb[0].mxu0
    %v2142 = vpop.f32.mrb[0].mxu0
    %2143 = vdwg.mxu0
    %2144 = vmatprep.subr.bf16.mxu0 %v719
    %2145 = vmatpush1.bf16.msra.mxu0 %v718
    %2146 = vmatprep.subr.bf16.mxu0 %v727
    %2147 = vmatpush1.bf16.msra.mxu0 %v726
    %2148 = vmatprep.subr.bf16.mxu0 %v735
    %2149 = vmatpush1.bf16.msra.mxu0 %v734
    %2150 = vmatprep.subr.bf16.mxu0 %v743
    %2151 = vmatpush1.bf16.msra.mxu0 %v742
    %2152 = vmatprep.subr.bf16.mxu0 %v751
    %2153 = vmatpush1.bf16.msra.mxu0 %v750
    %2154 = vmatprep.subr.bf16.mxu0 %v759
    %2155 = vmatpush1.bf16.msra.mxu0 %v758
    %2156 = vmatprep.subr.bf16.mxu0 %v767
    %2157 = vmatpush1.bf16.msra.mxu0 %v766
    %2158 = vmatprep.subr.bf16.mxu0 %v775
    %2159 = vmatpush1.bf16.msra.mxu0 %v774
    %2160 = vmatprep.subr.bf16.mxu0 %v783
    %2161 = vmatpush1.bf16.msra.mxu0 %v782
    %2162 = vmatprep.subr.bf16.mxu0 %v791
    %2163 = vmatpush1.bf16.msra.mxu0 %v790
    %2164 = vmatprep.subr.bf16.mxu0 %v799
    %2165 = vmatpush1.bf16.msra.mxu0 %v798
    %2166 = vmatprep.subr.bf16.mxu0 %v807
    %2167 = vmatpush1.bf16.msra.mxu0 %v806
    %2168 = vmatprep.subr.bf16.mxu0 %v815
    %2169 = vmatpush1.bf16.msra.mxu0 %v814
    %2170 = vmatprep.subr.bf16.mxu0 %v823
    %2171 = vmatpush1.bf16.msra.mxu0 %v822
    %2172 = vmatprep.subr.bf16.mxu0 %v831
    %2173 = vmatpush1.bf16.msra.mxu0 %v830
    %2174 = vmatprep.subr.bf16.mxu0 %v839
    %2175 = vmatpush1.bf16.msra.mxu0 %v838
    %2176 = vmatprep.mubr.bf16.mxu0 %v1301
    %2177 = vmatmul.mubr.bf16.gmra.mrb[0].mxu0 %v1300
    %v2178 = vpop.f32.mrb[0].mxu0
    %v2179 = vadd.f32 %v2138, %v2178
    %v2180 = vpop.f32.mrb[0].mxu0
    %v2181 = vadd.f32 %v2140, %v2180
    %v2182 = vpop.f32.mrb[0].mxu0
    %v2183 = vpop.f32.mrb[0].mxu0
    %2184 = vdwg.mxu0
    %2185 = vmatprep.subr.bf16.mxu0 %v847
    %2186 = vmatpush1.bf16.msra.mxu0 %v846
    %2187 = vmatprep.subr.bf16.mxu0 %v855
    %2188 = vmatpush1.bf16.msra.mxu0 %v854
    %2189 = vmatprep.subr.bf16.mxu0 %v863
    %2190 = vmatpush1.bf16.msra.mxu0 %v862
    %2191 = vmatprep.subr.bf16.mxu0 %v871
    %2192 = vmatpush1.bf16.msra.mxu0 %v870
    %2193 = vmatprep.subr.bf16.mxu0 %v879
    %2194 = vmatpush1.bf16.msra.mxu0 %v878
    %2195 = vmatprep.subr.bf16.mxu0 %v887
    %2196 = vmatpush1.bf16.msra.mxu0 %v886
    %2197 = vmatprep.subr.bf16.mxu0 %v895
    %2198 = vmatpush1.bf16.msra.mxu0 %v894
    %2199 = vmatprep.subr.bf16.mxu0 %v903
    %2200 = vmatpush1.bf16.msra.mxu0 %v902
    %2201 = vmatprep.subr.bf16.mxu0 %v911
    %2202 = vmatpush1.bf16.msra.mxu0 %v910
    %2203 = vmatprep.subr.bf16.mxu0 %v919
    %2204 = vmatpush1.bf16.msra.mxu0 %v918
    %2205 = vmatprep.subr.bf16.mxu0 %v927
    %2206 = vmatpush1.bf16.msra.mxu0 %v926
    %2207 = vmatprep.subr.bf16.mxu0 %v935
    %2208 = vmatpush1.bf16.msra.mxu0 %v934
    %2209 = vmatprep.subr.bf16.mxu0 %v943
    %2210 = vmatpush1.bf16.msra.mxu0 %v942
    %2211 = vmatprep.subr.bf16.mxu0 %v951
    %2212 = vmatpush1.bf16.msra.mxu0 %v950
    %2213 = vmatprep.subr.bf16.mxu0 %v959
    %2214 = vmatpush1.bf16.msra.mxu0 %v958
    %2215 = vmatprep.subr.bf16.mxu0 %v967
    %2216 = vmatpush1.bf16.msra.mxu0 %v966
    %2217 = vmatprep.mubr.bf16.mxu0 %v1303
    %2218 = vmatmul.mubr.bf16.gmra.mrb[0].mxu0 %v1302
    %v2219 = vpop.f32.mrb[0].mxu0
    %v2220 = vadd.f32 %v2179, %v2219
    %v2221 = vpop.f32.mrb[0].mxu0
    %v2222 = vadd.f32 %v2181, %v2221
    %v2223 = vpop.f32.mrb[0].mxu0
    %v2224 = vpop.f32.mrb[0].mxu0
    %2225 = vdwg.mxu0
    %2226 = vmatprep.subr.bf16.mxu0 %v975
    %2227 = vmatpush1.bf16.msra.mxu0 %v974
    %2228 = vmatprep.subr.bf16.mxu0 %v983
    %2229 = vmatpush1.bf16.msra.mxu0 %v982
    %2230 = vmatprep.subr.bf16.mxu0 %v991
    %2231 = vmatpush1.bf16.msra.mxu0 %v990
    %2232 = vmatprep.subr.bf16.mxu0 %v999
    %2233 = vmatpush1.bf16.msra.mxu0 %v998
    %2234 = vmatprep.subr.bf16.mxu0 %v1007
    %2235 = vmatpush1.bf16.msra.mxu0 %v1006
    %2236 = vmatprep.subr.bf16.mxu0 %v1015
    %2237 = vmatpush1.bf16.msra.mxu0 %v1014
    %2238 = vmatprep.subr.bf16.mxu0 %v1023
    %2239 = vmatpush1.bf16.msra.mxu0 %v1022
    %2240 = vmatprep.subr.bf16.mxu0 %v1031
    %2241 = vmatpush1.bf16.msra.mxu0 %v1030
    %2242 = vmatprep.subr.bf16.mxu0 %v1039
    %2243 = vmatpush1.bf16.msra.mxu0 %v1038
    %2244 = vmatprep.subr.bf16.mxu0 %v1047
    %2245 = vmatpush1.bf16.msra.mxu0 %v1046
    %2246 = vmatprep.subr.bf16.mxu0 %v1055
    %2247 = vmatpush1.bf16.msra.mxu0 %v1054
    %2248 = vmatprep.subr.bf16.mxu0 %v1063
    %2249 = vmatpush1.bf16.msra.mxu0 %v1062
    %2250 = vmatprep.subr.bf16.mxu0 %v1071
    %2251 = vmatpush1.bf16.msra.mxu0 %v1070
    %2252 = vmatprep.subr.bf16.mxu0 %v1079
    %2253 = vmatpush1.bf16.msra.mxu0 %v1078
    %2254 = vmatprep.subr.bf16.mxu0 %v1087
    %2255 = vmatpush1.bf16.msra.mxu0 %v1086
    %2256 = vmatprep.subr.bf16.mxu0 %v1095
    %2257 = vmatpush1.bf16.msra.mxu0 %v1094
    %2258 = vmatprep.mubr.bf16.mxu0 %v1305
    %2259 = vmatmul.mubr.bf16.gmra.mrb[0].mxu0 %v1304
    %v2260 = vpop.f32.mrb[0].mxu0
    %v2261 = vadd.f32 %v2220, %v2260
    %v2262 = vpop.f32.mrb[0].mxu0
    %v2263 = vadd.f32 %v2222, %v2262
    %v2264 = vpop.f32.mrb[0].mxu0
    %v2265 = vpop.f32.mrb[0].mxu0
    %2266 = vdwg.mxu0
    %2267 = vmatprep.subr.bf16.mxu0 %v1103
    %2268 = vmatpush1.bf16.msra.mxu0 %v1102
    %2269 = vmatprep.subr.bf16.mxu0 %v1111
    %2270 = vmatpush1.bf16.msra.mxu0 %v1110
    %2271 = vmatprep.subr.bf16.mxu0 %v1119
    %2272 = vmatpush1.bf16.msra.mxu0 %v1118
    %2273 = vmatprep.subr.bf16.mxu0 %v1127
    %2274 = vmatpush1.bf16.msra.mxu0 %v1126
    %2275 = vmatprep.subr.bf16.mxu0 %v1135
    %2276 = vmatpush1.bf16.msra.mxu0 %v1134
    %2277 = vmatprep.subr.bf16.mxu0 %v1143
    %2278 = vmatpush1.bf16.msra.mxu0 %v1142
    %2279 = vmatprep.subr.bf16.mxu0 %v1151
    %2280 = vmatpush1.bf16.msra.mxu0 %v1150
    %2281 = vmatprep.subr.bf16.mxu0 %v1159
    %2282 = vmatpush1.bf16.msra.mxu0 %v1158
    %2283 = vmatprep.subr.bf16.mxu0 %v1167
    %2284 = vmatpush1.bf16.msra.mxu0 %v1166
    %2285 = vmatprep.subr.bf16.mxu0 %v1175
    %2286 = vmatpush1.bf16.msra.mxu0 %v1174
    %2287 = vmatprep.subr.bf16.mxu0 %v1183
    %2288 = vmatpush1.bf16.msra.mxu0 %v1182
    %2289 = vmatprep.subr.bf16.mxu0 %v1191
    %2290 = vmatpush1.bf16.msra.mxu0 %v1190
    %2291 = vmatprep.subr.bf16.mxu0 %v1199
    %2292 = vmatpush1.bf16.msra.mxu0 %v1198
    %2293 = vmatprep.subr.bf16.mxu0 %v1207
    %2294 = vmatpush1.bf16.msra.mxu0 %v1206
    %2295 = vmatprep.subr.bf16.mxu0 %v1215
    %2296 = vmatpush1.bf16.msra.mxu0 %v1214
    %2297 = vmatprep.subr.bf16.mxu0 %v1223
    %2298 = vmatpush1.bf16.msra.mxu0 %v1222
    %2299 = vmatprep.mubr.bf16.mxu0 %v1307
    %2300 = vmatmul.mubr.bf16.gmra.mrb[0].mxu0 %v1306
    %v2301 = vpop.f32.mrb[0].mxu0
    %v2302 = vadd.f32 %v2261, %v2301
    %v2303 = vpop.f32.mrb[0].mxu0
    %v2304 = vadd.f32 %v2263, %v2303
    %v2305 = vpop.f32.mrb[0].mxu0
    %v2306 = vpop.f32.mrb[0].mxu0
    %2307 = vdwg.mxu0
    %2308 = vmatprep.subr.bf16.mxu0 %v209
    %2309 = vmatpush1.bf16.msra.mxu0 %v208
    %2310 = vmatprep.subr.bf16.mxu0 %v217
    %2311 = vmatpush1.bf16.msra.mxu0 %v216
    %2312 = vmatprep.subr.bf16.mxu0 %v225
    %2313 = vmatpush1.bf16.msra.mxu0 %v224
    %2314 = vmatprep.subr.bf16.mxu0 %v233
    %2315 = vmatpush1.bf16.msra.mxu0 %v232
    %2316 = vmatprep.subr.bf16.mxu0 %v241
    %2317 = vmatpush1.bf16.msra.mxu0 %v240
    %2318 = vmatprep.subr.bf16.mxu0 %v249
    %2319 = vmatpush1.bf16.msra.mxu0 %v248
    %2320 = vmatprep.subr.bf16.mxu0 %v257
    %2321 = vmatpush1.bf16.msra.mxu0 %v256
    %2322 = vmatprep.subr.bf16.mxu0 %v265
    %2323 = vmatpush1.bf16.msra.mxu0 %v264
    %2324 = vmatprep.subr.bf16.mxu0 %v273
    %2325 = vmatpush1.bf16.msra.mxu0 %v272
    %2326 = vmatprep.subr.bf16.mxu0 %v281
    %2327 = vmatpush1.bf16.msra.mxu0 %v280
    %2328 = vmatprep.subr.bf16.mxu0 %v289
    %2329 = vmatpush1.bf16.msra.mxu0 %v288
    %2330 = vmatprep.subr.bf16.mxu0 %v297
    %2331 = vmatpush1.bf16.msra.mxu0 %v296
    %2332 = vmatprep.subr.bf16.mxu0 %v305
    %2333 = vmatpush1.bf16.msra.mxu0 %v304
    %2334 = vmatprep.subr.bf16.mxu0 %v313
    %2335 = vmatpush1.bf16.msra.mxu0 %v312
    %2336 = vmatprep.subr.bf16.mxu0 %v321
    %2337 = vmatpush1.bf16.msra.mxu0 %v320
    %2338 = vmatprep.subr.bf16.mxu0 %v329
    %2339 = vmatpush1.bf16.msra.mxu0 %v328
    %2340 = vmatprep.mubr.bf16.mxu0 %v1293
    %2341 = vmatmul.mubr.bf16.gmra.mrb[0].mxu0 %v1292
    %v2342 = vpop.f32.mrb[0].mxu0
    %v2343 = vadd.f32 %v1255, %v2342
    %v2344 = vpop.f32.mrb[0].mxu0
    %v2345 = vadd.f32 %v1259, %v2344
    %v2346 = vpop.f32.mrb[0].mxu0
    %v2347 = vpop.f32.mrb[0].mxu0
    %2348 = vdwg.mxu0
    %2349 = vmatprep.subr.bf16.mxu0 %v337
    %2350 = vmatpush1.bf16.msra.mxu0 %v336
    %2351 = vmatprep.subr.bf16.mxu0 %v345
    %2352 = vmatpush1.bf16.msra.mxu0 %v344
    %2353 = vmatprep.subr.bf16.mxu0 %v353
    %2354 = vmatpush1.bf16.msra.mxu0 %v352
    %2355 = vmatprep.subr.bf16.mxu0 %v361
    %2356 = vmatpush1.bf16.msra.mxu0 %v360
    %2357 = vmatprep.subr.bf16.mxu0 %v369
    %2358 = vmatpush1.bf16.msra.mxu0 %v368
    %2359 = vmatprep.subr.bf16.mxu0 %v377
    %2360 = vmatpush1.bf16.msra.mxu0 %v376
    %2361 = vmatprep.subr.bf16.mxu0 %v385
    %2362 = vmatpush1.bf16.msra.mxu0 %v384
    %2363 = vmatprep.subr.bf16.mxu0 %v393
    %2364 = vmatpush1.bf16.msra.mxu0 %v392
    %2365 = vmatprep.subr.bf16.mxu0 %v401
    %2366 = vmatpush1.bf16.msra.mxu0 %v400
    %2367 = vmatprep.subr.bf16.mxu0 %v409
    %2368 = vmatpush1.bf16.msra.mxu0 %v408
    %2369 = vmatprep.subr.bf16.mxu0 %v417
    %2370 = vmatpush1.bf16.msra.mxu0 %v416
    %2371 = vmatprep.subr.bf16.mxu0 %v425
    %2372 = vmatpush1.bf16.msra.mxu0 %v424
    %2373 = vmatprep.subr.bf16.mxu0 %v433
    %2374 = vmatpush1.bf16.msra.mxu0 %v432
    %2375 = vmatprep.subr.bf16.mxu0 %v441
    %2376 = vmatpush1.bf16.msra.mxu0 %v440
    %2377 = vmatprep.subr.bf16.mxu0 %v449
    %2378 = vmatpush1.bf16.msra.mxu0 %v448
    %2379 = vmatprep.subr.bf16.mxu0 %v457
    %2380 = vmatpush1.bf16.msra.mxu0 %v456
    %2381 = vmatprep.mubr.bf16.mxu0 %v1295
    %2382 = vmatmul.mubr.bf16.gmra.mrb[0].mxu0 %v1294
    %v2383 = vpop.f32.mrb[0].mxu0
    %v2384 = vadd.f32 %v2343, %v2383
    %v2385 = vpop.f32.mrb[0].mxu0
    %v2386 = vadd.f32 %v2345, %v2385
    %v2387 = vpop.f32.mrb[0].mxu0
    %v2388 = vpop.f32.mrb[0].mxu0
    %2389 = vdwg.mxu0
    %2390 = vmatprep.subr.bf16.mxu0 %v465
    %2391 = vmatpush1.bf16.msra.mxu0 %v464
    %2392 = vmatprep.subr.bf16.mxu0 %v473
    %2393 = vmatpush1.bf16.msra.mxu0 %v472
    %2394 = vmatprep.subr.bf16.mxu0 %v481
    %2395 = vmatpush1.bf16.msra.mxu0 %v480
    %2396 = vmatprep.subr.bf16.mxu0 %v489
    %2397 = vmatpush1.bf16.msra.mxu0 %v488
    %2398 = vmatprep.subr.bf16.mxu0 %v497
    %2399 = vmatpush1.bf16.msra.mxu0 %v496
    %2400 = vmatprep.subr.bf16.mxu0 %v505
    %2401 = vmatpush1.bf16.msra.mxu0 %v504
    %2402 = vmatprep.subr.bf16.mxu0 %v513
    %2403 = vmatpush1.bf16.msra.mxu0 %v512
    %2404 = vmatprep.subr.bf16.mxu0 %v521
    %2405 = vmatpush1.bf16.msra.mxu0 %v520
    %2406 = vmatprep.subr.bf16.mxu0 %v529
    %2407 = vmatpush1.bf16.msra.mxu0 %v528
    %2408 = vmatprep.subr.bf16.mxu0 %v537
    %2409 = vmatpush1.bf16.msra.mxu0 %v536
    %2410 = vmatprep.subr.bf16.mxu0 %v545
    %2411 = vmatpush1.bf16.msra.mxu0 %v544
    %2412 = vmatprep.subr.bf16.mxu0 %v553
    %2413 = vmatpush1.bf16.msra.mxu0 %v552
    %2414 = vmatprep.subr.bf16.mxu0 %v561
    %2415 = vmatpush1.bf16.msra.mxu0 %v560
    %2416 = vmatprep.subr.bf16.mxu0 %v569
    %2417 = vmatpush1.bf16.msra.mxu0 %v568
    %2418 = vmatprep.subr.bf16.mxu0 %v577
    %2419 = vmatpush1.bf16.msra.mxu0 %v576
    %2420 = vmatprep.subr.bf16.mxu0 %v585
    %2421 = vmatpush1.bf16.msra.mxu0 %v584
    %2422 = vmatprep.mubr.bf16.mxu0 %v1297
    %2423 = vmatmul.mubr.bf16.gmra.mrb[0].mxu0 %v1296
    %v2424 = vpop.f32.mrb[0].mxu0
    %v2425 = vadd.f32 %v2384, %v2424
    %v2426 = vpop.f32.mrb[0].mxu0
    %v2427 = vadd.f32 %v2386, %v2426
    %v2428 = vpop.f32.mrb[0].mxu0
    %v2429 = vpop.f32.mrb[0].mxu0
    %2430 = vdwg.mxu0
    %2431 = vmatprep.subr.bf16.mxu0 %v593
    %2432 = vmatpush1.bf16.msra.mxu0 %v592
    %2433 = vmatprep.subr.bf16.mxu0 %v601
    %2434 = vmatpush1.bf16.msra.mxu0 %v600
    %2435 = vmatprep.subr.bf16.mxu0 %v609
    %2436 = vmatpush1.bf16.msra.mxu0 %v608
    %2437 = vmatprep.subr.bf16.mxu0 %v617
    %2438 = vmatpush1.bf16.msra.mxu0 %v616
    %2439 = vmatprep.subr.bf16.mxu0 %v625
    %2440 = vmatpush1.bf16.msra.mxu0 %v624
    %2441 = vmatprep.subr.bf16.mxu0 %v633
    %2442 = vmatpush1.bf16.msra.mxu0 %v632
    %2443 = vmatprep.subr.bf16.mxu0 %v641
    %2444 = vmatpush1.bf16.msra.mxu0 %v640
    %2445 = vmatprep.subr.bf16.mxu0 %v649
    %2446 = vmatpush1.bf16.msra.mxu0 %v648
    %2447 = vmatprep.subr.bf16.mxu0 %v657
    %2448 = vmatpush1.bf16.msra.mxu0 %v656
    %2449 = vmatprep.subr.bf16.mxu0 %v665
    %2450 = vmatpush1.bf16.msra.mxu0 %v664
    %2451 = vmatprep.subr.bf16.mxu0 %v673
    %2452 = vmatpush1.bf16.msra.mxu0 %v672
    %2453 = vmatprep.subr.bf16.mxu0 %v681
    %2454 = vmatpush1.bf16.msra.mxu0 %v680
    %2455 = vmatprep.subr.bf16.mxu0 %v689
    %2456 = vmatpush1.bf16.msra.mxu0 %v688
    %2457 = vmatprep.subr.bf16.mxu0 %v697
    %2458 = vmatpush1.bf16.msra.mxu0 %v696
    %2459 = vmatprep.subr.bf16.mxu0 %v705
    %2460 = vmatpush1.bf16.msra.mxu0 %v704
    %2461 = vmatprep.subr.bf16.mxu0 %v713
    %2462 = vmatpush1.bf16.msra.mxu0 %v712
    %2463 = vmatprep.mubr.bf16.mxu0 %v1299
    %2464 = vmatmul.mubr.bf16.gmra.mrb[0].mxu0 %v1298
    %v2465 = vpop.f32.mrb[0].mxu0
    %v2466 = vadd.f32 %v2425, %v2465
    %v2467 = vpop.f32.mrb[0].mxu0
    %v2468 = vadd.f32 %v2427, %v2467
    %v2469 = vpop.f32.mrb[0].mxu0
    %v2470 = vpop.f32.mrb[0].mxu0
    %2471 = vdwg.mxu0
    %2472 = vmatprep.subr.bf16.mxu0 %v721
    %2473 = vmatpush1.bf16.msra.mxu0 %v720
    %2474 = vmatprep.subr.bf16.mxu0 %v729
    %2475 = vmatpush1.bf16.msra.mxu0 %v728
    %2476 = vmatprep.subr.bf16.mxu0 %v737
    %2477 = vmatpush1.bf16.msra.mxu0 %v736
    %2478 = vmatprep.subr.bf16.mxu0 %v745
    %2479 = vmatpush1.bf16.msra.mxu0 %v744
    %2480 = vmatprep.subr.bf16.mxu0 %v753
    %2481 = vmatpush1.bf16.msra.mxu0 %v752
    %2482 = vmatprep.subr.bf16.mxu0 %v761
    %2483 = vmatpush1.bf16.msra.mxu0 %v760
    %2484 = vmatprep.subr.bf16.mxu0 %v769
    %2485 = vmatpush1.bf16.msra.mxu0 %v768
    %2486 = vmatprep.subr.bf16.mxu0 %v777
    %2487 = vmatpush1.bf16.msra.mxu0 %v776
    %2488 = vmatprep.subr.bf16.mxu0 %v785
    %2489 = vmatpush1.bf16.msra.mxu0 %v784
    %2490 = vmatprep.subr.bf16.mxu0 %v793
    %2491 = vmatpush1.bf16.msra.mxu0 %v792
    %2492 = vmatprep.subr.bf16.mxu0 %v801
    %2493 = vmatpush1.bf16.msra.mxu0 %v800
    %2494 = vmatprep.subr.bf16.mxu0 %v809
    %2495 = vmatpush1.bf16.msra.mxu0 %v808
    %2496 = vmatprep.subr.bf16.mxu0 %v817
    %2497 = vmatpush1.bf16.msra.mxu0 %v816
    %2498 = vmatprep.subr.bf16.mxu0 %v825
    %2499 = vmatpush1.bf16.msra.mxu0 %v824
    %2500 = vmatprep.subr.bf16.mxu0 %v833
    %2501 = vmatpush1.bf16.msra.mxu0 %v832
    %2502 = vmatprep.subr.bf16.mxu0 %v841
    %2503 = vmatpush1.bf16.msra.mxu0 %v840
    %2504 = vmatprep.mubr.bf16.mxu0 %v1301
    %2505 = vmatmul.mubr.bf16.gmra.mrb[0].mxu0 %v1300
    %v2506 = vpop.f32.mrb[0].mxu0
    %v2507 = vadd.f32 %v2466, %v2506
    %v2508 = vpop.f32.mrb[0].mxu0
    %v2509 = vadd.f32 %v2468, %v2508
    %v2510 = vpop.f32.mrb[0].mxu0
    %v2511 = vpop.f32.mrb[0].mxu0
    %2512 = vdwg.mxu0
    %2513 = vmatprep.subr.bf16.mxu0 %v849
    %2514 = vmatpush1.bf16.msra.mxu0 %v848
    %2515 = vmatprep.subr.bf16.mxu0 %v857
    %2516 = vmatpush1.bf16.msra.mxu0 %v856
    %2517 = vmatprep.subr.bf16.mxu0 %v865
    %2518 = vmatpush1.bf16.msra.mxu0 %v864
    %2519 = vmatprep.subr.bf16.mxu0 %v873
    %2520 = vmatpush1.bf16.msra.mxu0 %v872
    %2521 = vmatprep.subr.bf16.mxu0 %v881
    %2522 = vmatpush1.bf16.msra.mxu0 %v880
    %2523 = vmatprep.subr.bf16.mxu0 %v889
    %2524 = vmatpush1.bf16.msra.mxu0 %v888
    %2525 = vmatprep.subr.bf16.mxu0 %v897
    %2526 = vmatpush1.bf16.msra.mxu0 %v896
    %2527 = vmatprep.subr.bf16.mxu0 %v905
    %2528 = vmatpush1.bf16.msra.mxu0 %v904
    %2529 = vmatprep.subr.bf16.mxu0 %v913
    %2530 = vmatpush1.bf16.msra.mxu0 %v912
    %2531 = vmatprep.subr.bf16.mxu0 %v921
    %2532 = vmatpush1.bf16.msra.mxu0 %v920
    %2533 = vmatprep.subr.bf16.mxu0 %v929
    %2534 = vmatpush1.bf16.msra.mxu0 %v928
    %2535 = vmatprep.subr.bf16.mxu0 %v937
    %2536 = vmatpush1.bf16.msra.mxu0 %v936
    %2537 = vmatprep.subr.bf16.mxu0 %v945
    %2538 = vmatpush1.bf16.msra.mxu0 %v944
    %2539 = vmatprep.subr.bf16.mxu0 %v953
    %2540 = vmatpush1.bf16.msra.mxu0 %v952
    %2541 = vmatprep.subr.bf16.mxu0 %v961
    %2542 = vmatpush1.bf16.msra.mxu0 %v960
    %2543 = vmatprep.subr.bf16.mxu0 %v969
    %2544 = vmatpush1.bf16.msra.mxu0 %v968
    %2545 = vmatprep.mubr.bf16.mxu0 %v1303
    %2546 = vmatmul.mubr.bf16.gmra.mrb[0].mxu0 %v1302
    %v2547 = vpop.f32.mrb[0].mxu0
    %v2548 = vadd.f32 %v2507, %v2547
    %v2549 = vpop.f32.mrb[0].mxu0
    %v2550 = vadd.f32 %v2509, %v2549
    %v2551 = vpop.f32.mrb[0].mxu0
    %v2552 = vpop.f32.mrb[0].mxu0
    %2553 = vdwg.mxu0
    %2554 = vmatprep.subr.bf16.mxu0 %v977
    %2555 = vmatpush1.bf16.msra.mxu0 %v976
    %2556 = vmatprep.subr.bf16.mxu0 %v985
    %2557 = vmatpush1.bf16.msra.mxu0 %v984
    %2558 = vmatprep.subr.bf16.mxu0 %v993
    %2559 = vmatpush1.bf16.msra.mxu0 %v992
    %2560 = vmatprep.subr.bf16.mxu0 %v1001
    %2561 = vmatpush1.bf16.msra.mxu0 %v1000
    %2562 = vmatprep.subr.bf16.mxu0 %v1009
    %2563 = vmatpush1.bf16.msra.mxu0 %v1008
    %2564 = vmatprep.subr.bf16.mxu0 %v1017
    %2565 = vmatpush1.bf16.msra.mxu0 %v1016
    %2566 = vmatprep.subr.bf16.mxu0 %v1025
    %2567 = vmatpush1.bf16.msra.mxu0 %v1024
    %2568 = vmatprep.subr.bf16.mxu0 %v1033
    %2569 = vmatpush1.bf16.msra.mxu0 %v1032
    %2570 = vmatprep.subr.bf16.mxu0 %v1041
    %2571 = vmatpush1.bf16.msra.mxu0 %v1040
    %2572 = vmatprep.subr.bf16.mxu0 %v1049
    %2573 = vmatpush1.bf16.msra.mxu0 %v1048
    %2574 = vmatprep.subr.bf16.mxu0 %v1057
    %2575 = vmatpush1.bf16.msra.mxu0 %v1056
    %2576 = vmatprep.subr.bf16.mxu0 %v1065
    %2577 = vmatpush1.bf16.msra.mxu0 %v1064
    %2578 = vmatprep.subr.bf16.mxu0 %v1073
    %2579 = vmatpush1.bf16.msra.mxu0 %v1072
    %2580 = vmatprep.subr.bf16.mxu0 %v1081
    %2581 = vmatpush1.bf16.msra.mxu0 %v1080
    %2582 = vmatprep.subr.bf16.mxu0 %v1089
    %2583 = vmatpush1.bf16.msra.mxu0 %v1088
    %2584 = vmatprep.subr.bf16.mxu0 %v1097
    %2585 = vmatpush1.bf16.msra.mxu0 %v1096
    %2586 = vmatprep.mubr.bf16.mxu0 %v1305
    %2587 = vmatmul.mubr.bf16.gmra.mrb[0].mxu0 %v1304
    %v2588 = vpop.f32.mrb[0].mxu0
    %v2589 = vadd.f32 %v2548, %v2588
    %v2590 = vpop.f32.mrb[0].mxu0
    %v2591 = vadd.f32 %v2550, %v2590
    %v2592 = vpop.f32.mrb[0].mxu0
    %v2593 = vpop.f32.mrb[0].mxu0
    %2594 = vdwg.mxu0
    %2595 = vmatprep.subr.bf16.mxu0 %v1105
    %2596 = vmatpush1.bf16.msra.mxu0 %v1104
    %2597 = vmatprep.subr.bf16.mxu0 %v1113
    %2598 = vmatpush1.bf16.msra.mxu0 %v1112
    %2599 = vmatprep.subr.bf16.mxu0 %v1121
    %2600 = vmatpush1.bf16.msra.mxu0 %v1120
    %2601 = vmatprep.subr.bf16.mxu0 %v1129
    %2602 = vmatpush1.bf16.msra.mxu0 %v1128
    %2603 = vmatprep.subr.bf16.mxu0 %v1137
    %2604 = vmatpush1.bf16.msra.mxu0 %v1136
    %2605 = vmatprep.subr.bf16.mxu0 %v1145
    %2606 = vmatpush1.bf16.msra.mxu0 %v1144
    %2607 = vmatprep.subr.bf16.mxu0 %v1153
    %2608 = vmatpush1.bf16.msra.mxu0 %v1152
    %2609 = vmatprep.subr.bf16.mxu0 %v1161
    %2610 = vmatpush1.bf16.msra.mxu0 %v1160
    %2611 = vmatprep.subr.bf16.mxu0 %v1169
    %2612 = vmatpush1.bf16.msra.mxu0 %v1168
    %2613 = vmatprep.subr.bf16.mxu0 %v1177
    %2614 = vmatpush1.bf16.msra.mxu0 %v1176
    %2615 = vmatprep.subr.bf16.mxu0 %v1185
    %2616 = vmatpush1.bf16.msra.mxu0 %v1184
    %2617 = vmatprep.subr.bf16.mxu0 %v1193
    %2618 = vmatpush1.bf16.msra.mxu0 %v1192
    %2619 = vmatprep.subr.bf16.mxu0 %v1201
    %2620 = vmatpush1.bf16.msra.mxu0 %v1200
    %2621 = vmatprep.subr.bf16.mxu0 %v1209
    %2622 = vmatpush1.bf16.msra.mxu0 %v1208
    %2623 = vmatprep.subr.bf16.mxu0 %v1217
    %2624 = vmatpush1.bf16.msra.mxu0 %v1216
    %2625 = vmatprep.subr.bf16.mxu0 %v1225
    %2626 = vmatpush1.bf16.msra.mxu0 %v1224
    %2627 = vmatprep.mubr.bf16.mxu0 %v1307
    %2628 = vmatmul.mubr.bf16.gmra.mrb[0].mxu0 %v1306
    %v2629 = vpop.f32.mrb[0].mxu0
    %v2630 = vadd.f32 %v2589, %v2629
    %v2631 = vpop.f32.mrb[0].mxu0
    %v2632 = vadd.f32 %v2591, %v2631
    %v2633 = vpop.f32.mrb[0].mxu0
    %v2634 = vpop.f32.mrb[0].mxu0
    %2635 = vdwg.mxu0
    %v2636 = vmax.f32 %v1646, 0.0
    %v2637 = vmax.f32 %v1648, 0.0
    %v2638 = vmax.f32 %v1974, 0.0
    %v2639 = vmax.f32 %v1976, 0.0
    %v2640 = vmax.f32 %v2302, 0.0
    %v2641 = vmax.f32 %v2304, 0.0
    %v2642 = vmax.f32 %v2630, 0.0
    %v2643 = vmax.f32 %v2632, 0.0
    %s2644 = smul.u32 4, 128
    %s2645 = smul.u32 %s2644, 4
    %s2646 = sshll.u32 %s2645, 4
    %2647 = dma.done %s108, %s2646
    %v2648 = vpack.c.bf16 %v2636, %v2636
    %v2649 = vpack.c.bf16 %v2637, %v2637
    %v2650 = vpack.c.bf16 %v2638, %v2638
    %v2651 = vpack.c.bf16 %v2639, %v2639
    %v2652 = vpack.c.bf16 %v2640, %v2640
    %v2653 = vpack.c.bf16 %v2641, %v2641
    %v2654 = vpack.c.bf16 %v2642, %v2642
    %v2655 = vpack.c.bf16 %v2643, %v2643
    %v2656 = vld [vmem:[#allocation3] sm:$0xff]
    %v2657 = vld [vmem:[#allocation3 + $0x8] sm:$0xff]
    %v2658 = vld [vmem:[#allocation3 + $0x10] sm:$0xff]
    %v2659 = vld [vmem:[#allocation3 + $0x18] sm:$0xff]
    %v2660 = vld [vmem:[#allocation3 + $0x20] sm:$0xff]
    %v2661 = vld [vmem:[#allocation3 + $0x28] sm:$0xff]
    %v2662 = vld [vmem:[#allocation3 + $0x30] sm:$0xff]
    %v2663 = vld [vmem:[#allocation3 + $0x38] sm:$0xff]
    %v2664 = vld [vmem:[#allocation3 + $0x40] sm:$0xff]
    %v2665 = vld [vmem:[#allocation3 + $0x48] sm:$0xff]
    %v2666 = vld [vmem:[#allocation3 + $0x50] sm:$0xff]
    %v2667 = vld [vmem:[#allocation3 + $0x58] sm:$0xff]
    %v2668 = vld [vmem:[#allocation3 + $0x60] sm:$0xff]
    %v2669 = vld [vmem:[#allocation3 + $0x68] sm:$0xff]
    %v2670 = vld [vmem:[#allocation3 + $0x70] sm:$0xff]
    %v2671 = vld [vmem:[#allocation3 + $0x78] sm:$0xff]
    %v2672 = vld [vmem:[#allocation3 + $0x80] sm:$0xff]
    %v2673 = vld [vmem:[#allocation3 + $0x88] sm:$0xff]
    %v2674 = vld [vmem:[#allocation3 + $0x90] sm:$0xff]
    %v2675 = vld [vmem:[#allocation3 + $0x98] sm:$0xff]
    %v2676 = vld [vmem:[#allocation3 + $0xa0] sm:$0xff]
    %v2677 = vld [vmem:[#allocation3 + $0xa8] sm:$0xff]
    %v2678 = vld [vmem:[#allocation3 + $0xb0] sm:$0xff]
    %v2679 = vld [vmem:[#allocation3 + $0xb8] sm:$0xff]
    %v2680 = vld [vmem:[#allocation3 + $0xc0] sm:$0xff]
    %v2681 = vld [vmem:[#allocation3 + $0xc8] sm:$0xff]
    %v2682 = vld [vmem:[#allocation3 + $0xd0] sm:$0xff]
    %v2683 = vld [vmem:[#allocation3 + $0xd8] sm:$0xff]
    %v2684 = vld [vmem:[#allocation3 + $0xe0] sm:$0xff]
    %v2685 = vld [vmem:[#allocation3 + $0xe8] sm:$0xff]
    %v2686 = vld [vmem:[#allocation3 + $0xf0] sm:$0xff]
    %v2687 = vld [vmem:[#allocation3 + $0xf8] sm:$0xff]
    %v2688 = vld [vmem:[#allocation3 + $0x100] sm:$0xff]
    %v2689 = vld [vmem:[#allocation3 + $0x108] sm:$0xff]
    %v2690 = vld [vmem:[#allocation3 + $0x110] sm:$0xff]
    %v2691 = vld [vmem:[#allocation3 + $0x118] sm:$0xff]
    %v2692 = vld [vmem:[#allocation3 + $0x120] sm:$0xff]
    %v2693 = vld [vmem:[#allocation3 + $0x128] sm:$0xff]
    %v2694 = vld [vmem:[#allocation3 + $0x130] sm:$0xff]
    %v2695 = vld [vmem:[#allocation3 + $0x138] sm:$0xff]
    %v2696 = vld [vmem:[#allocation3 + $0x140] sm:$0xff]
    %v2697 = vld [vmem:[#allocation3 + $0x148] sm:$0xff]
    %v2698 = vld [vmem:[#allocation3 + $0x150] sm:$0xff]
    %v2699 = vld [vmem:[#allocation3 + $0x158] sm:$0xff]
    %v2700 = vld [vmem:[#allocation3 + $0x160] sm:$0xff]
    %v2701 = vld [vmem:[#allocation3 + $0x168] sm:$0xff]
    %v2702 = vld [vmem:[#allocation3 + $0x170] sm:$0xff]
    %v2703 = vld [vmem:[#allocation3 + $0x178] sm:$0xff]
    %v2704 = vld [vmem:[#allocation3 + $0x180] sm:$0xff]
    %v2705 = vld [vmem:[#allocation3 + $0x188] sm:$0xff]
    %v2706 = vld [vmem:[#allocation3 + $0x190] sm:$0xff]
    %v2707 = vld [vmem:[#allocation3 + $0x198] sm:$0xff]
    %v2708 = vld [vmem:[#allocation3 + $0x1a0] sm:$0xff]
    %v2709 = vld [vmem:[#allocation3 + $0x1a8] sm:$0xff]
    %v2710 = vld [vmem:[#allocation3 + $0x1b0] sm:$0xff]
    %v2711 = vld [vmem:[#allocation3 + $0x1b8] sm:$0xff]
    %v2712 = vld [vmem:[#allocation3 + $0x1c0] sm:$0xff]
    %v2713 = vld [vmem:[#allocation3 + $0x1c8] sm:$0xff]
    %v2714 = vld [vmem:[#allocation3 + $0x1d0] sm:$0xff]
    %v2715 = vld [vmem:[#allocation3 + $0x1d8] sm:$0xff]
    %v2716 = vld [vmem:[#allocation3 + $0x1e0] sm:$0xff]
    %v2717 = vld [vmem:[#allocation3 + $0x1e8] sm:$0xff]
    %v2718 = vld [vmem:[#allocation3 + $0x1f0] sm:$0xff]
    %v2719 = vld [vmem:[#allocation3 + $0x1f8] sm:$0xff]
    %v2720 = vld [vmem:[#allocation3 + $0x200] sm:$0xff]
    %v2721 = vld [vmem:[#allocation3 + $0x208] sm:$0xff]
    %v2722 = vld [vmem:[#allocation3 + $0x210] sm:$0xff]
    %v2723 = vld [vmem:[#allocation3 + $0x218] sm:$0xff]
    %v2724 = vld [vmem:[#allocation3 + $0x220] sm:$0xff]
    %v2725 = vld [vmem:[#allocation3 + $0x228] sm:$0xff]
    %v2726 = vld [vmem:[#allocation3 + $0x230] sm:$0xff]
    %v2727 = vld [vmem:[#allocation3 + $0x238] sm:$0xff]
    %v2728 = vld [vmem:[#allocation3 + $0x240] sm:$0xff]
    %v2729 = vld [vmem:[#allocation3 + $0x248] sm:$0xff]
    %v2730 = vld [vmem:[#allocation3 + $0x250] sm:$0xff]
    %v2731 = vld [vmem:[#allocation3 + $0x258] sm:$0xff]
    %v2732 = vld [vmem:[#allocation3 + $0x260] sm:$0xff]
    %v2733 = vld [vmem:[#allocation3 + $0x268] sm:$0xff]
    %v2734 = vld [vmem:[#allocation3 + $0x270] sm:$0xff]
    %v2735 = vld [vmem:[#allocation3 + $0x278] sm:$0xff]
    %v2736 = vld [vmem:[#allocation3 + $0x280] sm:$0xff]
    %v2737 = vld [vmem:[#allocation3 + $0x288] sm:$0xff]
    %v2738 = vld [vmem:[#allocation3 + $0x290] sm:$0xff]
    %v2739 = vld [vmem:[#allocation3 + $0x298] sm:$0xff]
    %v2740 = vld [vmem:[#allocation3 + $0x2a0] sm:$0xff]
    %v2741 = vld [vmem:[#allocation3 + $0x2a8] sm:$0xff]
    %v2742 = vld [vmem:[#allocation3 + $0x2b0] sm:$0xff]
    %v2743 = vld [vmem:[#allocation3 + $0x2b8] sm:$0xff]
    %v2744 = vld [vmem:[#allocation3 + $0x2c0] sm:$0xff]
    %v2745 = vld [vmem:[#allocation3 + $0x2c8] sm:$0xff]
    %v2746 = vld [vmem:[#allocation3 + $0x2d0] sm:$0xff]
    %v2747 = vld [vmem:[#allocation3 + $0x2d8] sm:$0xff]
    %v2748 = vld [vmem:[#allocation3 + $0x2e0] sm:$0xff]
    %v2749 = vld [vmem:[#allocation3 + $0x2e8] sm:$0xff]
    %v2750 = vld [vmem:[#allocation3 + $0x2f0] sm:$0xff]
    %v2751 = vld [vmem:[#allocation3 + $0x2f8] sm:$0xff]
    %v2752 = vld [vmem:[#allocation3 + $0x300] sm:$0xff]
    %v2753 = vld [vmem:[#allocation3 + $0x308] sm:$0xff]
    %v2754 = vld [vmem:[#allocation3 + $0x310] sm:$0xff]
    %v2755 = vld [vmem:[#allocation3 + $0x318] sm:$0xff]
    %v2756 = vld [vmem:[#allocation3 + $0x320] sm:$0xff]
    %v2757 = vld [vmem:[#allocation3 + $0x328] sm:$0xff]
    %v2758 = vld [vmem:[#allocation3 + $0x330] sm:$0xff]
    %v2759 = vld [vmem:[#allocation3 + $0x338] sm:$0xff]
    %v2760 = vld [vmem:[#allocation3 + $0x340] sm:$0xff]
    %v2761 = vld [vmem:[#allocation3 + $0x348] sm:$0xff]
    %v2762 = vld [vmem:[#allocation3 + $0x350] sm:$0xff]
    %v2763 = vld [vmem:[#allocation3 + $0x358] sm:$0xff]
    %v2764 = vld [vmem:[#allocation3 + $0x360] sm:$0xff]
    %v2765 = vld [vmem:[#allocation3 + $0x368] sm:$0xff]
    %v2766 = vld [vmem:[#allocation3 + $0x370] sm:$0xff]
    %v2767 = vld [vmem:[#allocation3 + $0x378] sm:$0xff]
    %v2768 = vld [vmem:[#allocation3 + $0x380] sm:$0xff]
    %v2769 = vld [vmem:[#allocation3 + $0x388] sm:$0xff]
    %v2770 = vld [vmem:[#allocation3 + $0x390] sm:$0xff]
    %v2771 = vld [vmem:[#allocation3 + $0x398] sm:$0xff]
    %v2772 = vld [vmem:[#allocation3 + $0x3a0] sm:$0xff]
    %v2773 = vld [vmem:[#allocation3 + $0x3a8] sm:$0xff]
    %v2774 = vld [vmem:[#allocation3 + $0x3b0] sm:$0xff]
    %v2775 = vld [vmem:[#allocation3 + $0x3b8] sm:$0xff]
    %v2776 = vld [vmem:[#allocation3 + $0x3c0] sm:$0xff]
    %v2777 = vld [vmem:[#allocation3 + $0x3c8] sm:$0xff]
    %v2778 = vld [vmem:[#allocation3 + $0x3d0] sm:$0xff]
    %v2779 = vld [vmem:[#allocation3 + $0x3d8] sm:$0xff]
    %v2780 = vld [vmem:[#allocation3 + $0x3e0] sm:$0xff]
    %v2781 = vld [vmem:[#allocation3 + $0x3e8] sm:$0xff]
    %v2782 = vld [vmem:[#allocation3 + $0x3f0] sm:$0xff]
    %v2783 = vld [vmem:[#allocation3 + $0x3f8] sm:$0xff]
    %v2784 = vld [vmem:[#allocation3 + $0x400] sm:$0xff]
    %v2785 = vld [vmem:[#allocation3 + $0x408] sm:$0xff]
    %v2786 = vld [vmem:[#allocation3 + $0x410] sm:$0xff]
    %v2787 = vld [vmem:[#allocation3 + $0x418] sm:$0xff]
    %v2788 = vld [vmem:[#allocation3 + $0x420] sm:$0xff]
    %v2789 = vld [vmem:[#allocation3 + $0x428] sm:$0xff]
    %v2790 = vld [vmem:[#allocation3 + $0x430] sm:$0xff]
    %v2791 = vld [vmem:[#allocation3 + $0x438] sm:$0xff]
    %v2792 = vld [vmem:[#allocation3 + $0x440] sm:$0xff]
    %v2793 = vld [vmem:[#allocation3 + $0x448] sm:$0xff]
    %v2794 = vld [vmem:[#allocation3 + $0x450] sm:$0xff]
    %v2795 = vld [vmem:[#allocation3 + $0x458] sm:$0xff]
    %v2796 = vld [vmem:[#allocation3 + $0x460] sm:$0xff]
    %v2797 = vld [vmem:[#allocation3 + $0x468] sm:$0xff]
    %v2798 = vld [vmem:[#allocation3 + $0x470] sm:$0xff]
    %v2799 = vld [vmem:[#allocation3 + $0x478] sm:$0xff]
    %v2800 = vld [vmem:[#allocation3 + $0x480] sm:$0xff]
    %v2801 = vld [vmem:[#allocation3 + $0x488] sm:$0xff]
    %v2802 = vld [vmem:[#allocation3 + $0x490] sm:$0xff]
    %v2803 = vld [vmem:[#allocation3 + $0x498] sm:$0xff]
    %v2804 = vld [vmem:[#allocation3 + $0x4a0] sm:$0xff]
    %v2805 = vld [vmem:[#allocation3 + $0x4a8] sm:$0xff]
    %v2806 = vld [vmem:[#allocation3 + $0x4b0] sm:$0xff]
    %v2807 = vld [vmem:[#allocation3 + $0x4b8] sm:$0xff]
    %v2808 = vld [vmem:[#allocation3 + $0x4c0] sm:$0xff]
    %v2809 = vld [vmem:[#allocation3 + $0x4c8] sm:$0xff]
    %v2810 = vld [vmem:[#allocation3 + $0x4d0] sm:$0xff]
    %v2811 = vld [vmem:[#allocation3 + $0x4d8] sm:$0xff]
    %v2812 = vld [vmem:[#allocation3 + $0x4e0] sm:$0xff]
    %v2813 = vld [vmem:[#allocation3 + $0x4e8] sm:$0xff]
    %v2814 = vld [vmem:[#allocation3 + $0x4f0] sm:$0xff]
    %v2815 = vld [vmem:[#allocation3 + $0x4f8] sm:$0xff]
    %v2816 = vld [vmem:[#allocation3 + $0x500] sm:$0xff]
    %v2817 = vld [vmem:[#allocation3 + $0x508] sm:$0xff]
    %v2818 = vld [vmem:[#allocation3 + $0x510] sm:$0xff]
    %v2819 = vld [vmem:[#allocation3 + $0x518] sm:$0xff]
    %v2820 = vld [vmem:[#allocation3 + $0x520] sm:$0xff]
    %v2821 = vld [vmem:[#allocation3 + $0x528] sm:$0xff]
    %v2822 = vld [vmem:[#allocation3 + $0x530] sm:$0xff]
    %v2823 = vld [vmem:[#allocation3 + $0x538] sm:$0xff]
    %v2824 = vld [vmem:[#allocation3 + $0x540] sm:$0xff]
    %v2825 = vld [vmem:[#allocation3 + $0x548] sm:$0xff]
    %v2826 = vld [vmem:[#allocation3 + $0x550] sm:$0xff]
    %v2827 = vld [vmem:[#allocation3 + $0x558] sm:$0xff]
    %v2828 = vld [vmem:[#allocation3 + $0x560] sm:$0xff]
    %v2829 = vld [vmem:[#allocation3 + $0x568] sm:$0xff]
    %v2830 = vld [vmem:[#allocation3 + $0x570] sm:$0xff]
    %v2831 = vld [vmem:[#allocation3 + $0x578] sm:$0xff]
    %v2832 = vld [vmem:[#allocation3 + $0x580] sm:$0xff]
    %v2833 = vld [vmem:[#allocation3 + $0x588] sm:$0xff]
    %v2834 = vld [vmem:[#allocation3 + $0x590] sm:$0xff]
    %v2835 = vld [vmem:[#allocation3 + $0x598] sm:$0xff]
    %v2836 = vld [vmem:[#allocation3 + $0x5a0] sm:$0xff]
    %v2837 = vld [vmem:[#allocation3 + $0x5a8] sm:$0xff]
    %v2838 = vld [vmem:[#allocation3 + $0x5b0] sm:$0xff]
    %v2839 = vld [vmem:[#allocation3 + $0x5b8] sm:$0xff]
    %v2840 = vld [vmem:[#allocation3 + $0x5c0] sm:$0xff]
    %v2841 = vld [vmem:[#allocation3 + $0x5c8] sm:$0xff]
    %v2842 = vld [vmem:[#allocation3 + $0x5d0] sm:$0xff]
    %v2843 = vld [vmem:[#allocation3 + $0x5d8] sm:$0xff]
    %v2844 = vld [vmem:[#allocation3 + $0x5e0] sm:$0xff]
    %v2845 = vld [vmem:[#allocation3 + $0x5e8] sm:$0xff]
    %v2846 = vld [vmem:[#allocation3 + $0x5f0] sm:$0xff]
    %v2847 = vld [vmem:[#allocation3 + $0x5f8] sm:$0xff]
    %v2848 = vld [vmem:[#allocation3 + $0x600] sm:$0xff]
    %v2849 = vld [vmem:[#allocation3 + $0x608] sm:$0xff]
    %v2850 = vld [vmem:[#allocation3 + $0x610] sm:$0xff]
    %v2851 = vld [vmem:[#allocation3 + $0x618] sm:$0xff]
    %v2852 = vld [vmem:[#allocation3 + $0x620] sm:$0xff]
    %v2853 = vld [vmem:[#allocation3 + $0x628] sm:$0xff]
    %v2854 = vld [vmem:[#allocation3 + $0x630] sm:$0xff]
    %v2855 = vld [vmem:[#allocation3 + $0x638] sm:$0xff]
    %v2856 = vld [vmem:[#allocation3 + $0x640] sm:$0xff]
    %v2857 = vld [vmem:[#allocation3 + $0x648] sm:$0xff]
    %v2858 = vld [vmem:[#allocation3 + $0x650] sm:$0xff]
    %v2859 = vld [vmem:[#allocation3 + $0x658] sm:$0xff]
    %v2860 = vld [vmem:[#allocation3 + $0x660] sm:$0xff]
    %v2861 = vld [vmem:[#allocation3 + $0x668] sm:$0xff]
    %v2862 = vld [vmem:[#allocation3 + $0x670] sm:$0xff]
    %v2863 = vld [vmem:[#allocation3 + $0x678] sm:$0xff]
    %v2864 = vld [vmem:[#allocation3 + $0x680] sm:$0xff]
    %v2865 = vld [vmem:[#allocation3 + $0x688] sm:$0xff]
    %v2866 = vld [vmem:[#allocation3 + $0x690] sm:$0xff]
    %v2867 = vld [vmem:[#allocation3 + $0x698] sm:$0xff]
    %v2868 = vld [vmem:[#allocation3 + $0x6a0] sm:$0xff]
    %v2869 = vld [vmem:[#allocation3 + $0x6a8] sm:$0xff]
    %v2870 = vld [vmem:[#allocation3 + $0x6b0] sm:$0xff]
    %v2871 = vld [vmem:[#allocation3 + $0x6b8] sm:$0xff]
    %v2872 = vld [vmem:[#allocation3 + $0x6c0] sm:$0xff]
    %v2873 = vld [vmem:[#allocation3 + $0x6c8] sm:$0xff]
    %v2874 = vld [vmem:[#allocation3 + $0x6d0] sm:$0xff]
    %v2875 = vld [vmem:[#allocation3 + $0x6d8] sm:$0xff]
    %v2876 = vld [vmem:[#allocation3 + $0x6e0] sm:$0xff]
    %v2877 = vld [vmem:[#allocation3 + $0x6e8] sm:$0xff]
    %v2878 = vld [vmem:[#allocation3 + $0x6f0] sm:$0xff]
    %v2879 = vld [vmem:[#allocation3 + $0x6f8] sm:$0xff]
    %v2880 = vld [vmem:[#allocation3 + $0x700] sm:$0xff]
    %v2881 = vld [vmem:[#allocation3 + $0x708] sm:$0xff]
    %v2882 = vld [vmem:[#allocation3 + $0x710] sm:$0xff]
    %v2883 = vld [vmem:[#allocation3 + $0x718] sm:$0xff]
    %v2884 = vld [vmem:[#allocation3 + $0x720] sm:$0xff]
    %v2885 = vld [vmem:[#allocation3 + $0x728] sm:$0xff]
    %v2886 = vld [vmem:[#allocation3 + $0x730] sm:$0xff]
    %v2887 = vld [vmem:[#allocation3 + $0x738] sm:$0xff]
    %v2888 = vld [vmem:[#allocation3 + $0x740] sm:$0xff]
    %v2889 = vld [vmem:[#allocation3 + $0x748] sm:$0xff]
    %v2890 = vld [vmem:[#allocation3 + $0x750] sm:$0xff]
    %v2891 = vld [vmem:[#allocation3 + $0x758] sm:$0xff]
    %v2892 = vld [vmem:[#allocation3 + $0x760] sm:$0xff]
    %v2893 = vld [vmem:[#allocation3 + $0x768] sm:$0xff]
    %v2894 = vld [vmem:[#allocation3 + $0x770] sm:$0xff]
    %v2895 = vld [vmem:[#allocation3 + $0x778] sm:$0xff]
    %v2896 = vld [vmem:[#allocation3 + $0x780] sm:$0xff]
    %v2897 = vld [vmem:[#allocation3 + $0x788] sm:$0xff]
    %v2898 = vld [vmem:[#allocation3 + $0x790] sm:$0xff]
    %v2899 = vld [vmem:[#allocation3 + $0x798] sm:$0xff]
    %v2900 = vld [vmem:[#allocation3 + $0x7a0] sm:$0xff]
    %v2901 = vld [vmem:[#allocation3 + $0x7a8] sm:$0xff]
    %v2902 = vld [vmem:[#allocation3 + $0x7b0] sm:$0xff]
    %v2903 = vld [vmem:[#allocation3 + $0x7b8] sm:$0xff]
    %v2904 = vld [vmem:[#allocation3 + $0x7c0] sm:$0xff]
    %v2905 = vld [vmem:[#allocation3 + $0x7c8] sm:$0xff]
    %v2906 = vld [vmem:[#allocation3 + $0x7d0] sm:$0xff]
    %v2907 = vld [vmem:[#allocation3 + $0x7d8] sm:$0xff]
    %v2908 = vld [vmem:[#allocation3 + $0x7e0] sm:$0xff]
    %v2909 = vld [vmem:[#allocation3 + $0x7e8] sm:$0xff]
    %v2910 = vld [vmem:[#allocation3 + $0x7f0] sm:$0xff]
    %v2911 = vld [vmem:[#allocation3 + $0x7f8] sm:$0xff]
    %v2912 = vld [vmem:[#allocation10] sm:$0xf]
    %v2914 = vlaneseq
    %v2915 = vshrl.u32 %v2914, 7
    %v2916 = vsub.s32 0, %v2915
    %v2917 = vrot.slane %v2912, %v2916
    %v2918 = vlaneseq
    %v2919 = vshrl.u32 %v2918, 7
    %v2920 = vsub.s32 1, %v2919
    %v2921 = vrot.slane %v2912, %v2920
    %v2922 = vlaneseq
    %v2923 = vshrl.u32 %v2922, 7
    %v2924 = vsub.s32 2, %v2923
    %v2925 = vrot.slane %v2912, %v2924
    %v2926 = vlaneseq
    %v2927 = vshrl.u32 %v2926, 7
    %v2928 = vsub.s32 3, %v2927
    %v2929 = vrot.slane %v2912, %v2928
    %2934 = vmatprep.subr.bf16.mxu0 %v2657
    %2935 = vmatpush1.bf16.msra.mxu0 %v2656
    %2936 = vmatprep.subr.bf16.mxu0 %v2661
    %2937 = vmatpush1.bf16.msra.mxu0 %v2660
    %2938 = vmatprep.subr.bf16.mxu0 %v2665
    %2939 = vmatpush1.bf16.msra.mxu0 %v2664
    %2940 = vmatprep.subr.bf16.mxu0 %v2669
    %2941 = vmatpush1.bf16.msra.mxu0 %v2668
    %2942 = vmatprep.subr.bf16.mxu0 %v2673
    %2943 = vmatpush1.bf16.msra.mxu0 %v2672
    %2944 = vmatprep.subr.bf16.mxu0 %v2677
    %2945 = vmatpush1.bf16.msra.mxu0 %v2676
    %2946 = vmatprep.subr.bf16.mxu0 %v2681
    %2947 = vmatpush1.bf16.msra.mxu0 %v2680
    %2948 = vmatprep.subr.bf16.mxu0 %v2685
    %2949 = vmatpush1.bf16.msra.mxu0 %v2684
    %2950 = vmatprep.subr.bf16.mxu0 %v2689
    %2951 = vmatpush1.bf16.msra.mxu0 %v2688
    %2952 = vmatprep.subr.bf16.mxu0 %v2693
    %2953 = vmatpush1.bf16.msra.mxu0 %v2692
    %2954 = vmatprep.subr.bf16.mxu0 %v2697
    %2955 = vmatpush1.bf16.msra.mxu0 %v2696
    %2956 = vmatprep.subr.bf16.mxu0 %v2701
    %2957 = vmatpush1.bf16.msra.mxu0 %v2700
    %2958 = vmatprep.subr.bf16.mxu0 %v2705
    %2959 = vmatpush1.bf16.msra.mxu0 %v2704
    %2960 = vmatprep.subr.bf16.mxu0 %v2709
    %2961 = vmatpush1.bf16.msra.mxu0 %v2708
    %2962 = vmatprep.subr.bf16.mxu0 %v2713
    %2963 = vmatpush1.bf16.msra.mxu0 %v2712
    %2964 = vmatprep.subr.bf16.mxu0 %v2717
    %2965 = vmatpush1.bf16.msra.mxu0 %v2716
    %2966 = vmatprep.mubr.bf16.mxu0 %v2649
    %2967 = vmatmul.mubr.bf16.gmra.mrb[0].mxu0 %v2648
    %v2968 = vpop.f32.mrb[0].mxu0
    %v2969 = vadd.f32 %v2917, %v2968
    %v2970 = vpop.f32.mrb[0].mxu0
    %v2971 = vadd.f32 %v2921, %v2970
    %v2972 = vpop.f32.mrb[0].mxu0
    %v2973 = vpop.f32.mrb[0].mxu0
    %2974 = vdwg.mxu0
    %2975 = vmatprep.subr.bf16.mxu0 %v2721
    %2976 = vmatpush1.bf16.msra.mxu0 %v2720
    %2977 = vmatprep.subr.bf16.mxu0 %v2725
    %2978 = vmatpush1.bf16.msra.mxu0 %v2724
    %2979 = vmatprep.subr.bf16.mxu0 %v2729
    %2980 = vmatpush1.bf16.msra.mxu0 %v2728
    %2981 = vmatprep.subr.bf16.mxu0 %v2733
    %2982 = vmatpush1.bf16.msra.mxu0 %v2732
    %2983 = vmatprep.subr.bf16.mxu0 %v2737
    %2984 = vmatpush1.bf16.msra.mxu0 %v2736
    %2985 = vmatprep.subr.bf16.mxu0 %v2741
    %2986 = vmatpush1.bf16.msra.mxu0 %v2740
    %2987 = vmatprep.subr.bf16.mxu0 %v2745
    %2988 = vmatpush1.bf16.msra.mxu0 %v2744
    %2989 = vmatprep.subr.bf16.mxu0 %v2749
    %2990 = vmatpush1.bf16.msra.mxu0 %v2748
    %2991 = vmatprep.subr.bf16.mxu0 %v2753
    %2992 = vmatpush1.bf16.msra.mxu0 %v2752
    %2993 = vmatprep.subr.bf16.mxu0 %v2757
    %2994 = vmatpush1.bf16.msra.mxu0 %v2756
    %2995 = vmatprep.subr.bf16.mxu0 %v2761
    %2996 = vmatpush1.bf16.msra.mxu0 %v2760
    %2997 = vmatprep.subr.bf16.mxu0 %v2765
    %2998 = vmatpush1.bf16.msra.mxu0 %v2764
    %2999 = vmatprep.subr.bf16.mxu0 %v2769
    %3000 = vmatpush1.bf16.msra.mxu0 %v2768
    %3001 = vmatprep.subr.bf16.mxu0 %v2773
    %3002 = vmatpush1.bf16.msra.mxu0 %v2772
    %3003 = vmatprep.subr.bf16.mxu0 %v2777
    %3004 = vmatpush1.bf16.msra.mxu0 %v2776
    %3005 = vmatprep.subr.bf16.mxu0 %v2781
    %3006 = vmatpush1.bf16.msra.mxu0 %v2780
    %3007 = vmatprep.mubr.bf16.mxu0 %v2651
    %3008 = vmatmul.mubr.bf16.gmra.mrb[0].mxu0 %v2650
    %v3009 = vpop.f32.mrb[0].mxu0
    %v3010 = vadd.f32 %v2969, %v3009
    %v3011 = vpop.f32.mrb[0].mxu0
    %v3012 = vadd.f32 %v2971, %v3011
    %v3013 = vpop.f32.mrb[0].mxu0
    %v3014 = vpop.f32.mrb[0].mxu0
    %3015 = vdwg.mxu0
    %3016 = vmatprep.subr.bf16.mxu0 %v2785
    %3017 = vmatpush1.bf16.msra.mxu0 %v2784
    %3018 = vmatprep.subr.bf16.mxu0 %v2789
    %3019 = vmatpush1.bf16.msra.mxu0 %v2788
    %3020 = vmatprep.subr.bf16.mxu0 %v2793
    %3021 = vmatpush1.bf16.msra.mxu0 %v2792
    %3022 = vmatprep.subr.bf16.mxu0 %v2797
    %3023 = vmatpush1.bf16.msra.mxu0 %v2796
    %3024 = vmatprep.subr.bf16.mxu0 %v2801
    %3025 = vmatpush1.bf16.msra.mxu0 %v2800
    %3026 = vmatprep.subr.bf16.mxu0 %v2805
    %3027 = vmatpush1.bf16.msra.mxu0 %v2804
    %3028 = vmatprep.subr.bf16.mxu0 %v2809
    %3029 = vmatpush1.bf16.msra.mxu0 %v2808
    %3030 = vmatprep.subr.bf16.mxu0 %v2813
    %3031 = vmatpush1.bf16.msra.mxu0 %v2812
    %3032 = vmatprep.subr.bf16.mxu0 %v2817
    %3033 = vmatpush1.bf16.msra.mxu0 %v2816
    %3034 = vmatprep.subr.bf16.mxu0 %v2821
    %3035 = vmatpush1.bf16.msra.mxu0 %v2820
    %3036 = vmatprep.subr.bf16.mxu0 %v2825
    %3037 = vmatpush1.bf16.msra.mxu0 %v2824
    %3038 = vmatprep.subr.bf16.mxu0 %v2829
    %3039 = vmatpush1.bf16.msra.mxu0 %v2828
    %3040 = vmatprep.subr.bf16.mxu0 %v2833
    %3041 = vmatpush1.bf16.msra.mxu0 %v2832
    %3042 = vmatprep.subr.bf16.mxu0 %v2837
    %3043 = vmatpush1.bf16.msra.mxu0 %v2836
    %3044 = vmatprep.subr.bf16.mxu0 %v2841
    %3045 = vmatpush1.bf16.msra.mxu0 %v2840
    %3046 = vmatprep.subr.bf16.mxu0 %v2845
    %3047 = vmatpush1.bf16.msra.mxu0 %v2844
    %3048 = vmatprep.mubr.bf16.mxu0 %v2653
    %3049 = vmatmul.mubr.bf16.gmra.mrb[0].mxu0 %v2652
    %v3050 = vpop.f32.mrb[0].mxu0
    %v3051 = vadd.f32 %v3010, %v3050
    %v3052 = vpop.f32.mrb[0].mxu0
    %v3053 = vadd.f32 %v3012, %v3052
    %v3054 = vpop.f32.mrb[0].mxu0
    %v3055 = vpop.f32.mrb[0].mxu0
    %3056 = vdwg.mxu0
    %3057 = vmatprep.subr.bf16.mxu0 %v2849
    %3058 = vmatpush1.bf16.msra.mxu0 %v2848
    %3059 = vmatprep.subr.bf16.mxu0 %v2853
    %3060 = vmatpush1.bf16.msra.mxu0 %v2852
    %3061 = vmatprep.subr.bf16.mxu0 %v2857
    %3062 = vmatpush1.bf16.msra.mxu0 %v2856
    %3063 = vmatprep.subr.bf16.mxu0 %v2861
    %3064 = vmatpush1.bf16.msra.mxu0 %v2860
    %3065 = vmatprep.subr.bf16.mxu0 %v2865
    %3066 = vmatpush1.bf16.msra.mxu0 %v2864
    %3067 = vmatprep.subr.bf16.mxu0 %v2869
    %3068 = vmatpush1.bf16.msra.mxu0 %v2868
    %3069 = vmatprep.subr.bf16.mxu0 %v2873
    %3070 = vmatpush1.bf16.msra.mxu0 %v2872
    %3071 = vmatprep.subr.bf16.mxu0 %v2877
    %3072 = vmatpush1.bf16.msra.mxu0 %v2876
    %3073 = vmatprep.subr.bf16.mxu0 %v2881
    %3074 = vmatpush1.bf16.msra.mxu0 %v2880
    %3075 = vmatprep.subr.bf16.mxu0 %v2885
    %3076 = vmatpush1.bf16.msra.mxu0 %v2884
    %3077 = vmatprep.subr.bf16.mxu0 %v2889
    %3078 = vmatpush1.bf16.msra.mxu0 %v2888
    %3079 = vmatprep.subr.bf16.mxu0 %v2893
    %3080 = vmatpush1.bf16.msra.mxu0 %v2892
    %3081 = vmatprep.subr.bf16.mxu0 %v2897
    %3082 = vmatpush1.bf16.msra.mxu0 %v2896
    %3083 = vmatprep.subr.bf16.mxu0 %v2901
    %3084 = vmatpush1.bf16.msra.mxu0 %v2900
    %3085 = vmatprep.subr.bf16.mxu0 %v2905
    %3086 = vmatpush1.bf16.msra.mxu0 %v2904
    %3087 = vmatprep.subr.bf16.mxu0 %v2909
    %3088 = vmatpush1.bf16.msra.mxu0 %v2908
    %3089 = vmatprep.mubr.bf16.mxu0 %v2655
    %3090 = vmatmul.mubr.bf16.gmra.mrb[0].mxu0 %v2654
    %v3091 = vpop.f32.mrb[0].mxu0
    %v3092 = vadd.f32 %v3051, %v3091
    %v3093 = vpop.f32.mrb[0].mxu0
    %v3094 = vadd.f32 %v3053, %v3093
    %v3095 = vpop.f32.mrb[0].mxu0
    %v3096 = vpop.f32.mrb[0].mxu0
    %3097 = vdwg.mxu0
    %3098 = vmatprep.subr.bf16.mxu0 %v2659
    %3099 = vmatpush1.bf16.msra.mxu0 %v2658
    %3100 = vmatprep.subr.bf16.mxu0 %v2663
    %3101 = vmatpush1.bf16.msra.mxu0 %v2662
    %3102 = vmatprep.subr.bf16.mxu0 %v2667
    %3103 = vmatpush1.bf16.msra.mxu0 %v2666
    %3104 = vmatprep.subr.bf16.mxu0 %v2671
    %3105 = vmatpush1.bf16.msra.mxu0 %v2670
    %3106 = vmatprep.subr.bf16.mxu0 %v2675
    %3107 = vmatpush1.bf16.msra.mxu0 %v2674
    %3108 = vmatprep.subr.bf16.mxu0 %v2679
    %3109 = vmatpush1.bf16.msra.mxu0 %v2678
    %3110 = vmatprep.subr.bf16.mxu0 %v2683
    %3111 = vmatpush1.bf16.msra.mxu0 %v2682
    %3112 = vmatprep.subr.bf16.mxu0 %v2687
    %3113 = vmatpush1.bf16.msra.mxu0 %v2686
    %3114 = vmatprep.subr.bf16.mxu0 %v2691
    %3115 = vmatpush1.bf16.msra.mxu0 %v2690
    %3116 = vmatprep.subr.bf16.mxu0 %v2695
    %3117 = vmatpush1.bf16.msra.mxu0 %v2694
    %3118 = vmatprep.subr.bf16.mxu0 %v2699
    %3119 = vmatpush1.bf16.msra.mxu0 %v2698
    %3120 = vmatprep.subr.bf16.mxu0 %v2703
    %3121 = vmatpush1.bf16.msra.mxu0 %v2702
    %3122 = vmatprep.subr.bf16.mxu0 %v2707
    %3123 = vmatpush1.bf16.msra.mxu0 %v2706
    %3124 = vmatprep.subr.bf16.mxu0 %v2711
    %3125 = vmatpush1.bf16.msra.mxu0 %v2710
    %3126 = vmatprep.subr.bf16.mxu0 %v2715
    %3127 = vmatpush1.bf16.msra.mxu0 %v2714
    %3128 = vmatprep.subr.bf16.mxu0 %v2719
    %3129 = vmatpush1.bf16.msra.mxu0 %v2718
    %3130 = vmatprep.mubr.bf16.mxu0 %v2649
    %3131 = vmatmul.mubr.bf16.gmra.mrb[0].mxu0 %v2648
    %v3132 = vpop.f32.mrb[0].mxu0
    %v3133 = vadd.f32 %v2925, %v3132
    %v3134 = vpop.f32.mrb[0].mxu0
    %v3135 = vadd.f32 %v2929, %v3134
    %v3136 = vpop.f32.mrb[0].mxu0
    %v3137 = vpop.f32.mrb[0].mxu0
    %3138 = vdwg.mxu0
    %3139 = vmatprep.subr.bf16.mxu0 %v2723
    %3140 = vmatpush1.bf16.msra.mxu0 %v2722
    %3141 = vmatprep.subr.bf16.mxu0 %v2727
    %3142 = vmatpush1.bf16.msra.mxu0 %v2726
    %3143 = vmatprep.subr.bf16.mxu0 %v2731
    %3144 = vmatpush1.bf16.msra.mxu0 %v2730
    %3145 = vmatprep.subr.bf16.mxu0 %v2735
    %3146 = vmatpush1.bf16.msra.mxu0 %v2734
    %3147 = vmatprep.subr.bf16.mxu0 %v2739
    %3148 = vmatpush1.bf16.msra.mxu0 %v2738
    %3149 = vmatprep.subr.bf16.mxu0 %v2743
    %3150 = vmatpush1.bf16.msra.mxu0 %v2742
    %3151 = vmatprep.subr.bf16.mxu0 %v2747
    %3152 = vmatpush1.bf16.msra.mxu0 %v2746
    %3153 = vmatprep.subr.bf16.mxu0 %v2751
    %3154 = vmatpush1.bf16.msra.mxu0 %v2750
    %3155 = vmatprep.subr.bf16.mxu0 %v2755
    %3156 = vmatpush1.bf16.msra.mxu0 %v2754
    %3157 = vmatprep.subr.bf16.mxu0 %v2759
    %3158 = vmatpush1.bf16.msra.mxu0 %v2758
    %3159 = vmatprep.subr.bf16.mxu0 %v2763
    %3160 = vmatpush1.bf16.msra.mxu0 %v2762
    %3161 = vmatprep.subr.bf16.mxu0 %v2767
    %3162 = vmatpush1.bf16.msra.mxu0 %v2766
    %3163 = vmatprep.subr.bf16.mxu0 %v2771
    %3164 = vmatpush1.bf16.msra.mxu0 %v2770
    %3165 = vmatprep.subr.bf16.mxu0 %v2775
    %3166 = vmatpush1.bf16.msra.mxu0 %v2774
    %3167 = vmatprep.subr.bf16.mxu0 %v2779
    %3168 = vmatpush1.bf16.msra.mxu0 %v2778
    %3169 = vmatprep.subr.bf16.mxu0 %v2783
    %3170 = vmatpush1.bf16.msra.mxu0 %v2782
    %3171 = vmatprep.mubr.bf16.mxu0 %v2651
    %3172 = vmatmul.mubr.bf16.gmra.mrb[0].mxu0 %v2650
    %v3173 = vpop.f32.mrb[0].mxu0
    %v3174 = vadd.f32 %v3133, %v3173
    %v3175 = vpop.f32.mrb[0].mxu0
    %v3176 = vadd.f32 %v3135, %v3175
    %v3177 = vpop.f32.mrb[0].mxu0
    %v3178 = vpop.f32.mrb[0].mxu0
    %3179 = vdwg.mxu0
    %3180 = vmatprep.subr.bf16.mxu0 %v2787
    %3181 = vmatpush1.bf16.msra.mxu0 %v2786
    %3182 = vmatprep.subr.bf16.mxu0 %v2791
    %3183 = vmatpush1.bf16.msra.mxu0 %v2790
    %3184 = vmatprep.subr.bf16.mxu0 %v2795
    %3185 = vmatpush1.bf16.msra.mxu0 %v2794
    %3186 = vmatprep.subr.bf16.mxu0 %v2799
    %3187 = vmatpush1.bf16.msra.mxu0 %v2798
    %3188 = vmatprep.subr.bf16.mxu0 %v2803
    %3189 = vmatpush1.bf16.msra.mxu0 %v2802
    %3190 = vmatprep.subr.bf16.mxu0 %v2807
    %3191 = vmatpush1.bf16.msra.mxu0 %v2806
    %3192 = vmatprep.subr.bf16.mxu0 %v2811
    %3193 = vmatpush1.bf16.msra.mxu0 %v2810
    %3194 = vmatprep.subr.bf16.mxu0 %v2815
    %3195 = vmatpush1.bf16.msra.mxu0 %v2814
    %3196 = vmatprep.subr.bf16.mxu0 %v2819
    %3197 = vmatpush1.bf16.msra.mxu0 %v2818
    %3198 = vmatprep.subr.bf16.mxu0 %v2823
    %3199 = vmatpush1.bf16.msra.mxu0 %v2822
    %3200 = vmatprep.subr.bf16.mxu0 %v2827
    %3201 = vmatpush1.bf16.msra.mxu0 %v2826
    %3202 = vmatprep.subr.bf16.mxu0 %v2831
    %3203 = vmatpush1.bf16.msra.mxu0 %v2830
    %3204 = vmatprep.subr.bf16.mxu0 %v2835
    %3205 = vmatpush1.bf16.msra.mxu0 %v2834
    %3206 = vmatprep.subr.bf16.mxu0 %v2839
    %3207 = vmatpush1.bf16.msra.mxu0 %v2838
    %3208 = vmatprep.subr.bf16.mxu0 %v2843
    %3209 = vmatpush1.bf16.msra.mxu0 %v2842
    %3210 = vmatprep.subr.bf16.mxu0 %v2847
    %3211 = vmatpush1.bf16.msra.mxu0 %v2846
    %3212 = vmatprep.mubr.bf16.mxu0 %v2653
    %3213 = vmatmul.mubr.bf16.gmra.mrb[0].mxu0 %v2652
    %v3214 = vpop.f32.mrb[0].mxu0
    %v3215 = vadd.f32 %v3174, %v3214
    %v3216 = vpop.f32.mrb[0].mxu0
    %v3217 = vadd.f32 %v3176, %v3216
    %v3218 = vpop.f32.mrb[0].mxu0
    %v3219 = vpop.f32.mrb[0].mxu0
    %3220 = vdwg.mxu0
    %3221 = vmatprep.subr.bf16.mxu0 %v2851
    %3222 = vmatpush1.bf16.msra.mxu0 %v2850
    %3223 = vmatprep.subr.bf16.mxu0 %v2855
    %3224 = vmatpush1.bf16.msra.mxu0 %v2854
    %3225 = vmatprep.subr.bf16.mxu0 %v2859
    %3226 = vmatpush1.bf16.msra.mxu0 %v2858
    %3227 = vmatprep.subr.bf16.mxu0 %v2863
    %3228 = vmatpush1.bf16.msra.mxu0 %v2862
    %3229 = vmatprep.subr.bf16.mxu0 %v2867
    %3230 = vmatpush1.bf16.msra.mxu0 %v2866
    %3231 = vmatprep.subr.bf16.mxu0 %v2871
    %3232 = vmatpush1.bf16.msra.mxu0 %v2870
    %3233 = vmatprep.subr.bf16.mxu0 %v2875
    %3234 = vmatpush1.bf16.msra.mxu0 %v2874
    %3235 = vmatprep.subr.bf16.mxu0 %v2879
    %3236 = vmatpush1.bf16.msra.mxu0 %v2878
    %3237 = vmatprep.subr.bf16.mxu0 %v2883
    %3238 = vmatpush1.bf16.msra.mxu0 %v2882
    %3239 = vmatprep.subr.bf16.mxu0 %v2887
    %3240 = vmatpush1.bf16.msra.mxu0 %v2886
    %3241 = vmatprep.subr.bf16.mxu0 %v2891
    %3242 = vmatpush1.bf16.msra.mxu0 %v2890
    %3243 = vmatprep.subr.bf16.mxu0 %v2895
    %3244 = vmatpush1.bf16.msra.mxu0 %v2894
    %3245 = vmatprep.subr.bf16.mxu0 %v2899
    %3246 = vmatpush1.bf16.msra.mxu0 %v2898
    %3247 = vmatprep.subr.bf16.mxu0 %v2903
    %3248 = vmatpush1.bf16.msra.mxu0 %v2902
    %3249 = vmatprep.subr.bf16.mxu0 %v2907
    %3250 = vmatpush1.bf16.msra.mxu0 %v2906
    %3251 = vmatprep.subr.bf16.mxu0 %v2911
    %3252 = vmatpush1.bf16.msra.mxu0 %v2910
    %3253 = vmatprep.mubr.bf16.mxu0 %v2655
    %3254 = vmatmul.mubr.bf16.gmra.mrb[0].mxu0 %v2654
    %v3255 = vpop.f32.mrb[0].mxu0
    %v3256 = vadd.f32 %v3215, %v3255
    %v3257 = vpop.f32.mrb[0].mxu0
    %v3258 = vadd.f32 %v3217, %v3257
    %v3259 = vpop.f32.mrb[0].mxu0
    %v3260 = vpop.f32.mrb[0].mxu0
    %3261 = vdwg.mxu0
    %v3262 = vmax.f32 %v3092, 0.0
    %v3263 = vmax.f32 %v3094, 0.0
    %v3264 = vmax.f32 %v3256, 0.0
    %v3265 = vmax.f32 %v3258, 0.0
    %s3266 = smul.u32 4, 64
    %s3267 = smul.u32 %s3266, 2
    %s3268 = sshll.u32 %s3267, 4
    %3269 = dma.done %s143, %s3268
    %v3270 = vpack.c.bf16 %v3262, %v3262
    %v3271 = vpack.c.bf16 %v3263, %v3263
    %v3272 = vpack.c.bf16 %v3264, %v3264
    %v3273 = vpack.c.bf16 %v3265, %v3265
    %v3274 = vld [vmem:[#allocation4] sm:$0xff]
    %v3275 = vld [vmem:[#allocation4 + $0x8] sm:$0xff]
    %v3276 = vld [vmem:[#allocation4 + $0x10] sm:$0xff]
    %v3277 = vld [vmem:[#allocation4 + $0x18] sm:$0xff]
    %v3278 = vld [vmem:[#allocation4 + $0x20] sm:$0xff]
    %v3279 = vld [vmem:[#allocation4 + $0x28] sm:$0xff]
    %v3280 = vld [vmem:[#allocation4 + $0x30] sm:$0xff]
    %v3281 = vld [vmem:[#allocation4 + $0x38] sm:$0xff]
    %v3282 = vld [vmem:[#allocation4 + $0x40] sm:$0xff]
    %v3283 = vld [vmem:[#allocation4 + $0x48] sm:$0xff]
    %v3284 = vld [vmem:[#allocation4 + $0x50] sm:$0xff]
    %v3285 = vld [vmem:[#allocation4 + $0x58] sm:$0xff]
    %v3286 = vld [vmem:[#allocation4 + $0x60] sm:$0xff]
    %v3287 = vld [vmem:[#allocation4 + $0x68] sm:$0xff]
    %v3288 = vld [vmem:[#allocation4 + $0x70] sm:$0xff]
    %v3289 = vld [vmem:[#allocation4 + $0x78] sm:$0xff]
    %v3290 = vld [vmem:[#allocation4 + $0x80] sm:$0xff]
    %v3291 = vld [vmem:[#allocation4 + $0x88] sm:$0xff]
    %v3292 = vld [vmem:[#allocation4 + $0x90] sm:$0xff]
    %v3293 = vld [vmem:[#allocation4 + $0x98] sm:$0xff]
    %v3294 = vld [vmem:[#allocation4 + $0xa0] sm:$0xff]
    %v3295 = vld [vmem:[#allocation4 + $0xa8] sm:$0xff]
    %v3296 = vld [vmem:[#allocation4 + $0xb0] sm:$0xff]
    %v3297 = vld [vmem:[#allocation4 + $0xb8] sm:$0xff]
    %v3298 = vld [vmem:[#allocation4 + $0xc0] sm:$0xff]
    %v3299 = vld [vmem:[#allocation4 + $0xc8] sm:$0xff]
    %v3300 = vld [vmem:[#allocation4 + $0xd0] sm:$0xff]
    %v3301 = vld [vmem:[#allocation4 + $0xd8] sm:$0xff]
    %v3302 = vld [vmem:[#allocation4 + $0xe0] sm:$0xff]
    %v3303 = vld [vmem:[#allocation4 + $0xe8] sm:$0xff]
    %v3304 = vld [vmem:[#allocation4 + $0xf0] sm:$0xff]
    %v3305 = vld [vmem:[#allocation4 + $0xf8] sm:$0xff]
    %v3306 = vld [vmem:[#allocation4 + $0x100] sm:$0xff]
    %v3307 = vld [vmem:[#allocation4 + $0x108] sm:$0xff]
    %v3308 = vld [vmem:[#allocation4 + $0x110] sm:$0xff]
    %v3309 = vld [vmem:[#allocation4 + $0x118] sm:$0xff]
    %v3310 = vld [vmem:[#allocation4 + $0x120] sm:$0xff]
    %v3311 = vld [vmem:[#allocation4 + $0x128] sm:$0xff]
    %v3312 = vld [vmem:[#allocation4 + $0x130] sm:$0xff]
    %v3313 = vld [vmem:[#allocation4 + $0x138] sm:$0xff]
    %v3314 = vld [vmem:[#allocation4 + $0x140] sm:$0xff]
    %v3315 = vld [vmem:[#allocation4 + $0x148] sm:$0xff]
    %v3316 = vld [vmem:[#allocation4 + $0x150] sm:$0xff]
    %v3317 = vld [vmem:[#allocation4 + $0x158] sm:$0xff]
    %v3318 = vld [vmem:[#allocation4 + $0x160] sm:$0xff]
    %v3319 = vld [vmem:[#allocation4 + $0x168] sm:$0xff]
    %v3320 = vld [vmem:[#allocation4 + $0x170] sm:$0xff]
    %v3321 = vld [vmem:[#allocation4 + $0x178] sm:$0xff]
    %v3322 = vld [vmem:[#allocation4 + $0x180] sm:$0xff]
    %v3323 = vld [vmem:[#allocation4 + $0x188] sm:$0xff]
    %v3324 = vld [vmem:[#allocation4 + $0x190] sm:$0xff]
    %v3325 = vld [vmem:[#allocation4 + $0x198] sm:$0xff]
    %v3326 = vld [vmem:[#allocation4 + $0x1a0] sm:$0xff]
    %v3327 = vld [vmem:[#allocation4 + $0x1a8] sm:$0xff]
    %v3328 = vld [vmem:[#allocation4 + $0x1b0] sm:$0xff]
    %v3329 = vld [vmem:[#allocation4 + $0x1b8] sm:$0xff]
    %v3330 = vld [vmem:[#allocation4 + $0x1c0] sm:$0xff]
    %v3331 = vld [vmem:[#allocation4 + $0x1c8] sm:$0xff]
    %v3332 = vld [vmem:[#allocation4 + $0x1d0] sm:$0xff]
    %v3333 = vld [vmem:[#allocation4 + $0x1d8] sm:$0xff]
    %v3334 = vld [vmem:[#allocation4 + $0x1e0] sm:$0xff]
    %v3335 = vld [vmem:[#allocation4 + $0x1e8] sm:$0xff]
    %v3336 = vld [vmem:[#allocation4 + $0x1f0] sm:$0xff]
    %v3337 = vld [vmem:[#allocation4 + $0x1f8] sm:$0xff]
    %v3338 = vld [vmem:[#allocation12] sm:$0x3]
    %v3340 = vlaneseq
    %v3341 = vshrl.u32 %v3340, 7
    %v3342 = vsub.s32 0, %v3341
    %v3343 = vrot.slane %v3338, %v3342
    %v3344 = vlaneseq
    %v3345 = vshrl.u32 %v3344, 7
    %v3346 = vsub.s32 1, %v3345
    %v3347 = vrot.slane %v3338, %v3346
    %3350 = vmatprep.subr.bf16.mxu0 %v3275
    %3351 = vmatpush1.bf16.msra.mxu0 %v3274
    %3352 = vmatprep.subr.bf16.mxu0 %v3277
    %3353 = vmatpush1.bf16.msra.mxu0 %v3276
    %3354 = vmatprep.subr.bf16.mxu0 %v3279
    %3355 = vmatpush1.bf16.msra.mxu0 %v3278
    %3356 = vmatprep.subr.bf16.mxu0 %v3281
    %3357 = vmatpush1.bf16.msra.mxu0 %v3280
    %3358 = vmatprep.subr.bf16.mxu0 %v3283
    %3359 = vmatpush1.bf16.msra.mxu0 %v3282
    %3360 = vmatprep.subr.bf16.mxu0 %v3285
    %3361 = vmatpush1.bf16.msra.mxu0 %v3284
    %3362 = vmatprep.subr.bf16.mxu0 %v3287
    %3363 = vmatpush1.bf16.msra.mxu0 %v3286
    %3364 = vmatprep.subr.bf16.mxu0 %v3289
    %3365 = vmatpush1.bf16.msra.mxu0 %v3288
    %3366 = vmatprep.subr.bf16.mxu0 %v3291
    %3367 = vmatpush1.bf16.msra.mxu0 %v3290
    %3368 = vmatprep.subr.bf16.mxu0 %v3293
    %3369 = vmatpush1.bf16.msra.mxu0 %v3292
    %3370 = vmatprep.subr.bf16.mxu0 %v3295
    %3371 = vmatpush1.bf16.msra.mxu0 %v3294
    %3372 = vmatprep.subr.bf16.mxu0 %v3297
    %3373 = vmatpush1.bf16.msra.mxu0 %v3296
    %3374 = vmatprep.subr.bf16.mxu0 %v3299
    %3375 = vmatpush1.bf16.msra.mxu0 %v3298
    %3376 = vmatprep.subr.bf16.mxu0 %v3301
    %3377 = vmatpush1.bf16.msra.mxu0 %v3300
    %3378 = vmatprep.subr.bf16.mxu0 %v3303
    %3379 = vmatpush1.bf16.msra.mxu0 %v3302
    %3380 = vmatprep.subr.bf16.mxu0 %v3305
    %3381 = vmatpush1.bf16.msra.mxu0 %v3304
    %3382 = vmatprep.mubr.bf16.mxu0 %v3271
    %3383 = vmatmul.mubr.bf16.gmra.mrb[0].mxu0 %v3270
    %v3384 = vpop.f32.mrb[0].mxu0
    %v3385 = vadd.f32 %v3343, %v3384
    %v3386 = vpop.f32.mrb[0].mxu0
    %v3387 = vadd.f32 %v3347, %v3386
    %v3388 = vpop.f32.mrb[0].mxu0
    %v3389 = vpop.f32.mrb[0].mxu0
    %3390 = vdwg.mxu0
    %3391 = vmatprep.subr.bf16.mxu0 %v3307
    %3392 = vmatpush1.bf16.msra.mxu0 %v3306
    %3393 = vmatprep.subr.bf16.mxu0 %v3309
    %3394 = vmatpush1.bf16.msra.mxu0 %v3308
    %3395 = vmatprep.subr.bf16.mxu0 %v3311
    %3396 = vmatpush1.bf16.msra.mxu0 %v3310
    %3397 = vmatprep.subr.bf16.mxu0 %v3313
    %3398 = vmatpush1.bf16.msra.mxu0 %v3312
    %3399 = vmatprep.subr.bf16.mxu0 %v3315
    %3400 = vmatpush1.bf16.msra.mxu0 %v3314
    %3401 = vmatprep.subr.bf16.mxu0 %v3317
    %3402 = vmatpush1.bf16.msra.mxu0 %v3316
    %3403 = vmatprep.subr.bf16.mxu0 %v3319
    %3404 = vmatpush1.bf16.msra.mxu0 %v3318
    %3405 = vmatprep.subr.bf16.mxu0 %v3321
    %3406 = vmatpush1.bf16.msra.mxu0 %v3320
    %3407 = vmatprep.subr.bf16.mxu0 %v3323
    %3408 = vmatpush1.bf16.msra.mxu0 %v3322
    %3409 = vmatprep.subr.bf16.mxu0 %v3325
    %3410 = vmatpush1.bf16.msra.mxu0 %v3324
    %3411 = vmatprep.subr.bf16.mxu0 %v3327
    %3412 = vmatpush1.bf16.msra.mxu0 %v3326
    %3413 = vmatprep.subr.bf16.mxu0 %v3329
    %3414 = vmatpush1.bf16.msra.mxu0 %v3328
    %3415 = vmatprep.subr.bf16.mxu0 %v3331
    %3416 = vmatpush1.bf16.msra.mxu0 %v3330
    %3417 = vmatprep.subr.bf16.mxu0 %v3333
    %3418 = vmatpush1.bf16.msra.mxu0 %v3332
    %3419 = vmatprep.subr.bf16.mxu0 %v3335
    %3420 = vmatpush1.bf16.msra.mxu0 %v3334
    %3421 = vmatprep.subr.bf16.mxu0 %v3337
    %3422 = vmatpush1.bf16.msra.mxu0 %v3336
    %3423 = vmatprep.mubr.bf16.mxu0 %v3273
    %3424 = vmatmul.mubr.bf16.gmra.mrb[0].mxu0 %v3272
    %v3425 = vpop.f32.mrb[0].mxu0
    %v3426 = vadd.f32 %v3385, %v3425
    %v3427 = vpop.f32.mrb[0].mxu0
    %v3428 = vadd.f32 %v3387, %v3427
    %v3429 = vpop.f32.mrb[0].mxu0
    %v3430 = vpop.f32.mrb[0].mxu0
    %3431 = vdwg.mxu0
    %v3432 = vmax.f32 %v3426, 0.0
    %v3433 = vmax.f32 %v3428, 0.0
    %s3434 = smul.u32 4, 32
    %s3435 = smul.u32 %s3434, 1
    %s3436 = sshll.u32 %s3435, 4
    %3437 = dma.done %s178, %s3436
    %v3438 = vpack.c.bf16 %v3432, %v3432
    %v3439 = vpack.c.bf16 %v3433, %v3433
    %v3440 = vld [vmem:[#allocation5] sm:$0xff]
    %v3441 = vld [vmem:[#allocation5 + $0x8] sm:$0xff]
    %v3442 = vld [vmem:[#allocation5 + $0x10] sm:$0xff]
    %v3443 = vld [vmem:[#allocation5 + $0x18] sm:$0xff]
    %v3444 = vld [vmem:[#allocation5 + $0x20] sm:$0xff]
    %v3445 = vld [vmem:[#allocation5 + $0x28] sm:$0xff]
    %v3446 = vld [vmem:[#allocation5 + $0x30] sm:$0xff]
    %v3447 = vld [vmem:[#allocation5 + $0x38] sm:$0xff]
    %v3448 = vld [vmem:[#allocation5 + $0x40] sm:$0xff]
    %v3449 = vld [vmem:[#allocation5 + $0x48] sm:$0xff]
    %v3450 = vld [vmem:[#allocation5 + $0x50] sm:$0xff]
    %v3451 = vld [vmem:[#allocation5 + $0x58] sm:$0xff]
    %v3452 = vld [vmem:[#allocation5 + $0x60] sm:$0xff]
    %v3453 = vld [vmem:[#allocation5 + $0x68] sm:$0xff]
    %v3454 = vld [vmem:[#allocation5 + $0x70] sm:$0xff]
    %v3455 = vld [vmem:[#allocation5 + $0x78] sm:$0xff]
    %v3456 = vld [vmem:[#allocation13] sm:$0x1]
    %v3458 = vlaneseq
    %v3459 = vshrl.u32 %v3458, 7
    %v3460 = vsub.s32 0, %v3459
    %v3461 = vrot.slane %v3456, %v3460
    %3463 = vmatprep.subr.bf16.mxu0 0
    %3464 = vmatpush1.bf16.msra.mxu0 %v3440
    %3465 = vmatprep.subr.bf16.mxu0 0
    %3466 = vmatpush1.bf16.msra.mxu0 %v3441
    %3467 = vmatprep.subr.bf16.mxu0 0
    %3468 = vmatpush1.bf16.msra.mxu0 %v3442
    %3469 = vmatprep.subr.bf16.mxu0 0
    %3470 = vmatpush1.bf16.msra.mxu0 %v3443
    %3471 = vmatprep.subr.bf16.mxu0 0
    %3472 = vmatpush1.bf16.msra.mxu0 %v3444
    %3473 = vmatprep.subr.bf16.mxu0 0
    %3474 = vmatpush1.bf16.msra.mxu0 %v3445
    %3475 = vmatprep.subr.bf16.mxu0 0
    %3476 = vmatpush1.bf16.msra.mxu0 %v3446
    %3477 = vmatprep.subr.bf16.mxu0 0
    %3478 = vmatpush1.bf16.msra.mxu0 %v3447
    %3479 = vmatprep.subr.bf16.mxu0 0
    %3480 = vmatpush1.bf16.msra.mxu0 %v3448
    %3481 = vmatprep.subr.bf16.mxu0 0
    %3482 = vmatpush1.bf16.msra.mxu0 %v3449
    %3483 = vmatprep.subr.bf16.mxu0 0
    %3484 = vmatpush1.bf16.msra.mxu0 %v3450
    %3485 = vmatprep.subr.bf16.mxu0 0
    %3486 = vmatpush1.bf16.msra.mxu0 %v3451
    %3487 = vmatprep.subr.bf16.mxu0 0
    %3488 = vmatpush1.bf16.msra.mxu0 %v3452
    %3489 = vmatprep.subr.bf16.mxu0 0
    %3490 = vmatpush1.bf16.msra.mxu0 %v3453
    %3491 = vmatprep.subr.bf16.mxu0 0
    %3492 = vmatpush1.bf16.msra.mxu0 %v3454
    %3493 = vmatprep.subr.bf16.mxu0 0
    %3494 = vmatpush1.bf16.msra.mxu0 %v3455
    %3495 = vmatprep.mubr.bf16.mxu0 %v3439
    %3496 = vmatmul.mubr.bf16.gmra.mrb[0].mxu0 %v3438
    %v3497 = vpop.f32.mrb[0].mxu0
    %v3498 = vadd.f32 %v3461, %v3497
    %v3499 = vpop.f32.mrb[0].mxu0
    %v3500 = vpop.f32.mrb[0].mxu0
    %v3501 = vpop.f32.mrb[0].mxu0
    %3502 = vdwg.mxu0
    %3503 = vst [vmem:[#allocation15] sm:$0xff] %v3498
    // Predicated region
    $region42: #{neural_network_forward.1} parent=1 // pred_check
      _
    $region43: #{neural_network_forward.1} parent=1 // pred_check_branch
      %3505 = sbr.rel (0) target = $region45
    $region44: #{neural_network_forward.1} parent=1 // pred_region
      %s3507 = ssub.s32 128, 128
      %3508 = vsyncadd [#allocation9], %s3507
      %s3510 = sshll.u32 [#allocation15], 4
      %s3511 = int_to_ptr.vmem [resolvable:$true] %s3510
      %3513 = dma.vmem_to_hbm [thread:$0]  %s3511, 128, %s9, [#allocation9]
    $region45: #{neural_network_forward.1} parent=1 // pred_fallthru
      _
    // Predicated region
    $region46: #{neural_network_forward.1} parent=1 // pred_check
      _
    $region47: #{neural_network_forward.1} parent=1 // pred_check_branch
      %3515 = sbr.rel (0) target = $region49
    $region48: #{neural_network_forward.1} parent=1 // pred_region
      %3516 = dma.done [#allocation9], 128
    $region49: #{neural_network_forward.1} parent=1 // pred_fallthru
      _
    %3517 = vsyncpa [#allocation8], 1
    %3518 = vsyncpa [#allocation11], 1
    %3519 = vsyncpa [#allocation14], 1
    %3520 = vsyncpa [#allocation9], 1
  %3521 = vsyncmov [#allocation6]
  %s3522 = vpop.sfrf %3521
  %p3523 = scmp.eq.s32.totalorder %s3522, 0
  %p3524 = pneg %p3523
  %3526 = shalt.err (%p3524)
  %s3527 = scalar_lea.sflag [#allocation6], 1
  %3528 = vsyncmov %s3527
  %s3529 = vpop.sfrf %3528
  %p3530 = scmp.eq.s32.totalorder %s3529, 0
  %p3531 = pneg %p3530
  %3533 = shalt.err (%p3531)
  %s3534 = scalar_lea.sflag [#allocation6], 2
  %3535 = vsyncmov %s3534
  %s3536 = vpop.sfrf %3535
  %p3537 = scmp.eq.s32.totalorder %s3536, 0
  %p3538 = pneg %p3537
  %3540 = shalt.err (%p3538)
  %s3541 = scalar_lea.sflag [#allocation6], 3
  %3542 = vsyncmov %s3541
  %s3543 = vpop.sfrf %3542
  %p3544 = scmp.eq.s32.totalorder %s3543, 0
  %p3545 = pneg %p3544
  %3547 = shalt.err (%p3545)

</llo_original>
